<compile_context>
chip_gen: v7x
topology: tpu7x:2x2x1
jax: 0.10.0
libtpu: 0.0.40
codegen_flags: <defaults>
</compile_context>

<pallas_src>
import functools
import math

import jax
import jax.numpy as jnp
from jax.experimental import pallas as pl
from jax.experimental.pallas import tpu as pltpu

# ----- small, deterministic "bert_base/"-style config -----
VOCAB = 50
TYPE_VOCAB = 2
MAX_POS = 16
HIDDEN = 32            # args.bert_hidden_size
N_HEADS = 2
HEAD_DIM = HIDDEN // N_HEADS
N_LAYERS = 2
INTERMEDIATE = 64
N_LABELS = 3           # len(labels)
OUT_PAD = 128          # lane-dense padded classifier output width
LN_EPS = 1e-12
ATTN_SCALE = 1.0 / math.sqrt(HEAD_DIM)


# ---------------- fused Pallas kernel ----------------

def _layernorm(x, g, b):
    mean = jnp.mean(x, axis=-1, keepdims=True)
    xc = x - mean
    var = jnp.mean(xc * xc, axis=-1, keepdims=True)
    return xc * jax.lax.rsqrt(var + LN_EPS) * g + b


def _gelu(x):
    # exact erf-GELU, as in pytorch_pretrained_bert
    return 0.5 * x * (1.0 + jax.lax.erf(x / math.sqrt(2.0)))


def _bert_fused_kernel(ids_ref, types_ref,                       # SMEM (scalar prefetch)
                       mask_ref, word_ref, pos_ref, typ_ref,     # VMEM inputs ...
                       emb_ln_g_ref, emb_ln_b_ref,
                       q_w_ref, q_b_ref, k_w_ref, k_b_ref, v_w_ref, v_b_ref,
                       ao_w_ref, ao_b_ref, aln_g_ref, aln_b_ref,
                       i_w_ref, i_b_ref, o_w_ref, o_b_ref,
                       oln_g_ref, oln_b_ref,
                       pool_w_ref, pool_b_ref, cls_w_ref, cls_b_ref,
                       o_ref,                                    # output
                       emb_ref,                                  # VMEM scratch [B*S, H]
                       *, batch, seq):
    f32 = jnp.float32

    # ---- in-kernel embedding gather: word + position + token-type ----
    for b in range(batch):
        for s in range(seq):
            wid = ids_ref[b, s]
            tid = types_ref[b, s]
            row = (word_ref[pl.ds(wid, 1), :]
                   + pos_ref[pl.ds(s, 1), :]
                   + typ_ref[pl.ds(tid, 1), :])
            emb_ref[pl.ds(b * seq + s, 1), :] = row

    h = _layernorm(emb_ref[...], emb_ln_g_ref[...], emb_ln_b_ref[...])   # [B*S, H]

    # ---- additive attention mask, built in-kernel and broadcast once ----
    mask_add = (1.0 - mask_ref[...].astype(f32)) * -10000.0              # [B, S]
    mask_bss = jnp.broadcast_to(mask_add.reshape(batch, 1, seq),
                                (batch, seq, seq))                       # hoisted

    for l in range(N_LAYERS):                    # unrolled static layer loop
        x = h                                    # [B*S, H]
        attn_out = jnp.zeros((batch * seq, HIDDEN), f32)

        # per-head weights avoid any lane-axis slicing; batch dim is batched
        # inside dot_general (one MXU sequence per head, not per (b, head)).
        for hh in range(N_HEADS):
            q = (jnp.dot(x, q_w_ref[l, hh], preferred_element_type=f32)
                 + q_b_ref[l, hh]).reshape(batch, seq, HEAD_DIM)
            k = (jnp.dot(x, k_w_ref[l, hh], preferred_element_type=f32)
                 + k_b_ref[l, hh]).reshape(batch, seq, HEAD_DIM)
            v = (jnp.dot(x, v_w_ref[l, hh], preferred_element_type=f32)
                 + v_b_ref[l, hh]).reshape(batch, seq, HEAD_DIM)

            # scores: [B,S,dH] x [B,S,dH] -> [B,S,S]  (batched over B)
            s = jax.lax.dot_general(q, k, (((2,), (2,)), ((0,), (0,))),
                                    preferred_element_type=f32) * ATTN_SCALE
            s = s + mask_bss
            s = s - jnp.max(s, axis=-1, keepdims=True)
            p = jnp.exp(s)
            p = p * pl.reciprocal(jnp.sum(p, axis=-1, keepdims=True),
                                  approx=True)

            # context: [B,S,S] x [B,S,dH] -> [B,S,dH]  (batched over B)
            ctx = jax.lax.dot_general(p, v, (((2,), (1,)), ((0,), (0,))),
                                      preferred_element_type=f32)
            ctx = ctx.reshape(batch * seq, HEAD_DIM)

            # fold the head directly into the output projection — no concat
            attn_out = attn_out + jnp.dot(ctx, ao_w_ref[l, hh],
                                          preferred_element_type=f32)

        attn_out = attn_out + ao_b_ref[l]
        h = _layernorm(attn_out + x, aln_g_ref[l], aln_b_ref[l])

        # ---- feed-forward (GELU) + fused residual + LayerNorm ----
        inter = _gelu(jnp.dot(h, i_w_ref[l], preferred_element_type=f32)
                      + i_b_ref[l])
        ffn = jnp.dot(inter, o_w_ref[l], preferred_element_type=f32) + o_b_ref[l]
        h = _layernorm(ffn + h, oln_g_ref[l], oln_b_ref[l])

    # ---- pooler: dense + tanh on the [CLS] token of each sequence ----
    cls = h.reshape(batch, seq, HIDDEN)[:, 0, :]                           # [B, H]
    pooled = jnp.tanh(jnp.dot(cls, pool_w_ref[...],
                              preferred_element_type=f32) + pool_b_ref[...])

    # TODO(synk): nn.Dropout(args.bert_dropout) is identity in eval/inference mode; no-op here.
    # classifier, lane-dense (weights padded to 128 columns in the wrapper)
    logits = jnp.dot(pooled, cls_w_ref[...],
                     preferred_element_type=f32) + cls_b_ref[...]          # [B, 128]
    o_ref[...] = logits.astype(o_ref.dtype)


def _full_spec(shape):
    nd = len(shape)
    # index_map receives (grid indices..., *scalar_prefetch_refs); ignore all.
    return pl.BlockSpec(shape, lambda *_args, _nd=nd: (0,) * _nd)


# ---------------- parameter init (deterministic, synthetic) ----------------

def init_params(key):
    def normal(k, shape):
        return 0.02 * jax.random.normal(k, shape, jnp.float32)

    keys = iter(jax.random.split(key, 4 + N_LAYERS * 6 + 2))
    p = {
        "word_emb": normal(next(keys), (VOCAB, HIDDEN)),
        "pos_emb":  normal(next(keys), (MAX_POS, HIDDEN)),
        "type_emb": normal(next(keys), (TYPE_VOCAB, HIDDEN)),
        "emb_ln_g": jnp.ones((HIDDEN,), jnp.float32),
        "emb_ln_b": jnp.zeros((HIDDEN,), jnp.float32),
        "layers": [],
    }
    for _ in range(N_LAYERS):
        lp = {
            "q_w": normal(next(keys), (HIDDEN, HIDDEN)), "q_b": jnp.zeros((HIDDEN,), jnp.float32),
            "k_w": normal(next(keys), (HIDDEN, HIDDEN)), "k_b": jnp.zeros((HIDDEN,), jnp.float32),
            "v_w": normal(next(keys), (HIDDEN, HIDDEN)), "v_b": jnp.zeros((HIDDEN,), jnp.float32),
            "ao_w": normal(next(keys), (HIDDEN, HIDDEN)), "ao_b": jnp.zeros((HIDDEN,), jnp.float32),
            "aln_g": jnp.ones((HIDDEN,), jnp.float32), "aln_b": jnp.zeros((HIDDEN,), jnp.float32),
            "i_w": normal(next(keys), (HIDDEN, INTERMEDIATE)), "i_b": jnp.zeros((INTERMEDIATE,), jnp.float32),
            "o_w": normal(next(keys), (INTERMEDIATE, HIDDEN)), "o_b": jnp.zeros((HIDDEN,), jnp.float32),
            "oln_g": jnp.ones((HIDDEN,), jnp.float32), "oln_b": jnp.zeros((HIDDEN,), jnp.float32),
        }
        p["layers"].append(lp)
    p["pool_w"] = normal(next(keys), (HIDDEN, HIDDEN))
    p["pool_b"] = jnp.zeros((HIDDEN,), jnp.float32)
    p["cls_w"] = normal(next(keys), (HIDDEN, N_LABELS))
    p["cls_b"] = jnp.zeros((N_LABELS,), jnp.float32)
    return p


# ---------------- one-time weight prepacking (parameter-load time) ----------------

def prepack_params(params):
    """Stack / split / pad all weights once, into kernel-friendly layouts."""
    L = params["layers"]

    def per_head_w(key):   # [H, H] column-split -> [L, nH, H, dH]
        return jnp.stack([lp[key].reshape(HIDDEN, N_HEADS, HEAD_DIM).transpose(1, 0, 2)
                          for lp in L])

    def per_head_b(key):   # [H] -> [L, nH, 1, dH]
        return jnp.stack([lp[key].reshape(N_HEADS, 1, HEAD_DIM) for lp in L])

    def stack_row(key, width):   # [w] -> [L, 1, w]
        return jnp.stack([lp[key].reshape(1, width) for lp in L])

    packed = {
        "word_emb": params["word_emb"],
        "pos_emb":  params["pos_emb"],
        "type_emb": params["type_emb"],
        "emb_ln_g": params["emb_ln_g"].reshape(1, HIDDEN),
        "emb_ln_b": params["emb_ln_b"].reshape(1, HIDDEN),
        "q_w": per_head_w("q_w"), "q_b": per_head_b("q_b"),
        "k_w": per_head_w("k_w"), "k_b": per_head_b("k_b"),
        "v_w": per_head_w("v_w"), "v_b": per_head_b("v_b"),
        # attention output weight split along its INPUT (context) dim per head
        "ao_w": jnp.stack([lp["ao_w"].reshape(N_HEADS, HEAD_DIM, HIDDEN) for lp in L]),
        "ao_b": stack_row("ao_b", HIDDEN),
        "aln_g": stack_row("aln_g", HIDDEN), "aln_b": stack_row("aln_b", HIDDEN),
        "i_w": jnp.stack([lp["i_w"] for lp in L]), "i_b": stack_row("i_b", INTERMEDIATE),
        "o_w": jnp.stack([lp["o_w"] for lp in L]), "o_b": stack_row("o_b", HIDDEN),
        "oln_g": stack_row("oln_g", HIDDEN), "oln_b": stack_row("oln_b", HIDDEN),
        "pool_w": params["pool_w"],
        "pool_b": params["pool_b"].reshape(1, HIDDEN),
        # classifier padded to 128 lanes -> lane-dense output store
        "cls_w": jnp.pad(params["cls_w"], ((0, 0), (0, OUT_PAD - N_LABELS))),
        "cls_b": jnp.pad(params["cls_b"], (0, OUT_PAD - N_LABELS)).reshape(1, OUT_PAD),
    }
    return jax.tree_util.tree_map(jnp.asarray, packed)


# ---------------- BertNet.forward (jit this whole wrapper) ----------------

def bert_net_forward(packed, input_ids, token_type_ids=None, attention_mask=None):
    B, S = input_ids.shape
    if token_type_ids is None:
        token_type_ids = jnp.zeros_like(input_ids)
    if attention_mask is None:
        attention_mask = jnp.ones_like(input_ids)

    vmem_inputs = (
        attention_mask.astype(jnp.int32),
        packed["word_emb"], packed["pos_emb"], packed["type_emb"],
        packed["emb_ln_g"], packed["emb_ln_b"],
        packed["q_w"], packed["q_b"], packed["k_w"], packed["k_b"],
        packed["v_w"], packed["v_b"],
        packed["ao_w"], packed["ao_b"], packed["aln_g"], packed["aln_b"],
        packed["i_w"], packed["i_b"], packed["o_w"], packed["o_b"],
        packed["oln_g"], packed["oln_b"],
        packed["pool_w"], packed["pool_b"], packed["cls_w"], packed["cls_b"],
    )

    grid_spec = pltpu.PrefetchScalarGridSpec(
        num_scalar_prefetch=2,                      # input_ids, token_type_ids -> SMEM
        grid=(1,),
        in_specs=[_full_spec(a.shape) for a in vmem_inputs],
        out_specs=_full_spec((B, OUT_PAD)),
        scratch_shapes=[pltpu.VMEM((B * S, HIDDEN), jnp.float32)],  # gathered embeddings
    )

    out = pl.pallas_call(
        functools.partial(_bert_fused_kernel, batch=B, seq=S),
        out_shape=jax.ShapeDtypeStruct((B, OUT_PAD), jnp.float32),
        grid_spec=grid_spec,
        compiler_params=pltpu.CompilerParams(dimension_semantics=("arbitrary",)),
    )(input_ids.astype(jnp.int32), token_type_ids.astype(jnp.int32), *vmem_inputs)

    return out[:, :N_LABELS]


if __name__ == "__main__":
    B, S = 2, 8
    root = jax.random.PRNGKey(0)
    k_param, k_ids, k_types = jax.random.split(root, 3)

    params = init_params(k_param)
    packed = prepack_params(params)       # one-time weight packing at load time

    input_ids = jax.random.randint(k_ids, (B, S), 0, VOCAB, dtype=jnp.int32)
    token_type_ids = jax.random.randint(k_types, (B, S), 0, TYPE_VOCAB, dtype=jnp.int32)
    # last two tokens of the second sequence are padding
    attention_mask = jnp.ones((B, S), dtype=jnp.int32).at[1, -2:].set(0)

    fwd = jax.jit(bert_net_forward)
    logits = fwd(packed, input_ids, token_type_ids, attention_mask)
    logits = jax.block_until_ready(logits)
    assert logits.shape == (B, N_LABELS) and logits.dtype == jnp.float32
    assert bool(jnp.all(jnp.isfinite(logits)))
    print("KERNEL_OK")
</pallas_src>

<mosaic_0001>
module attributes {stable_mosaic.version = 11 : i64} {
  func.func @_bert_fused_kernel(%arg0: i32, %arg1: memref<2x8xi32, #tpu.memory_space<smem>>, %arg2: memref<2x8xi32, #tpu.memory_space<smem>>, %arg3: memref<2x8xi32, #tpu.memory_space<vmem>>, %arg4: memref<50x32xf32, #tpu.memory_space<vmem>>, %arg5: memref<16x32xf32, #tpu.memory_space<vmem>>, %arg6: memref<2x32xf32, #tpu.memory_space<vmem>>, %arg7: memref<1x32xf32, #tpu.memory_space<vmem>>, %arg8: memref<1x32xf32, #tpu.memory_space<vmem>>, %arg9: memref<2x2x32x16xf32, #tpu.memory_space<vmem>>, %arg10: memref<2x2x1x16xf32, #tpu.memory_space<vmem>>, %arg11: memref<2x2x32x16xf32, #tpu.memory_space<vmem>>, %arg12: memref<2x2x1x16xf32, #tpu.memory_space<vmem>>, %arg13: memref<2x2x32x16xf32, #tpu.memory_space<vmem>>, %arg14: memref<2x2x1x16xf32, #tpu.memory_space<vmem>>, %arg15: memref<2x2x16x32xf32, #tpu.memory_space<vmem>>, %arg16: memref<2x1x32xf32, #tpu.memory_space<vmem>>, %arg17: memref<2x1x32xf32, #tpu.memory_space<vmem>>, %arg18: memref<2x1x32xf32, #tpu.memory_space<vmem>>, %arg19: memref<2x32x64xf32, #tpu.memory_space<vmem>>, %arg20: memref<2x1x64xf32, #tpu.memory_space<vmem>>, %arg21: memref<2x64x32xf32, #tpu.memory_space<vmem>>, %arg22: memref<2x1x32xf32, #tpu.memory_space<vmem>>, %arg23: memref<2x1x32xf32, #tpu.memory_space<vmem>>, %arg24: memref<2x1x32xf32, #tpu.memory_space<vmem>>, %arg25: memref<32x32xf32, #tpu.memory_space<vmem>>, %arg26: memref<1x32xf32, #tpu.memory_space<vmem>>, %arg27: memref<32x128xf32, #tpu.memory_space<vmem>>, %arg28: memref<1x128xf32, #tpu.memory_space<vmem>>, %arg29: memref<2x128xf32, #tpu.memory_space<vmem>>, %arg30: memref<16x32xf32, #tpu.memory_space<vmem>>) attributes {dimension_semantics = [#tpu.dimension_semantics<arbitrary>], iteration_bounds = array<i64: 1>, scalar_prefetch = 2 : i64, scratch_operands = 1 : i64, tpu.core_type = #tpu.core_type<tc>, window_params = [{pipeline_mode = #tpu.pipeline_mode<synchronous>, transform_indices = @transform_0, window_bounds = array<i64: 2, 8>}, {pipeline_mode = #tpu.pipeline_mode<synchronous>, transform_indices = @transform_1, window_bounds = array<i64: 50, 32>}, {pipeline_mode = #tpu.pipeline_mode<synchronous>, transform_indices = @transform_2, window_bounds = array<i64: 16, 32>}, {pipeline_mode = #tpu.pipeline_mode<synchronous>, transform_indices = @transform_3, window_bounds = array<i64: 2, 32>}, {pipeline_mode = #tpu.pipeline_mode<synchronous>, transform_indices = @transform_4, window_bounds = array<i64: 1, 32>}, {pipeline_mode = #tpu.pipeline_mode<synchronous>, transform_indices = @transform_5, window_bounds = array<i64: 1, 32>}, {pipeline_mode = #tpu.pipeline_mode<synchronous>, transform_indices = @transform_6, window_bounds = array<i64: 2, 2, 32, 16>}, {pipeline_mode = #tpu.pipeline_mode<synchronous>, transform_indices = @transform_7, window_bounds = array<i64: 2, 2, 1, 16>}, {pipeline_mode = #tpu.pipeline_mode<synchronous>, transform_indices = @transform_8, window_bounds = array<i64: 2, 2, 32, 16>}, {pipeline_mode = #tpu.pipeline_mode<synchronous>, transform_indices = @transform_9, window_bounds = array<i64: 2, 2, 1, 16>}, {pipeline_mode = #tpu.pipeline_mode<synchronous>, transform_indices = @transform_10, window_bounds = array<i64: 2, 2, 32, 16>}, {pipeline_mode = #tpu.pipeline_mode<synchronous>, transform_indices = @transform_11, window_bounds = array<i64: 2, 2, 1, 16>}, {pipeline_mode = #tpu.pipeline_mode<synchronous>, transform_indices = @transform_12, window_bounds = array<i64: 2, 2, 16, 32>}, {pipeline_mode = #tpu.pipeline_mode<synchronous>, transform_indices = @transform_13, window_bounds = array<i64: 2, 1, 32>}, {pipeline_mode = #tpu.pipeline_mode<synchronous>, transform_indices = @transform_14, window_bounds = array<i64: 2, 1, 32>}, {pipeline_mode = #tpu.pipeline_mode<synchronous>, transform_indices = @transform_15, window_bounds = array<i64: 2, 1, 32>}, {pipeline_mode = #tpu.pipeline_mode<synchronous>, transform_indices = @transform_16, window_bounds = array<i64: 2, 32, 64>}, {pipeline_mode = #tpu.pipeline_mode<synchronous>, transform_indices = @transform_17, window_bounds = array<i64: 2, 1, 64>}, {pipeline_mode = #tpu.pipeline_mode<synchronous>, transform_indices = @transform_18, window_bounds = array<i64: 2, 64, 32>}, {pipeline_mode = #tpu.pipeline_mode<synchronous>, transform_indices = @transform_19, window_bounds = array<i64: 2, 1, 32>}, {pipeline_mode = #tpu.pipeline_mode<synchronous>, transform_indices = @transform_20, window_bounds = array<i64: 2, 1, 32>}, {pipeline_mode = #tpu.pipeline_mode<synchronous>, transform_indices = @transform_21, window_bounds = array<i64: 2, 1, 32>}, {pipeline_mode = #tpu.pipeline_mode<synchronous>, transform_indices = @transform_22, window_bounds = array<i64: 32, 32>}, {pipeline_mode = #tpu.pipeline_mode<synchronous>, transform_indices = @transform_23, window_bounds = array<i64: 1, 32>}, {pipeline_mode = #tpu.pipeline_mode<synchronous>, transform_indices = @transform_24, window_bounds = array<i64: 32, 128>}, {pipeline_mode = #tpu.pipeline_mode<synchronous>, transform_indices = @transform_25, window_bounds = array<i64: 1, 128>}, {pipeline_mode = #tpu.pipeline_mode<synchronous>, transform_indices = @transform_26, window_bounds = array<i64: 2, 128>}]} {
    %c0 = arith.constant 0 : index
    %c0_0 = arith.constant 0 : index
    %0 = memref.load %arg1[%c0, %c0_0] : memref<2x8xi32, #tpu.memory_space<smem>>
    %c0_1 = arith.constant 0 : index
    %c0_2 = arith.constant 0 : index
    %1 = memref.load %arg2[%c0_1, %c0_2] : memref<2x8xi32, #tpu.memory_space<smem>>
    %2 = arith.index_cast %0 : i32 to index
    %c0_3 = arith.constant 0 : index
    %3 = vector.load %arg4[%2, %c0_3] : memref<50x32xf32, #tpu.memory_space<vmem>>, vector<1x32xf32>
    %c0_4 = arith.constant 0 : index
    %c0_5 = arith.constant 0 : index
    %4 = vector.load %arg5[%c0_4, %c0_5] : memref<16x32xf32, #tpu.memory_space<vmem>>, vector<1x32xf32>
    %5 = arith.addf %3, %4 : vector<1x32xf32>
    %6 = arith.index_cast %1 : i32 to index
    %c0_6 = arith.constant 0 : index
    %7 = vector.load %arg6[%6, %c0_6] : memref<2x32xf32, #tpu.memory_space<vmem>>, vector<1x32xf32>
    %8 = arith.addf %5, %7 : vector<1x32xf32>
    %c0_7 = arith.constant 0 : index
    %c0_8 = arith.constant 0 : index
    %9 = vector.load %arg30[%c0_7, %c0_8] : memref<16x32xf32, #tpu.memory_space<vmem>>, vector<1x32xf32>
    tpu.vector_store %arg30[%c0_7, %c0_8], %8 {strides = array<i32>} : memref<16x32xf32, #tpu.memory_space<vmem>>, vector<1x32xf32>,
    %c0_9 = arith.constant 0 : index
    %c1 = arith.constant 1 : index
    %10 = memref.load %arg1[%c0_9, %c1] : memref<2x8xi32, #tpu.memory_space<smem>>
    %c0_10 = arith.constant 0 : index
    %c1_11 = arith.constant 1 : index
    %11 = memref.load %arg2[%c0_10, %c1_11] : memref<2x8xi32, #tpu.memory_space<smem>>
    %12 = arith.index_cast %10 : i32 to index
    %c0_12 = arith.constant 0 : index
    %13 = vector.load %arg4[%12, %c0_12] : memref<50x32xf32, #tpu.memory_space<vmem>>, vector<1x32xf32>
    %c1_13 = arith.constant 1 : index
    %c0_14 = arith.constant 0 : index
    %14 = vector.load %arg5[%c1_13, %c0_14] : memref<16x32xf32, #tpu.memory_space<vmem>>, vector<1x32xf32>
    %15 = arith.addf %13, %14 : vector<1x32xf32>
    %16 = arith.index_cast %11 : i32 to index
    %c0_15 = arith.constant 0 : index
    %17 = vector.load %arg6[%16, %c0_15] : memref<2x32xf32, #tpu.memory_space<vmem>>, vector<1x32xf32>
    %18 = arith.addf %15, %17 : vector<1x32xf32>
    %c1_16 = arith.constant 1 : index
    %c0_17 = arith.constant 0 : index
    %19 = vector.load %arg30[%c1_16, %c0_17] : memref<16x32xf32, #tpu.memory_space<vmem>>, vector<1x32xf32>
    tpu.vector_store %arg30[%c1_16, %c0_17], %18 {strides = array<i32>} : memref<16x32xf32, #tpu.memory_space<vmem>>, vector<1x32xf32>,
    %c0_18 = arith.constant 0 : index
    %c2 = arith.constant 2 : index
    %20 = memref.load %arg1[%c0_18, %c2] : memref<2x8xi32, #tpu.memory_space<smem>>
    %c0_19 = arith.constant 0 : index
    %c2_20 = arith.constant 2 : index
    %21 = memref.load %arg2[%c0_19, %c2_20] : memref<2x8xi32, #tpu.memory_space<smem>>
    %22 = arith.index_cast %20 : i32 to index
    %c0_21 = arith.constant 0 : index
    %23 = vector.load %arg4[%22, %c0_21] : memref<50x32xf32, #tpu.memory_space<vmem>>, vector<1x32xf32>
    %c2_22 = arith.constant 2 : index
    %c0_23 = arith.constant 0 : index
    %24 = vector.load %arg5[%c2_22, %c0_23] : memref<16x32xf32, #tpu.memory_space<vmem>>, vector<1x32xf32>
    %25 = arith.addf %23, %24 : vector<1x32xf32>
    %26 = arith.index_cast %21 : i32 to index
    %c0_24 = arith.constant 0 : index
    %27 = vector.load %arg6[%26, %c0_24] : memref<2x32xf32, #tpu.memory_space<vmem>>, vector<1x32xf32>
    %28 = arith.addf %25, %27 : vector<1x32xf32>
    %c2_25 = arith.constant 2 : index
    %c0_26 = arith.constant 0 : index
    %29 = vector.load %arg30[%c2_25, %c0_26] : memref<16x32xf32, #tpu.memory_space<vmem>>, vector<1x32xf32>
    tpu.vector_store %arg30[%c2_25, %c0_26], %28 {strides = array<i32>} : memref<16x32xf32, #tpu.memory_space<vmem>>, vector<1x32xf32>,
    %c0_27 = arith.constant 0 : index
    %c3 = arith.constant 3 : index
    %30 = memref.load %arg1[%c0_27, %c3] : memref<2x8xi32, #tpu.memory_space<smem>>
    %c0_28 = arith.constant 0 : index
    %c3_29 = arith.constant 3 : index
    %31 = memref.load %arg2[%c0_28, %c3_29] : memref<2x8xi32, #tpu.memory_space<smem>>
    %32 = arith.index_cast %30 : i32 to index
    %c0_30 = arith.constant 0 : index
    %33 = vector.load %arg4[%32, %c0_30] : memref<50x32xf32, #tpu.memory_space<vmem>>, vector<1x32xf32>
    %c3_31 = arith.constant 3 : index
    %c0_32 = arith.constant 0 : index
    %34 = vector.load %arg5[%c3_31, %c0_32] : memref<16x32xf32, #tpu.memory_space<vmem>>, vector<1x32xf32>
    %35 = arith.addf %33, %34 : vector<1x32xf32>
    %36 = arith.index_cast %31 : i32 to index
    %c0_33 = arith.constant 0 : index
    %37 = vector.load %arg6[%36, %c0_33] : memref<2x32xf32, #tpu.memory_space<vmem>>, vector<1x32xf32>
    %38 = arith.addf %35, %37 : vector<1x32xf32>
    %c3_34 = arith.constant 3 : index
    %c0_35 = arith.constant 0 : index
    %39 = vector.load %arg30[%c3_34, %c0_35] : memref<16x32xf32, #tpu.memory_space<vmem>>, vector<1x32xf32>
    tpu.vector_store %arg30[%c3_34, %c0_35], %38 {strides = array<i32>} : memref<16x32xf32, #tpu.memory_space<vmem>>, vector<1x32xf32>,
    %c0_36 = arith.constant 0 : index
    %c4 = arith.constant 4 : index
    %40 = memref.load %arg1[%c0_36, %c4] : memref<2x8xi32, #tpu.memory_space<smem>>
    %c0_37 = arith.constant 0 : index
    %c4_38 = arith.constant 4 : index
    %41 = memref.load %arg2[%c0_37, %c4_38] : memref<2x8xi32, #tpu.memory_space<smem>>
    %42 = arith.index_cast %40 : i32 to index
    %c0_39 = arith.constant 0 : index
    %43 = vector.load %arg4[%42, %c0_39] : memref<50x32xf32, #tpu.memory_space<vmem>>, vector<1x32xf32>
    %c4_40 = arith.constant 4 : index
    %c0_41 = arith.constant 0 : index
    %44 = vector.load %arg5[%c4_40, %c0_41] : memref<16x32xf32, #tpu.memory_space<vmem>>, vector<1x32xf32>
    %45 = arith.addf %43, %44 : vector<1x32xf32>
    %46 = arith.index_cast %41 : i32 to index
    %c0_42 = arith.constant 0 : index
    %47 = vector.load %arg6[%46, %c0_42] : memref<2x32xf32, #tpu.memory_space<vmem>>, vector<1x32xf32>
    %48 = arith.addf %45, %47 : vector<1x32xf32>
    %c4_43 = arith.constant 4 : index
    %c0_44 = arith.constant 0 : index
    %49 = vector.load %arg30[%c4_43, %c0_44] : memref<16x32xf32, #tpu.memory_space<vmem>>, vector<1x32xf32>
    tpu.vector_store %arg30[%c4_43, %c0_44], %48 {strides = array<i32>} : memref<16x32xf32, #tpu.memory_space<vmem>>, vector<1x32xf32>,
    %c0_45 = arith.constant 0 : index
    %c5 = arith.constant 5 : index
    %50 = memref.load %arg1[%c0_45, %c5] : memref<2x8xi32, #tpu.memory_space<smem>>
    %c0_46 = arith.constant 0 : index
    %c5_47 = arith.constant 5 : index
    %51 = memref.load %arg2[%c0_46, %c5_47] : memref<2x8xi32, #tpu.memory_space<smem>>
    %52 = arith.index_cast %50 : i32 to index
    %c0_48 = arith.constant 0 : index
    %53 = vector.load %arg4[%52, %c0_48] : memref<50x32xf32, #tpu.memory_space<vmem>>, vector<1x32xf32>
    %c5_49 = arith.constant 5 : index
    %c0_50 = arith.constant 0 : index
    %54 = vector.load %arg5[%c5_49, %c0_50] : memref<16x32xf32, #tpu.memory_space<vmem>>, vector<1x32xf32>
    %55 = arith.addf %53, %54 : vector<1x32xf32>
    %56 = arith.index_cast %51 : i32 to index
    %c0_51 = arith.constant 0 : index
    %57 = vector.load %arg6[%56, %c0_51] : memref<2x32xf32, #tpu.memory_space<vmem>>, vector<1x32xf32>
    %58 = arith.addf %55, %57 : vector<1x32xf32>
    %c5_52 = arith.constant 5 : index
    %c0_53 = arith.constant 0 : index
    %59 = vector.load %arg30[%c5_52, %c0_53] : memref<16x32xf32, #tpu.memory_space<vmem>>, vector<1x32xf32>
    tpu.vector_store %arg30[%c5_52, %c0_53], %58 {strides = array<i32>} : memref<16x32xf32, #tpu.memory_space<vmem>>, vector<1x32xf32>,
    %c0_54 = arith.constant 0 : index
    %c6 = arith.constant 6 : index
    %60 = memref.load %arg1[%c0_54, %c6] : memref<2x8xi32, #tpu.memory_space<smem>>
    %c0_55 = arith.constant 0 : index
    %c6_56 = arith.constant 6 : index
    %61 = memref.load %arg2[%c0_55, %c6_56] : memref<2x8xi32, #tpu.memory_space<smem>>
    %62 = arith.index_cast %60 : i32 to index
    %c0_57 = arith.constant 0 : index
    %63 = vector.load %arg4[%62, %c0_57] : memref<50x32xf32, #tpu.memory_space<vmem>>, vector<1x32xf32>
    %c6_58 = arith.constant 6 : index
    %c0_59 = arith.constant 0 : index
    %64 = vector.load %arg5[%c6_58, %c0_59] : memref<16x32xf32, #tpu.memory_space<vmem>>, vector<1x32xf32>
    %65 = arith.addf %63, %64 : vector<1x32xf32>
    %66 = arith.index_cast %61 : i32 to index
    %c0_60 = arith.constant 0 : index
    %67 = vector.load %arg6[%66, %c0_60] : memref<2x32xf32, #tpu.memory_space<vmem>>, vector<1x32xf32>
    %68 = arith.addf %65, %67 : vector<1x32xf32>
    %c6_61 = arith.constant 6 : index
    %c0_62 = arith.constant 0 : index
    %69 = vector.load %arg30[%c6_61, %c0_62] : memref<16x32xf32, #tpu.memory_space<vmem>>, vector<1x32xf32>
    tpu.vector_store %arg30[%c6_61, %c0_62], %68 {strides = array<i32>} : memref<16x32xf32, #tpu.memory_space<vmem>>, vector<1x32xf32>,
    %c0_63 = arith.constant 0 : index
    %c7 = arith.constant 7 : index
    %70 = memref.load %arg1[%c0_63, %c7] : memref<2x8xi32, #tpu.memory_space<smem>>
    %c0_64 = arith.constant 0 : index
    %c7_65 = arith.constant 7 : index
    %71 = memref.load %arg2[%c0_64, %c7_65] : memref<2x8xi32, #tpu.memory_space<smem>>
    %72 = arith.index_cast %70 : i32 to index
    %c0_66 = arith.constant 0 : index
    %73 = vector.load %arg4[%72, %c0_66] : memref<50x32xf32, #tpu.memory_space<vmem>>, vector<1x32xf32>
    %c7_67 = arith.constant 7 : index
    %c0_68 = arith.constant 0 : index
    %74 = vector.load %arg5[%c7_67, %c0_68] : memref<16x32xf32, #tpu.memory_space<vmem>>, vector<1x32xf32>
    %75 = arith.addf %73, %74 : vector<1x32xf32>
    %76 = arith.index_cast %71 : i32 to index
    %c0_69 = arith.constant 0 : index
    %77 = vector.load %arg6[%76, %c0_69] : memref<2x32xf32, #tpu.memory_space<vmem>>, vector<1x32xf32>
    %78 = arith.addf %75, %77 : vector<1x32xf32>
    %c7_70 = arith.constant 7 : index
    %c0_71 = arith.constant 0 : index
    %79 = vector.load %arg30[%c7_70, %c0_71] : memref<16x32xf32, #tpu.memory_space<vmem>>, vector<1x32xf32>
    tpu.vector_store %arg30[%c7_70, %c0_71], %78 {strides = array<i32>} : memref<16x32xf32, #tpu.memory_space<vmem>>, vector<1x32xf32>,
    %c1_72 = arith.constant 1 : index
    %c0_73 = arith.constant 0 : index
    %80 = memref.load %arg1[%c1_72, %c0_73] : memref<2x8xi32, #tpu.memory_space<smem>>
    %c1_74 = arith.constant 1 : index
    %c0_75 = arith.constant 0 : index
    %81 = memref.load %arg2[%c1_74, %c0_75] : memref<2x8xi32, #tpu.memory_space<smem>>
    %82 = arith.index_cast %80 : i32 to index
    %c0_76 = arith.constant 0 : index
    %83 = vector.load %arg4[%82, %c0_76] : memref<50x32xf32, #tpu.memory_space<vmem>>, vector<1x32xf32>
    %c0_77 = arith.constant 0 : index
    %c0_78 = arith.constant 0 : index
    %84 = vector.load %arg5[%c0_77, %c0_78] : memref<16x32xf32, #tpu.memory_space<vmem>>, vector<1x32xf32>
    %85 = arith.addf %83, %84 : vector<1x32xf32>
    %86 = arith.index_cast %81 : i32 to index
    %c0_79 = arith.constant 0 : index
    %87 = vector.load %arg6[%86, %c0_79] : memref<2x32xf32, #tpu.memory_space<vmem>>, vector<1x32xf32>
    %88 = arith.addf %85, %87 : vector<1x32xf32>
    %c8 = arith.constant 8 : index
    %c0_80 = arith.constant 0 : index
    %89 = vector.load %arg30[%c8, %c0_80] : memref<16x32xf32, #tpu.memory_space<vmem>>, vector<1x32xf32>
    tpu.vector_store %arg30[%c8, %c0_80], %88 {strides = array<i32>} : memref<16x32xf32, #tpu.memory_space<vmem>>, vector<1x32xf32>,
    %c1_81 = arith.constant 1 : index
    %c1_82 = arith.constant 1 : index
    %90 = memref.load %arg1[%c1_81, %c1_82] : memref<2x8xi32, #tpu.memory_space<smem>>
    %c1_83 = arith.constant 1 : index
    %c1_84 = arith.constant 1 : index
    %91 = memref.load %arg2[%c1_83, %c1_84] : memref<2x8xi32, #tpu.memory_space<smem>>
    %92 = arith.index_cast %90 : i32 to index
    %c0_85 = arith.constant 0 : index
    %93 = vector.load %arg4[%92, %c0_85] : memref<50x32xf32, #tpu.memory_space<vmem>>, vector<1x32xf32>
    %c1_86 = arith.constant 1 : index
    %c0_87 = arith.constant 0 : index
    %94 = vector.load %arg5[%c1_86, %c0_87] : memref<16x32xf32, #tpu.memory_space<vmem>>, vector<1x32xf32>
    %95 = arith.addf %93, %94 : vector<1x32xf32>
    %96 = arith.index_cast %91 : i32 to index
    %c0_88 = arith.constant 0 : index
    %97 = vector.load %arg6[%96, %c0_88] : memref<2x32xf32, #tpu.memory_space<vmem>>, vector<1x32xf32>
    %98 = arith.addf %95, %97 : vector<1x32xf32>
    %c9 = arith.constant 9 : index
    %c0_89 = arith.constant 0 : index
    %99 = vector.load %arg30[%c9, %c0_89] : memref<16x32xf32, #tpu.memory_space<vmem>>, vector<1x32xf32>
    tpu.vector_store %arg30[%c9, %c0_89], %98 {strides = array<i32>} : memref<16x32xf32, #tpu.memory_space<vmem>>, vector<1x32xf32>,
    %c1_90 = arith.constant 1 : index
    %c2_91 = arith.constant 2 : index
    %100 = memref.load %arg1[%c1_90, %c2_91] : memref<2x8xi32, #tpu.memory_space<smem>>
    %c1_92 = arith.constant 1 : index
    %c2_93 = arith.constant 2 : index
    %101 = memref.load %arg2[%c1_92, %c2_93] : memref<2x8xi32, #tpu.memory_space<smem>>
    %102 = arith.index_cast %100 : i32 to index
    %c0_94 = arith.constant 0 : index
    %103 = vector.load %arg4[%102, %c0_94] : memref<50x32xf32, #tpu.memory_space<vmem>>, vector<1x32xf32>
    %c2_95 = arith.constant 2 : index
    %c0_96 = arith.constant 0 : index
    %104 = vector.load %arg5[%c2_95, %c0_96] : memref<16x32xf32, #tpu.memory_space<vmem>>, vector<1x32xf32>
    %105 = arith.addf %103, %104 : vector<1x32xf32>
    %106 = arith.index_cast %101 : i32 to index
    %c0_97 = arith.constant 0 : index
    %107 = vector.load %arg6[%106, %c0_97] : memref<2x32xf32, #tpu.memory_space<vmem>>, vector<1x32xf32>
    %108 = arith.addf %105, %107 : vector<1x32xf32>
    %c10 = arith.constant 10 : index
    %c0_98 = arith.constant 0 : index
    %109 = vector.load %arg30[%c10, %c0_98] : memref<16x32xf32, #tpu.memory_space<vmem>>, vector<1x32xf32>
    tpu.vector_store %arg30[%c10, %c0_98], %108 {strides = array<i32>} : memref<16x32xf32, #tpu.memory_space<vmem>>, vector<1x32xf32>,
    %c1_99 = arith.constant 1 : index
    %c3_100 = arith.constant 3 : index
    %110 = memref.load %arg1[%c1_99, %c3_100] : memref<2x8xi32, #tpu.memory_space<smem>>
    %c1_101 = arith.constant 1 : index
    %c3_102 = arith.constant 3 : index
    %111 = memref.load %arg2[%c1_101, %c3_102] : memref<2x8xi32, #tpu.memory_space<smem>>
    %112 = arith.index_cast %110 : i32 to index
    %c0_103 = arith.constant 0 : index
    %113 = vector.load %arg4[%112, %c0_103] : memref<50x32xf32, #tpu.memory_space<vmem>>, vector<1x32xf32>
    %c3_104 = arith.constant 3 : index
    %c0_105 = arith.constant 0 : index
    %114 = vector.load %arg5[%c3_104, %c0_105] : memref<16x32xf32, #tpu.memory_space<vmem>>, vector<1x32xf32>
    %115 = arith.addf %113, %114 : vector<1x32xf32>
    %116 = arith.index_cast %111 : i32 to index
    %c0_106 = arith.constant 0 : index
    %117 = vector.load %arg6[%116, %c0_106] : memref<2x32xf32, #tpu.memory_space<vmem>>, vector<1x32xf32>
    %118 = arith.addf %115, %117 : vector<1x32xf32>
    %c11 = arith.constant 11 : index
    %c0_107 = arith.constant 0 : index
    %119 = vector.load %arg30[%c11, %c0_107] : memref<16x32xf32, #tpu.memory_space<vmem>>, vector<1x32xf32>
    tpu.vector_store %arg30[%c11, %c0_107], %118 {strides = array<i32>} : memref<16x32xf32, #tpu.memory_space<vmem>>, vector<1x32xf32>,
    %c1_108 = arith.constant 1 : index
    %c4_109 = arith.constant 4 : index
    %120 = memref.load %arg1[%c1_108, %c4_109] : memref<2x8xi32, #tpu.memory_space<smem>>
    %c1_110 = arith.constant 1 : index
    %c4_111 = arith.constant 4 : index
    %121 = memref.load %arg2[%c1_110, %c4_111] : memref<2x8xi32, #tpu.memory_space<smem>>
    %122 = arith.index_cast %120 : i32 to index
    %c0_112 = arith.constant 0 : index
    %123 = vector.load %arg4[%122, %c0_112] : memref<50x32xf32, #tpu.memory_space<vmem>>, vector<1x32xf32>
    %c4_113 = arith.constant 4 : index
    %c0_114 = arith.constant 0 : index
    %124 = vector.load %arg5[%c4_113, %c0_114] : memref<16x32xf32, #tpu.memory_space<vmem>>, vector<1x32xf32>
    %125 = arith.addf %123, %124 : vector<1x32xf32>
    %126 = arith.index_cast %121 : i32 to index
    %c0_115 = arith.constant 0 : index
    %127 = vector.load %arg6[%126, %c0_115] : memref<2x32xf32, #tpu.memory_space<vmem>>, vector<1x32xf32>
    %128 = arith.addf %125, %127 : vector<1x32xf32>
    %c12 = arith.constant 12 : index
    %c0_116 = arith.constant 0 : index
    %129 = vector.load %arg30[%c12, %c0_116] : memref<16x32xf32, #tpu.memory_space<vmem>>, vector<1x32xf32>
    tpu.vector_store %arg30[%c12, %c0_116], %128 {strides = array<i32>} : memref<16x32xf32, #tpu.memory_space<vmem>>, vector<1x32xf32>,
    %c1_117 = arith.constant 1 : index
    %c5_118 = arith.constant 5 : index
    %130 = memref.load %arg1[%c1_117, %c5_118] : memref<2x8xi32, #tpu.memory_space<smem>>
    %c1_119 = arith.constant 1 : index
    %c5_120 = arith.constant 5 : index
    %131 = memref.load %arg2[%c1_119, %c5_120] : memref<2x8xi32, #tpu.memory_space<smem>>
    %132 = arith.index_cast %130 : i32 to index
    %c0_121 = arith.constant 0 : index
    %133 = vector.load %arg4[%132, %c0_121] : memref<50x32xf32, #tpu.memory_space<vmem>>, vector<1x32xf32>
    %c5_122 = arith.constant 5 : index
    %c0_123 = arith.constant 0 : index
    %134 = vector.load %arg5[%c5_122, %c0_123] : memref<16x32xf32, #tpu.memory_space<vmem>>, vector<1x32xf32>
    %135 = arith.addf %133, %134 : vector<1x32xf32>
    %136 = arith.index_cast %131 : i32 to index
    %c0_124 = arith.constant 0 : index
    %137 = vector.load %arg6[%136, %c0_124] : memref<2x32xf32, #tpu.memory_space<vmem>>, vector<1x32xf32>
    %138 = arith.addf %135, %137 : vector<1x32xf32>
    %c13 = arith.constant 13 : index
    %c0_125 = arith.constant 0 : index
    %139 = vector.load %arg30[%c13, %c0_125] : memref<16x32xf32, #tpu.memory_space<vmem>>, vector<1x32xf32>
    tpu.vector_store %arg30[%c13, %c0_125], %138 {strides = array<i32>} : memref<16x32xf32, #tpu.memory_space<vmem>>, vector<1x32xf32>,
    %c1_126 = arith.constant 1 : index
    %c6_127 = arith.constant 6 : index
    %140 = memref.load %arg1[%c1_126, %c6_127] : memref<2x8xi32, #tpu.memory_space<smem>>
    %c1_128 = arith.constant 1 : index
    %c6_129 = arith.constant 6 : index
    %141 = memref.load %arg2[%c1_128, %c6_129] : memref<2x8xi32, #tpu.memory_space<smem>>
    %142 = arith.index_cast %140 : i32 to index
    %c0_130 = arith.constant 0 : index
    %143 = vector.load %arg4[%142, %c0_130] : memref<50x32xf32, #tpu.memory_space<vmem>>, vector<1x32xf32>
    %c6_131 = arith.constant 6 : index
    %c0_132 = arith.constant 0 : index
    %144 = vector.load %arg5[%c6_131, %c0_132] : memref<16x32xf32, #tpu.memory_space<vmem>>, vector<1x32xf32>
    %145 = arith.addf %143, %144 : vector<1x32xf32>
    %146 = arith.index_cast %141 : i32 to index
    %c0_133 = arith.constant 0 : index
    %147 = vector.load %arg6[%146, %c0_133] : memref<2x32xf32, #tpu.memory_space<vmem>>, vector<1x32xf32>
    %148 = arith.addf %145, %147 : vector<1x32xf32>
    %c14 = arith.constant 14 : index
    %c0_134 = arith.constant 0 : index
    %149 = vector.load %arg30[%c14, %c0_134] : memref<16x32xf32, #tpu.memory_space<vmem>>, vector<1x32xf32>
    tpu.vector_store %arg30[%c14, %c0_134], %148 {strides = array<i32>} : memref<16x32xf32, #tpu.memory_space<vmem>>, vector<1x32xf32>,
    %c1_135 = arith.constant 1 : index
    %c7_136 = arith.constant 7 : index
    %150 = memref.load %arg1[%c1_135, %c7_136] : memref<2x8xi32, #tpu.memory_space<smem>>
    %c1_137 = arith.constant 1 : index
    %c7_138 = arith.constant 7 : index
    %151 = memref.load %arg2[%c1_137, %c7_138] : memref<2x8xi32, #tpu.memory_space<smem>>
    %152 = arith.index_cast %150 : i32 to index
    %c0_139 = arith.constant 0 : index
    %153 = vector.load %arg4[%152, %c0_139] : memref<50x32xf32, #tpu.memory_space<vmem>>, vector<1x32xf32>
    %c7_140 = arith.constant 7 : index
    %c0_141 = arith.constant 0 : index
    %154 = vector.load %arg5[%c7_140, %c0_141] : memref<16x32xf32, #tpu.memory_space<vmem>>, vector<1x32xf32>
    %155 = arith.addf %153, %154 : vector<1x32xf32>
    %156 = arith.index_cast %151 : i32 to index
    %c0_142 = arith.constant 0 : index
    %157 = vector.load %arg6[%156, %c0_142] : memref<2x32xf32, #tpu.memory_space<vmem>>, vector<1x32xf32>
    %158 = arith.addf %155, %157 : vector<1x32xf32>
    %c15 = arith.constant 15 : index
    %c0_143 = arith.constant 0 : index
    %159 = vector.load %arg30[%c15, %c0_143] : memref<16x32xf32, #tpu.memory_space<vmem>>, vector<1x32xf32>
    tpu.vector_store %arg30[%c15, %c0_143], %158 {strides = array<i32>} : memref<16x32xf32, #tpu.memory_space<vmem>>, vector<1x32xf32>,
    %c0_144 = arith.constant 0 : index
    %c0_145 = arith.constant 0 : index
    %160 = vector.load %arg30[%c0_144, %c0_145] : memref<16x32xf32, #tpu.memory_space<vmem>>, vector<16x32xf32>
    %c0_146 = arith.constant 0 : index
    %c0_147 = arith.constant 0 : index
    %161 = vector.load %arg7[%c0_146, %c0_147] : memref<1x32xf32, #tpu.memory_space<vmem>>, vector<1x32xf32>
    %c0_148 = arith.constant 0 : index
    %c0_149 = arith.constant 0 : index
    %162 = vector.load %arg8[%c0_148, %c0_149] : memref<1x32xf32, #tpu.memory_space<vmem>>, vector<1x32xf32>
    %cst = arith.constant dense<0.000000e+00> : vector<16xf32>
    %163 = vector.multi_reduction <add>, %160, %cst [1] : vector<16x32xf32> to vector<16xf32>
    %164 = vector.shape_cast %163 : vector<16xf32> to vector<16x1xf32>
    %cst_150 = arith.constant 3.200000e+01 : f32
    %165 = vector.broadcast %cst_150 : f32 to vector<16x1xf32>
    %166 = arith.divf %164, %165 : vector<16x1xf32>
    %167 = vector.broadcast %166 : vector<16x1xf32> to vector<16x32xf32>
    %168 = arith.subf %160, %167 : vector<16x32xf32>
    %169 = arith.mulf %168, %168 : vector<16x32xf32>
    %cst_151 = arith.constant dense<0.000000e+00> : vector<16xf32>
    %170 = vector.multi_reduction <add>, %169, %cst_151 [1] : vector<16x32xf32> to vector<16xf32>
    %171 = vector.shape_cast %170 : vector<16xf32> to vector<16x1xf32>
    %cst_152 = arith.constant 3.200000e+01 : f32
    %172 = vector.broadcast %cst_152 : f32 to vector<16x1xf32>
    %173 = arith.divf %171, %172 : vector<16x1xf32>
    %cst_153 = arith.constant 9.99999996E-13 : f32
    %174 = vector.broadcast %cst_153 : f32 to vector<16x1xf32>
    %175 = arith.addf %173, %174 : vector<16x1xf32>
    %176 = math.rsqrt %175 : vector<16x1xf32>
    %177 = vector.broadcast %176 : vector<16x1xf32> to vector<16x32xf32>
    %178 = arith.mulf %168, %177 : vector<16x32xf32>
    %179 = vector.broadcast %161 : vector<1x32xf32> to vector<16x32xf32>
    %180 = arith.mulf %178, %179 : vector<16x32xf32>
    %181 = vector.broadcast %162 : vector<1x32xf32> to vector<16x32xf32>
    %182 = arith.addf %180, %181 : vector<16x32xf32>
    %c0_154 = arith.constant 0 : index
    %c0_155 = arith.constant 0 : index
    %183 = vector.load %arg3[%c0_154, %c0_155] : memref<2x8xi32, #tpu.memory_space<vmem>>, vector<2x8xi32>
    %184 = arith.sitofp %183 : vector<2x8xi32> to vector<2x8xf32>
    %cst_156 = arith.constant 1.000000e+00 : f32
    %185 = vector.broadcast %cst_156 : f32 to vector<2x8xf32>
    %186 = arith.subf %185, %184 : vector<2x8xf32>
    %cst_157 = arith.constant -1.000000e+04 : f32
    %187 = vector.broadcast %cst_157 : f32 to vector<2x8xf32>
    %188 = arith.mulf %186, %187 : vector<2x8xf32>
    %189 = vector.shape_cast %188 : vector<2x8xf32> to vector<2x1x8xf32>
    %190 = vector.shape_cast %189 : vector<2x1x8xf32> to vector<2x1x8xf32>
    %191 = vector.broadcast %190 : vector<2x1x8xf32> to vector<2x8x8xf32>
    %cst_158 = arith.constant 0.000000e+00 : f32
    %192 = vector.broadcast %cst_158 : f32 to vector<16x32xf32>
    %c0_159 = arith.constant 0 : index
    %c0_160 = arith.constant 0 : index
    %c0_161 = arith.constant 0 : index
    %c0_162 = arith.constant 0 : index
    %193 = vector.load %arg9[%c0_159, %c0_160, %c0_161, %c0_162] : memref<2x2x32x16xf32, #tpu.memory_space<vmem>>, vector<1x1x32x16xf32>
    %194 = vector.shape_cast %193 : vector<1x1x32x16xf32> to vector<32x16xf32>
    %cst_163 = arith.constant dense<0.000000e+00> : vector<16x16xf32>
    %195 = tpu.matmul %182, %194, %cst_163 {dimension_numbers = #tpu.dot_dimension_numbers<[1], [0], [0], [1], [0, 0, 1, 1], [], []>} : vector<16x32xf32>, vector<32x16xf32>, vector<16x16xf32> -> vector<16x16xf32>
    %c0_164 = arith.constant 0 : index
    %c0_165 = arith.constant 0 : index
    %c0_166 = arith.constant 0 : index
    %c0_167 = arith.constant 0 : index
    %196 = vector.load %arg10[%c0_164, %c0_165, %c0_166, %c0_167] : memref<2x2x1x16xf32, #tpu.memory_space<vmem>>, vector<1x1x1x16xf32>
    %197 = vector.shape_cast %196 : vector<1x1x1x16xf32> to vector<1x16xf32>
    %198 = vector.broadcast %197 : vector<1x16xf32> to vector<16x16xf32>
    %199 = arith.addf %195, %198 : vector<16x16xf32>
    %200 = vector.shape_cast %199 : vector<16x16xf32> to vector<2x8x16xf32>
    %c0_168 = arith.constant 0 : index
    %c0_169 = arith.constant 0 : index
    %c0_170 = arith.constant 0 : index
    %c0_171 = arith.constant 0 : index
    %201 = vector.load %arg11[%c0_168, %c0_169, %c0_170, %c0_171] : memref<2x2x32x16xf32, #tpu.memory_space<vmem>>, vector<1x1x32x16xf32>
    %202 = vector.shape_cast %201 : vector<1x1x32x16xf32> to vector<32x16xf32>
    %cst_172 = arith.constant dense<0.000000e+00> : vector<16x16xf32>
    %203 = tpu.matmul %182, %202, %cst_172 {dimension_numbers = #tpu.dot_dimension_numbers<[1], [0], [0], [1], [0, 0, 1, 1], [], []>} : vector<16x32xf32>, vector<32x16xf32>, vector<16x16xf32> -> vector<16x16xf32>
    %c0_173 = arith.constant 0 : index
    %c0_174 = arith.constant 0 : index
    %c0_175 = arith.constant 0 : index
    %c0_176 = arith.constant 0 : index
    %204 = vector.load %arg12[%c0_173, %c0_174, %c0_175, %c0_176] : memref<2x2x1x16xf32, #tpu.memory_space<vmem>>, vector<1x1x1x16xf32>
    %205 = vector.shape_cast %204 : vector<1x1x1x16xf32> to vector<1x16xf32>
    %206 = vector.broadcast %205 : vector<1x16xf32> to vector<16x16xf32>
    %207 = arith.addf %203, %206 : vector<16x16xf32>
    %208 = vector.shape_cast %207 : vector<16x16xf32> to vector<2x8x16xf32>
    %c0_177 = arith.constant 0 : index
    %c0_178 = arith.constant 0 : index
    %c0_179 = arith.constant 0 : index
    %c0_180 = arith.constant 0 : index
    %209 = vector.load %arg13[%c0_177, %c0_178, %c0_179, %c0_180] : memref<2x2x32x16xf32, #tpu.memory_space<vmem>>, vector<1x1x32x16xf32>
    %210 = vector.shape_cast %209 : vector<1x1x32x16xf32> to vector<32x16xf32>
    %cst_181 = arith.constant dense<0.000000e+00> : vector<16x16xf32>
    %211 = tpu.matmul %182, %210, %cst_181 {dimension_numbers = #tpu.dot_dimension_numbers<[1], [0], [0], [1], [0, 0, 1, 1], [], []>} : vector<16x32xf32>, vector<32x16xf32>, vector<16x16xf32> -> vector<16x16xf32>
    %c0_182 = arith.constant 0 : index
    %c0_183 = arith.constant 0 : index
    %c0_184 = arith.constant 0 : index
    %c0_185 = arith.constant 0 : index
    %212 = vector.load %arg14[%c0_182, %c0_183, %c0_184, %c0_185] : memref<2x2x1x16xf32, #tpu.memory_space<vmem>>, vector<1x1x1x16xf32>
    %213 = vector.shape_cast %212 : vector<1x1x1x16xf32> to vector<1x16xf32>
    %214 = vector.broadcast %213 : vector<1x16xf32> to vector<16x16xf32>
    %215 = arith.addf %211, %214 : vector<16x16xf32>
    %216 = vector.shape_cast %215 : vector<16x16xf32> to vector<2x8x16xf32>
    %cst_186 = arith.constant dense<0.000000e+00> : vector<2x8x8xf32>
    %217 = tpu.matmul %200, %208, %cst_186 {dimension_numbers = #tpu.dot_dimension_numbers<[2], [2], [1], [1], [0, 0, 0, 1, 1, 1], [0], [0]>} : vector<2x8x16xf32>, vector<2x8x16xf32>, vector<2x8x8xf32> -> vector<2x8x8xf32>
    %cst_187 = arith.constant 2.500000e-01 : f32
    %218 = vector.broadcast %cst_187 : f32 to vector<2x8x8xf32>
    %219 = arith.mulf %217, %218 : vector<2x8x8xf32>
    %220 = arith.addf %219, %191 : vector<2x8x8xf32>
    %cst_188 = arith.constant dense<0xFF800000> : vector<2x8xf32>
    %221 = vector.multi_reduction <maximumf>, %220, %cst_188 [2] : vector<2x8x8xf32> to vector<2x8xf32>
    %222 = vector.shape_cast %221 : vector<2x8xf32> to vector<2x8x1xf32>
    %223 = vector.broadcast %222 : vector<2x8x1xf32> to vector<2x8x8xf32>
    %224 = arith.subf %220, %223 : vector<2x8x8xf32>
    %225 = math.exp %224 : vector<2x8x8xf32>
    %cst_189 = arith.constant dense<0.000000e+00> : vector<2x8xf32>
    %226 = vector.multi_reduction <add>, %225, %cst_189 [2] : vector<2x8x8xf32> to vector<2x8xf32>
    %227 = vector.shape_cast %226 : vector<2x8xf32> to vector<2x8x1xf32>
    %228 = tpu.reciprocal %227 {approx = true} : vector<2x8x1xf32> -> vector<2x8x1xf32>
    %229 = vector.broadcast %228 : vector<2x8x1xf32> to vector<2x8x8xf32>
    %230 = arith.mulf %225, %229 : vector<2x8x8xf32>
    %cst_190 = arith.constant dense<0.000000e+00> : vector<2x8x16xf32>
    %231 = tpu.matmul %230, %216, %cst_190 {dimension_numbers = #tpu.dot_dimension_numbers<[2], [1], [1], [2], [0, 0, 0, 1, 1, 2], [0], [0]>} : vector<2x8x8xf32>, vector<2x8x16xf32>, vector<2x8x16xf32> -> vector<2x8x16xf32>
    %232 = vector.shape_cast %231 : vector<2x8x16xf32> to vector<16x16xf32>
    %c0_191 = arith.constant 0 : index
    %c0_192 = arith.constant 0 : index
    %c0_193 = arith.constant 0 : index
    %c0_194 = arith.constant 0 : index
    %233 = vector.load %arg15[%c0_191, %c0_192, %c0_193, %c0_194] : memref<2x2x16x32xf32, #tpu.memory_space<vmem>>, vector<1x1x16x32xf32>
    %234 = vector.shape_cast %233 : vector<1x1x16x32xf32> to vector<16x32xf32>
    %cst_195 = arith.constant dense<0.000000e+00> : vector<16x32xf32>
    %235 = tpu.matmul %232, %234, %cst_195 {dimension_numbers = #tpu.dot_dimension_numbers<[1], [0], [0], [1], [0, 0, 1, 1], [], []>} : vector<16x16xf32>, vector<16x32xf32>, vector<16x32xf32> -> vector<16x32xf32>
    %236 = arith.addf %192, %235 : vector<16x32xf32>
    %c0_196 = arith.constant 0 : index
    %c1_197 = arith.constant 1 : index
    %c0_198 = arith.constant 0 : index
    %c0_199 = arith.constant 0 : index
    %237 = vector.load %arg9[%c0_196, %c1_197, %c0_198, %c0_199] : memref<2x2x32x16xf32, #tpu.memory_space<vmem>>, vector<1x1x32x16xf32>
    %238 = vector.shape_cast %237 : vector<1x1x32x16xf32> to vector<32x16xf32>
    %cst_200 = arith.constant dense<0.000000e+00> : vector<16x16xf32>
    %239 = tpu.matmul %182, %238, %cst_200 {dimension_numbers = #tpu.dot_dimension_numbers<[1], [0], [0], [1], [0, 0, 1, 1], [], []>} : vector<16x32xf32>, vector<32x16xf32>, vector<16x16xf32> -> vector<16x16xf32>
    %c0_201 = arith.constant 0 : index
    %c1_202 = arith.constant 1 : index
    %c0_203 = arith.constant 0 : index
    %c0_204 = arith.constant 0 : index
    %240 = vector.load %arg10[%c0_201, %c1_202, %c0_203, %c0_204] : memref<2x2x1x16xf32, #tpu.memory_space<vmem>>, vector<1x1x1x16xf32>
    %241 = vector.shape_cast %240 : vector<1x1x1x16xf32> to vector<1x16xf32>
    %242 = vector.broadcast %241 : vector<1x16xf32> to vector<16x16xf32>
    %243 = arith.addf %239, %242 : vector<16x16xf32>
    %244 = vector.shape_cast %243 : vector<16x16xf32> to vector<2x8x16xf32>
    %c0_205 = arith.constant 0 : index
    %c1_206 = arith.constant 1 : index
    %c0_207 = arith.constant 0 : index
    %c0_208 = arith.constant 0 : index
    %245 = vector.load %arg11[%c0_205, %c1_206, %c0_207, %c0_208] : memref<2x2x32x16xf32, #tpu.memory_space<vmem>>, vector<1x1x32x16xf32>
    %246 = vector.shape_cast %245 : vector<1x1x32x16xf32> to vector<32x16xf32>
    %cst_209 = arith.constant dense<0.000000e+00> : vector<16x16xf32>
    %247 = tpu.matmul %182, %246, %cst_209 {dimension_numbers = #tpu.dot_dimension_numbers<[1], [0], [0], [1], [0, 0, 1, 1], [], []>} : vector<16x32xf32>, vector<32x16xf32>, vector<16x16xf32> -> vector<16x16xf32>
    %c0_210 = arith.constant 0 : index
    %c1_211 = arith.constant 1 : index
    %c0_212 = arith.constant 0 : index
    %c0_213 = arith.constant 0 : index
    %248 = vector.load %arg12[%c0_210, %c1_211, %c0_212, %c0_213] : memref<2x2x1x16xf32, #tpu.memory_space<vmem>>, vector<1x1x1x16xf32>
    %249 = vector.shape_cast %248 : vector<1x1x1x16xf32> to vector<1x16xf32>
    %250 = vector.broadcast %249 : vector<1x16xf32> to vector<16x16xf32>
    %251 = arith.addf %247, %250 : vector<16x16xf32>
    %252 = vector.shape_cast %251 : vector<16x16xf32> to vector<2x8x16xf32>
    %c0_214 = arith.constant 0 : index
    %c1_215 = arith.constant 1 : index
    %c0_216 = arith.constant 0 : index
    %c0_217 = arith.constant 0 : index
    %253 = vector.load %arg13[%c0_214, %c1_215, %c0_216, %c0_217] : memref<2x2x32x16xf32, #tpu.memory_space<vmem>>, vector<1x1x32x16xf32>
    %254 = vector.shape_cast %253 : vector<1x1x32x16xf32> to vector<32x16xf32>
    %cst_218 = arith.constant dense<0.000000e+00> : vector<16x16xf32>
    %255 = tpu.matmul %182, %254, %cst_218 {dimension_numbers = #tpu.dot_dimension_numbers<[1], [0], [0], [1], [0, 0, 1, 1], [], []>} : vector<16x32xf32>, vector<32x16xf32>, vector<16x16xf32> -> vector<16x16xf32>
    %c0_219 = arith.constant 0 : index
    %c1_220 = arith.constant 1 : index
    %c0_221 = arith.constant 0 : index
    %c0_222 = arith.constant 0 : index
    %256 = vector.load %arg14[%c0_219, %c1_220, %c0_221, %c0_222] : memref<2x2x1x16xf32, #tpu.memory_space<vmem>>, vector<1x1x1x16xf32>
    %257 = vector.shape_cast %256 : vector<1x1x1x16xf32> to vector<1x16xf32>
    %258 = vector.broadcast %257 : vector<1x16xf32> to vector<16x16xf32>
    %259 = arith.addf %255, %258 : vector<16x16xf32>
    %260 = vector.shape_cast %259 : vector<16x16xf32> to vector<2x8x16xf32>
    %cst_223 = arith.constant dense<0.000000e+00> : vector<2x8x8xf32>
    %261 = tpu.matmul %244, %252, %cst_223 {dimension_numbers = #tpu.dot_dimension_numbers<[2], [2], [1], [1], [0, 0, 0, 1, 1, 1], [0], [0]>} : vector<2x8x16xf32>, vector<2x8x16xf32>, vector<2x8x8xf32> -> vector<2x8x8xf32>
    %cst_224 = arith.constant 2.500000e-01 : f32
    %262 = vector.broadcast %cst_224 : f32 to vector<2x8x8xf32>
    %263 = arith.mulf %261, %262 : vector<2x8x8xf32>
    %264 = arith.addf %263, %191 : vector<2x8x8xf32>
    %cst_225 = arith.constant dense<0xFF800000> : vector<2x8xf32>
    %265 = vector.multi_reduction <maximumf>, %264, %cst_225 [2] : vector<2x8x8xf32> to vector<2x8xf32>
    %266 = vector.shape_cast %265 : vector<2x8xf32> to vector<2x8x1xf32>
    %267 = vector.broadcast %266 : vector<2x8x1xf32> to vector<2x8x8xf32>
    %268 = arith.subf %264, %267 : vector<2x8x8xf32>
    %269 = math.exp %268 : vector<2x8x8xf32>
    %cst_226 = arith.constant dense<0.000000e+00> : vector<2x8xf32>
    %270 = vector.multi_reduction <add>, %269, %cst_226 [2] : vector<2x8x8xf32> to vector<2x8xf32>
    %271 = vector.shape_cast %270 : vector<2x8xf32> to vector<2x8x1xf32>
    %272 = tpu.reciprocal %271 {approx = true} : vector<2x8x1xf32> -> vector<2x8x1xf32>
    %273 = vector.broadcast %272 : vector<2x8x1xf32> to vector<2x8x8xf32>
    %274 = arith.mulf %269, %273 : vector<2x8x8xf32>
    %cst_227 = arith.constant dense<0.000000e+00> : vector<2x8x16xf32>
    %275 = tpu.matmul %274, %260, %cst_227 {dimension_numbers = #tpu.dot_dimension_numbers<[2], [1], [1], [2], [0, 0, 0, 1, 1, 2], [0], [0]>} : vector<2x8x8xf32>, vector<2x8x16xf32>, vector<2x8x16xf32> -> vector<2x8x16xf32>
    %276 = vector.shape_cast %275 : vector<2x8x16xf32> to vector<16x16xf32>
    %c0_228 = arith.constant 0 : index
    %c1_229 = arith.constant 1 : index
    %c0_230 = arith.constant 0 : index
    %c0_231 = arith.constant 0 : index
    %277 = vector.load %arg15[%c0_228, %c1_229, %c0_230, %c0_231] : memref<2x2x16x32xf32, #tpu.memory_space<vmem>>, vector<1x1x16x32xf32>
    %278 = vector.shape_cast %277 : vector<1x1x16x32xf32> to vector<16x32xf32>
    %cst_232 = arith.constant dense<0.000000e+00> : vector<16x32xf32>
    %279 = tpu.matmul %276, %278, %cst_232 {dimension_numbers = #tpu.dot_dimension_numbers<[1], [0], [0], [1], [0, 0, 1, 1], [], []>} : vector<16x16xf32>, vector<16x32xf32>, vector<16x32xf32> -> vector<16x32xf32>
    %280 = arith.addf %236, %279 : vector<16x32xf32>
    %c0_233 = arith.constant 0 : index
    %c0_234 = arith.constant 0 : index
    %c0_235 = arith.constant 0 : index
    %281 = vector.load %arg16[%c0_233, %c0_234, %c0_235] : memref<2x1x32xf32, #tpu.memory_space<vmem>>, vector<1x1x32xf32>
    %282 = vector.shape_cast %281 : vector<1x1x32xf32> to vector<1x32xf32>
    %283 = vector.broadcast %282 : vector<1x32xf32> to vector<16x32xf32>
    %284 = arith.addf %280, %283 : vector<16x32xf32>
    %285 = arith.addf %284, %182 : vector<16x32xf32>
    %c0_236 = arith.constant 0 : index
    %c0_237 = arith.constant 0 : index
    %c0_238 = arith.constant 0 : index
    %286 = vector.load %arg17[%c0_236, %c0_237, %c0_238] : memref<2x1x32xf32, #tpu.memory_space<vmem>>, vector<1x1x32xf32>
    %287 = vector.shape_cast %286 : vector<1x1x32xf32> to vector<1x32xf32>
    %c0_239 = arith.constant 0 : index
    %c0_240 = arith.constant 0 : index
    %c0_241 = arith.constant 0 : index
    %288 = vector.load %arg18[%c0_239, %c0_240, %c0_241] : memref<2x1x32xf32, #tpu.memory_space<vmem>>, vector<1x1x32xf32>
    %289 = vector.shape_cast %288 : vector<1x1x32xf32> to vector<1x32xf32>
    %cst_242 = arith.constant dense<0.000000e+00> : vector<16xf32>
    %290 = vector.multi_reduction <add>, %285, %cst_242 [1] : vector<16x32xf32> to vector<16xf32>
    %291 = vector.shape_cast %290 : vector<16xf32> to vector<16x1xf32>
    %cst_243 = arith.constant 3.200000e+01 : f32
    %292 = vector.broadcast %cst_243 : f32 to vector<16x1xf32>
    %293 = arith.divf %291, %292 : vector<16x1xf32>
    %294 = vector.broadcast %293 : vector<16x1xf32> to vector<16x32xf32>
    %295 = arith.subf %285, %294 : vector<16x32xf32>
    %296 = arith.mulf %295, %295 : vector<16x32xf32>
    %cst_244 = arith.constant dense<0.000000e+00> : vector<16xf32>
    %297 = vector.multi_reduction <add>, %296, %cst_244 [1] : vector<16x32xf32> to vector<16xf32>
    %298 = vector.shape_cast %297 : vector<16xf32> to vector<16x1xf32>
    %cst_245 = arith.constant 3.200000e+01 : f32
    %299 = vector.broadcast %cst_245 : f32 to vector<16x1xf32>
    %300 = arith.divf %298, %299 : vector<16x1xf32>
    %cst_246 = arith.constant 9.99999996E-13 : f32
    %301 = vector.broadcast %cst_246 : f32 to vector<16x1xf32>
    %302 = arith.addf %300, %301 : vector<16x1xf32>
    %303 = math.rsqrt %302 : vector<16x1xf32>
    %304 = vector.broadcast %303 : vector<16x1xf32> to vector<16x32xf32>
    %305 = arith.mulf %295, %304 : vector<16x32xf32>
    %306 = vector.broadcast %287 : vector<1x32xf32> to vector<16x32xf32>
    %307 = arith.mulf %305, %306 : vector<16x32xf32>
    %308 = vector.broadcast %289 : vector<1x32xf32> to vector<16x32xf32>
    %309 = arith.addf %307, %308 : vector<16x32xf32>
    %c0_247 = arith.constant 0 : index
    %c0_248 = arith.constant 0 : index
    %c0_249 = arith.constant 0 : index
    %310 = vector.load %arg19[%c0_247, %c0_248, %c0_249] : memref<2x32x64xf32, #tpu.memory_space<vmem>>, vector<1x32x64xf32>
    %311 = vector.shape_cast %310 : vector<1x32x64xf32> to vector<32x64xf32>
    %cst_250 = arith.constant dense<0.000000e+00> : vector<16x64xf32>
    %312 = tpu.matmul %309, %311, %cst_250 {dimension_numbers = #tpu.dot_dimension_numbers<[1], [0], [0], [1], [0, 0, 1, 1], [], []>} : vector<16x32xf32>, vector<32x64xf32>, vector<16x64xf32> -> vector<16x64xf32>
    %c0_251 = arith.constant 0 : index
    %c0_252 = arith.constant 0 : index
    %c0_253 = arith.constant 0 : index
    %313 = vector.load %arg20[%c0_251, %c0_252, %c0_253] : memref<2x1x64xf32, #tpu.memory_space<vmem>>, vector<1x1x64xf32>
    %314 = vector.shape_cast %313 : vector<1x1x64xf32> to vector<1x64xf32>
    %315 = vector.broadcast %314 : vector<1x64xf32> to vector<16x64xf32>
    %316 = arith.addf %312, %315 : vector<16x64xf32>
    %cst_254 = arith.constant 5.000000e-01 : f32
    %317 = vector.broadcast %cst_254 : f32 to vector<16x64xf32>
    %318 = arith.mulf %317, %316 : vector<16x64xf32>
    %cst_255 = arith.constant 1.41421354 : f32
    %319 = vector.broadcast %cst_255 : f32 to vector<16x64xf32>
    %320 = arith.divf %316, %319 : vector<16x64xf32>
    %321 = math.erf %320 : vector<16x64xf32>
    %cst_256 = arith.constant 1.000000e+00 : f32
    %322 = vector.broadcast %cst_256 : f32 to vector<16x64xf32>
    %323 = arith.addf %322, %321 : vector<16x64xf32>
    %324 = arith.mulf %318, %323 : vector<16x64xf32>
    %c0_257 = arith.constant 0 : index
    %c0_258 = arith.constant 0 : index
    %c0_259 = arith.constant 0 : index
    %325 = vector.load %arg21[%c0_257, %c0_258, %c0_259] : memref<2x64x32xf32, #tpu.memory_space<vmem>>, vector<1x64x32xf32>
    %326 = vector.shape_cast %325 : vector<1x64x32xf32> to vector<64x32xf32>
    %cst_260 = arith.constant dense<0.000000e+00> : vector<16x32xf32>
    %327 = tpu.matmul %324, %326, %cst_260 {dimension_numbers = #tpu.dot_dimension_numbers<[1], [0], [0], [1], [0, 0, 1, 1], [], []>} : vector<16x64xf32>, vector<64x32xf32>, vector<16x32xf32> -> vector<16x32xf32>
    %c0_261 = arith.constant 0 : index
    %c0_262 = arith.constant 0 : index
    %c0_263 = arith.constant 0 : index
    %328 = vector.load %arg22[%c0_261, %c0_262, %c0_263] : memref<2x1x32xf32, #tpu.memory_space<vmem>>, vector<1x1x32xf32>
    %329 = vector.shape_cast %328 : vector<1x1x32xf32> to vector<1x32xf32>
    %330 = vector.broadcast %329 : vector<1x32xf32> to vector<16x32xf32>
    %331 = arith.addf %327, %330 : vector<16x32xf32>
    %332 = arith.addf %331, %309 : vector<16x32xf32>
    %c0_264 = arith.constant 0 : index
    %c0_265 = arith.constant 0 : index
    %c0_266 = arith.constant 0 : index
    %333 = vector.load %arg23[%c0_264, %c0_265, %c0_266] : memref<2x1x32xf32, #tpu.memory_space<vmem>>, vector<1x1x32xf32>
    %334 = vector.shape_cast %333 : vector<1x1x32xf32> to vector<1x32xf32>
    %c0_267 = arith.constant 0 : index
    %c0_268 = arith.constant 0 : index
    %c0_269 = arith.constant 0 : index
    %335 = vector.load %arg24[%c0_267, %c0_268, %c0_269] : memref<2x1x32xf32, #tpu.memory_space<vmem>>, vector<1x1x32xf32>
    %336 = vector.shape_cast %335 : vector<1x1x32xf32> to vector<1x32xf32>
    %cst_270 = arith.constant dense<0.000000e+00> : vector<16xf32>
    %337 = vector.multi_reduction <add>, %332, %cst_270 [1] : vector<16x32xf32> to vector<16xf32>
    %338 = vector.shape_cast %337 : vector<16xf32> to vector<16x1xf32>
    %cst_271 = arith.constant 3.200000e+01 : f32
    %339 = vector.broadcast %cst_271 : f32 to vector<16x1xf32>
    %340 = arith.divf %338, %339 : vector<16x1xf32>
    %341 = vector.broadcast %340 : vector<16x1xf32> to vector<16x32xf32>
    %342 = arith.subf %332, %341 : vector<16x32xf32>
    %343 = arith.mulf %342, %342 : vector<16x32xf32>
    %cst_272 = arith.constant dense<0.000000e+00> : vector<16xf32>
    %344 = vector.multi_reduction <add>, %343, %cst_272 [1] : vector<16x32xf32> to vector<16xf32>
    %345 = vector.shape_cast %344 : vector<16xf32> to vector<16x1xf32>
    %cst_273 = arith.constant 3.200000e+01 : f32
    %346 = vector.broadcast %cst_273 : f32 to vector<16x1xf32>
    %347 = arith.divf %345, %346 : vector<16x1xf32>
    %cst_274 = arith.constant 9.99999996E-13 : f32
    %348 = vector.broadcast %cst_274 : f32 to vector<16x1xf32>
    %349 = arith.addf %347, %348 : vector<16x1xf32>
    %350 = math.rsqrt %349 : vector<16x1xf32>
    %351 = vector.broadcast %350 : vector<16x1xf32> to vector<16x32xf32>
    %352 = arith.mulf %342, %351 : vector<16x32xf32>
    %353 = vector.broadcast %334 : vector<1x32xf32> to vector<16x32xf32>
    %354 = arith.mulf %352, %353 : vector<16x32xf32>
    %355 = vector.broadcast %336 : vector<1x32xf32> to vector<16x32xf32>
    %356 = arith.addf %354, %355 : vector<16x32xf32>
    %cst_275 = arith.constant 0.000000e+00 : f32
    %357 = vector.broadcast %cst_275 : f32 to vector<16x32xf32>
    %c1_276 = arith.constant 1 : index
    %c0_277 = arith.constant 0 : index
    %c0_278 = arith.constant 0 : index
    %c0_279 = arith.constant 0 : index
    %358 = vector.load %arg9[%c1_276, %c0_277, %c0_278, %c0_279] : memref<2x2x32x16xf32, #tpu.memory_space<vmem>>, vector<1x1x32x16xf32>
    %359 = vector.shape_cast %358 : vector<1x1x32x16xf32> to vector<32x16xf32>
    %cst_280 = arith.constant dense<0.000000e+00> : vector<16x16xf32>
    %360 = tpu.matmul %356, %359, %cst_280 {dimension_numbers = #tpu.dot_dimension_numbers<[1], [0], [0], [1], [0, 0, 1, 1], [], []>} : vector<16x32xf32>, vector<32x16xf32>, vector<16x16xf32> -> vector<16x16xf32>
    %c1_281 = arith.constant 1 : index
    %c0_282 = arith.constant 0 : index
    %c0_283 = arith.constant 0 : index
    %c0_284 = arith.constant 0 : index
    %361 = vector.load %arg10[%c1_281, %c0_282, %c0_283, %c0_284] : memref<2x2x1x16xf32, #tpu.memory_space<vmem>>, vector<1x1x1x16xf32>
    %362 = vector.shape_cast %361 : vector<1x1x1x16xf32> to vector<1x16xf32>
    %363 = vector.broadcast %362 : vector<1x16xf32> to vector<16x16xf32>
    %364 = arith.addf %360, %363 : vector<16x16xf32>
    %365 = vector.shape_cast %364 : vector<16x16xf32> to vector<2x8x16xf32>
    %c1_285 = arith.constant 1 : index
    %c0_286 = arith.constant 0 : index
    %c0_287 = arith.constant 0 : index
    %c0_288 = arith.constant 0 : index
    %366 = vector.load %arg11[%c1_285, %c0_286, %c0_287, %c0_288] : memref<2x2x32x16xf32, #tpu.memory_space<vmem>>, vector<1x1x32x16xf32>
    %367 = vector.shape_cast %366 : vector<1x1x32x16xf32> to vector<32x16xf32>
    %cst_289 = arith.constant dense<0.000000e+00> : vector<16x16xf32>
    %368 = tpu.matmul %356, %367, %cst_289 {dimension_numbers = #tpu.dot_dimension_numbers<[1], [0], [0], [1], [0, 0, 1, 1], [], []>} : vector<16x32xf32>, vector<32x16xf32>, vector<16x16xf32> -> vector<16x16xf32>
    %c1_290 = arith.constant 1 : index
    %c0_291 = arith.constant 0 : index
    %c0_292 = arith.constant 0 : index
    %c0_293 = arith.constant 0 : index
    %369 = vector.load %arg12[%c1_290, %c0_291, %c0_292, %c0_293] : memref<2x2x1x16xf32, #tpu.memory_space<vmem>>, vector<1x1x1x16xf32>
    %370 = vector.shape_cast %369 : vector<1x1x1x16xf32> to vector<1x16xf32>
    %371 = vector.broadcast %370 : vector<1x16xf32> to vector<16x16xf32>
    %372 = arith.addf %368, %371 : vector<16x16xf32>
    %373 = vector.shape_cast %372 : vector<16x16xf32> to vector<2x8x16xf32>
    %c1_294 = arith.constant 1 : index
    %c0_295 = arith.constant 0 : index
    %c0_296 = arith.constant 0 : index
    %c0_297 = arith.constant 0 : index
    %374 = vector.load %arg13[%c1_294, %c0_295, %c0_296, %c0_297] : memref<2x2x32x16xf32, #tpu.memory_space<vmem>>, vector<1x1x32x16xf32>
    %375 = vector.shape_cast %374 : vector<1x1x32x16xf32> to vector<32x16xf32>
    %cst_298 = arith.constant dense<0.000000e+00> : vector<16x16xf32>
    %376 = tpu.matmul %356, %375, %cst_298 {dimension_numbers = #tpu.dot_dimension_numbers<[1], [0], [0], [1], [0, 0, 1, 1], [], []>} : vector<16x32xf32>, vector<32x16xf32>, vector<16x16xf32> -> vector<16x16xf32>
    %c1_299 = arith.constant 1 : index
    %c0_300 = arith.constant 0 : index
    %c0_301 = arith.constant 0 : index
    %c0_302 = arith.constant 0 : index
    %377 = vector.load %arg14[%c1_299, %c0_300, %c0_301, %c0_302] : memref<2x2x1x16xf32, #tpu.memory_space<vmem>>, vector<1x1x1x16xf32>
    %378 = vector.shape_cast %377 : vector<1x1x1x16xf32> to vector<1x16xf32>
    %379 = vector.broadcast %378 : vector<1x16xf32> to vector<16x16xf32>
    %380 = arith.addf %376, %379 : vector<16x16xf32>
    %381 = vector.shape_cast %380 : vector<16x16xf32> to vector<2x8x16xf32>
    %cst_303 = arith.constant dense<0.000000e+00> : vector<2x8x8xf32>
    %382 = tpu.matmul %365, %373, %cst_303 {dimension_numbers = #tpu.dot_dimension_numbers<[2], [2], [1], [1], [0, 0, 0, 1, 1, 1], [0], [0]>} : vector<2x8x16xf32>, vector<2x8x16xf32>, vector<2x8x8xf32> -> vector<2x8x8xf32>
    %cst_304 = arith.constant 2.500000e-01 : f32
    %383 = vector.broadcast %cst_304 : f32 to vector<2x8x8xf32>
    %384 = arith.mulf %382, %383 : vector<2x8x8xf32>
    %385 = arith.addf %384, %191 : vector<2x8x8xf32>
    %cst_305 = arith.constant dense<0xFF800000> : vector<2x8xf32>
    %386 = vector.multi_reduction <maximumf>, %385, %cst_305 [2] : vector<2x8x8xf32> to vector<2x8xf32>
    %387 = vector.shape_cast %386 : vector<2x8xf32> to vector<2x8x1xf32>
    %388 = vector.broadcast %387 : vector<2x8x1xf32> to vector<2x8x8xf32>
    %389 = arith.subf %385, %388 : vector<2x8x8xf32>
    %390 = math.exp %389 : vector<2x8x8xf32>
    %cst_306 = arith.constant dense<0.000000e+00> : vector<2x8xf32>
    %391 = vector.multi_reduction <add>, %390, %cst_306 [2] : vector<2x8x8xf32> to vector<2x8xf32>
    %392 = vector.shape_cast %391 : vector<2x8xf32> to vector<2x8x1xf32>
    %393 = tpu.reciprocal %392 {approx = true} : vector<2x8x1xf32> -> vector<2x8x1xf32>
    %394 = vector.broadcast %393 : vector<2x8x1xf32> to vector<2x8x8xf32>
    %395 = arith.mulf %390, %394 : vector<2x8x8xf32>
    %cst_307 = arith.constant dense<0.000000e+00> : vector<2x8x16xf32>
    %396 = tpu.matmul %395, %381, %cst_307 {dimension_numbers = #tpu.dot_dimension_numbers<[2], [1], [1], [2], [0, 0, 0, 1, 1, 2], [0], [0]>} : vector<2x8x8xf32>, vector<2x8x16xf32>, vector<2x8x16xf32> -> vector<2x8x16xf32>
    %397 = vector.shape_cast %396 : vector<2x8x16xf32> to vector<16x16xf32>
    %c1_308 = arith.constant 1 : index
    %c0_309 = arith.constant 0 : index
    %c0_310 = arith.constant 0 : index
    %c0_311 = arith.constant 0 : index
    %398 = vector.load %arg15[%c1_308, %c0_309, %c0_310, %c0_311] : memref<2x2x16x32xf32, #tpu.memory_space<vmem>>, vector<1x1x16x32xf32>
    %399 = vector.shape_cast %398 : vector<1x1x16x32xf32> to vector<16x32xf32>
    %cst_312 = arith.constant dense<0.000000e+00> : vector<16x32xf32>
    %400 = tpu.matmul %397, %399, %cst_312 {dimension_numbers = #tpu.dot_dimension_numbers<[1], [0], [0], [1], [0, 0, 1, 1], [], []>} : vector<16x16xf32>, vector<16x32xf32>, vector<16x32xf32> -> vector<16x32xf32>
    %401 = arith.addf %357, %400 : vector<16x32xf32>
    %c1_313 = arith.constant 1 : index
    %c1_314 = arith.constant 1 : index
    %c0_315 = arith.constant 0 : index
    %c0_316 = arith.constant 0 : index
    %402 = vector.load %arg9[%c1_313, %c1_314, %c0_315, %c0_316] : memref<2x2x32x16xf32, #tpu.memory_space<vmem>>, vector<1x1x32x16xf32>
    %403 = vector.shape_cast %402 : vector<1x1x32x16xf32> to vector<32x16xf32>
    %cst_317 = arith.constant dense<0.000000e+00> : vector<16x16xf32>
    %404 = tpu.matmul %356, %403, %cst_317 {dimension_numbers = #tpu.dot_dimension_numbers<[1], [0], [0], [1], [0, 0, 1, 1], [], []>} : vector<16x32xf32>, vector<32x16xf32>, vector<16x16xf32> -> vector<16x16xf32>
    %c1_318 = arith.constant 1 : index
    %c1_319 = arith.constant 1 : index
    %c0_320 = arith.constant 0 : index
    %c0_321 = arith.constant 0 : index
    %405 = vector.load %arg10[%c1_318, %c1_319, %c0_320, %c0_321] : memref<2x2x1x16xf32, #tpu.memory_space<vmem>>, vector<1x1x1x16xf32>
    %406 = vector.shape_cast %405 : vector<1x1x1x16xf32> to vector<1x16xf32>
    %407 = vector.broadcast %406 : vector<1x16xf32> to vector<16x16xf32>
    %408 = arith.addf %404, %407 : vector<16x16xf32>
    %409 = vector.shape_cast %408 : vector<16x16xf32> to vector<2x8x16xf32>
    %c1_322 = arith.constant 1 : index
    %c1_323 = arith.constant 1 : index
    %c0_324 = arith.constant 0 : index
    %c0_325 = arith.constant 0 : index
    %410 = vector.load %arg11[%c1_322, %c1_323, %c0_324, %c0_325] : memref<2x2x32x16xf32, #tpu.memory_space<vmem>>, vector<1x1x32x16xf32>
    %411 = vector.shape_cast %410 : vector<1x1x32x16xf32> to vector<32x16xf32>
    %cst_326 = arith.constant dense<0.000000e+00> : vector<16x16xf32>
    %412 = tpu.matmul %356, %411, %cst_326 {dimension_numbers = #tpu.dot_dimension_numbers<[1], [0], [0], [1], [0, 0, 1, 1], [], []>} : vector<16x32xf32>, vector<32x16xf32>, vector<16x16xf32> -> vector<16x16xf32>
    %c1_327 = arith.constant 1 : index
    %c1_328 = arith.constant 1 : index
    %c0_329 = arith.constant 0 : index
    %c0_330 = arith.constant 0 : index
    %413 = vector.load %arg12[%c1_327, %c1_328, %c0_329, %c0_330] : memref<2x2x1x16xf32, #tpu.memory_space<vmem>>, vector<1x1x1x16xf32>
    %414 = vector.shape_cast %413 : vector<1x1x1x16xf32> to vector<1x16xf32>
    %415 = vector.broadcast %414 : vector<1x16xf32> to vector<16x16xf32>
    %416 = arith.addf %412, %415 : vector<16x16xf32>
    %417 = vector.shape_cast %416 : vector<16x16xf32> to vector<2x8x16xf32>
    %c1_331 = arith.constant 1 : index
    %c1_332 = arith.constant 1 : index
    %c0_333 = arith.constant 0 : index
    %c0_334 = arith.constant 0 : index
    %418 = vector.load %arg13[%c1_331, %c1_332, %c0_333, %c0_334] : memref<2x2x32x16xf32, #tpu.memory_space<vmem>>, vector<1x1x32x16xf32>
    %419 = vector.shape_cast %418 : vector<1x1x32x16xf32> to vector<32x16xf32>
    %cst_335 = arith.constant dense<0.000000e+00> : vector<16x16xf32>
    %420 = tpu.matmul %356, %419, %cst_335 {dimension_numbers = #tpu.dot_dimension_numbers<[1], [0], [0], [1], [0, 0, 1, 1], [], []>} : vector<16x32xf32>, vector<32x16xf32>, vector<16x16xf32> -> vector<16x16xf32>
    %c1_336 = arith.constant 1 : index
    %c1_337 = arith.constant 1 : index
    %c0_338 = arith.constant 0 : index
    %c0_339 = arith.constant 0 : index
    %421 = vector.load %arg14[%c1_336, %c1_337, %c0_338, %c0_339] : memref<2x2x1x16xf32, #tpu.memory_space<vmem>>, vector<1x1x1x16xf32>
    %422 = vector.shape_cast %421 : vector<1x1x1x16xf32> to vector<1x16xf32>
    %423 = vector.broadcast %422 : vector<1x16xf32> to vector<16x16xf32>
    %424 = arith.addf %420, %423 : vector<16x16xf32>
    %425 = vector.shape_cast %424 : vector<16x16xf32> to vector<2x8x16xf32>
    %cst_340 = arith.constant dense<0.000000e+00> : vector<2x8x8xf32>
    %426 = tpu.matmul %409, %417, %cst_340 {dimension_numbers = #tpu.dot_dimension_numbers<[2], [2], [1], [1], [0, 0, 0, 1, 1, 1], [0], [0]>} : vector<2x8x16xf32>, vector<2x8x16xf32>, vector<2x8x8xf32> -> vector<2x8x8xf32>
    %cst_341 = arith.constant 2.500000e-01 : f32
    %427 = vector.broadcast %cst_341 : f32 to vector<2x8x8xf32>
    %428 = arith.mulf %426, %427 : vector<2x8x8xf32>
    %429 = arith.addf %428, %191 : vector<2x8x8xf32>
    %cst_342 = arith.constant dense<0xFF800000> : vector<2x8xf32>
    %430 = vector.multi_reduction <maximumf>, %429, %cst_342 [2] : vector<2x8x8xf32> to vector<2x8xf32>
    %431 = vector.shape_cast %430 : vector<2x8xf32> to vector<2x8x1xf32>
    %432 = vector.broadcast %431 : vector<2x8x1xf32> to vector<2x8x8xf32>
    %433 = arith.subf %429, %432 : vector<2x8x8xf32>
    %434 = math.exp %433 : vector<2x8x8xf32>
    %cst_343 = arith.constant dense<0.000000e+00> : vector<2x8xf32>
    %435 = vector.multi_reduction <add>, %434, %cst_343 [2] : vector<2x8x8xf32> to vector<2x8xf32>
    %436 = vector.shape_cast %435 : vector<2x8xf32> to vector<2x8x1xf32>
    %437 = tpu.reciprocal %436 {approx = true} : vector<2x8x1xf32> -> vector<2x8x1xf32>
    %438 = vector.broadcast %437 : vector<2x8x1xf32> to vector<2x8x8xf32>
    %439 = arith.mulf %434, %438 : vector<2x8x8xf32>
    %cst_344 = arith.constant dense<0.000000e+00> : vector<2x8x16xf32>
    %440 = tpu.matmul %439, %425, %cst_344 {dimension_numbers = #tpu.dot_dimension_numbers<[2], [1], [1], [2], [0, 0, 0, 1, 1, 2], [0], [0]>} : vector<2x8x8xf32>, vector<2x8x16xf32>, vector<2x8x16xf32> -> vector<2x8x16xf32>
    %441 = vector.shape_cast %440 : vector<2x8x16xf32> to vector<16x16xf32>
    %c1_345 = arith.constant 1 : index
    %c1_346 = arith.constant 1 : index
    %c0_347 = arith.constant 0 : index
    %c0_348 = arith.constant 0 : index
    %442 = vector.load %arg15[%c1_345, %c1_346, %c0_347, %c0_348] : memref<2x2x16x32xf32, #tpu.memory_space<vmem>>, vector<1x1x16x32xf32>
    %443 = vector.shape_cast %442 : vector<1x1x16x32xf32> to vector<16x32xf32>
    %cst_349 = arith.constant dense<0.000000e+00> : vector<16x32xf32>
    %444 = tpu.matmul %441, %443, %cst_349 {dimension_numbers = #tpu.dot_dimension_numbers<[1], [0], [0], [1], [0, 0, 1, 1], [], []>} : vector<16x16xf32>, vector<16x32xf32>, vector<16x32xf32> -> vector<16x32xf32>
    %445 = arith.addf %401, %444 : vector<16x32xf32>
    %c1_350 = arith.constant 1 : index
    %c0_351 = arith.constant 0 : index
    %c0_352 = arith.constant 0 : index
    %446 = vector.load %arg16[%c1_350, %c0_351, %c0_352] : memref<2x1x32xf32, #tpu.memory_space<vmem>>, vector<1x1x32xf32>
    %447 = vector.shape_cast %446 : vector<1x1x32xf32> to vector<1x32xf32>
    %448 = vector.broadcast %447 : vector<1x32xf32> to vector<16x32xf32>
    %449 = arith.addf %445, %448 : vector<16x32xf32>
    %450 = arith.addf %449, %356 : vector<16x32xf32>
    %c1_353 = arith.constant 1 : index
    %c0_354 = arith.constant 0 : index
    %c0_355 = arith.constant 0 : index
    %451 = vector.load %arg17[%c1_353, %c0_354, %c0_355] : memref<2x1x32xf32, #tpu.memory_space<vmem>>, vector<1x1x32xf32>
    %452 = vector.shape_cast %451 : vector<1x1x32xf32> to vector<1x32xf32>
    %c1_356 = arith.constant 1 : index
    %c0_357 = arith.constant 0 : index
    %c0_358 = arith.constant 0 : index
    %453 = vector.load %arg18[%c1_356, %c0_357, %c0_358] : memref<2x1x32xf32, #tpu.memory_space<vmem>>, vector<1x1x32xf32>
    %454 = vector.shape_cast %453 : vector<1x1x32xf32> to vector<1x32xf32>
    %cst_359 = arith.constant dense<0.000000e+00> : vector<16xf32>
    %455 = vector.multi_reduction <add>, %450, %cst_359 [1] : vector<16x32xf32> to vector<16xf32>
    %456 = vector.shape_cast %455 : vector<16xf32> to vector<16x1xf32>
    %cst_360 = arith.constant 3.200000e+01 : f32
    %457 = vector.broadcast %cst_360 : f32 to vector<16x1xf32>
    %458 = arith.divf %456, %457 : vector<16x1xf32>
    %459 = vector.broadcast %458 : vector<16x1xf32> to vector<16x32xf32>
    %460 = arith.subf %450, %459 : vector<16x32xf32>
    %461 = arith.mulf %460, %460 : vector<16x32xf32>
    %cst_361 = arith.constant dense<0.000000e+00> : vector<16xf32>
    %462 = vector.multi_reduction <add>, %461, %cst_361 [1] : vector<16x32xf32> to vector<16xf32>
    %463 = vector.shape_cast %462 : vector<16xf32> to vector<16x1xf32>
    %cst_362 = arith.constant 3.200000e+01 : f32
    %464 = vector.broadcast %cst_362 : f32 to vector<16x1xf32>
    %465 = arith.divf %463, %464 : vector<16x1xf32>
    %cst_363 = arith.constant 9.99999996E-13 : f32
    %466 = vector.broadcast %cst_363 : f32 to vector<16x1xf32>
    %467 = arith.addf %465, %466 : vector<16x1xf32>
    %468 = math.rsqrt %467 : vector<16x1xf32>
    %469 = vector.broadcast %468 : vector<16x1xf32> to vector<16x32xf32>
    %470 = arith.mulf %460, %469 : vector<16x32xf32>
    %471 = vector.broadcast %452 : vector<1x32xf32> to vector<16x32xf32>
    %472 = arith.mulf %470, %471 : vector<16x32xf32>
    %473 = vector.broadcast %454 : vector<1x32xf32> to vector<16x32xf32>
    %474 = arith.addf %472, %473 : vector<16x32xf32>
    %c1_364 = arith.constant 1 : index
    %c0_365 = arith.constant 0 : index
    %c0_366 = arith.constant 0 : index
    %475 = vector.load %arg19[%c1_364, %c0_365, %c0_366] : memref<2x32x64xf32, #tpu.memory_space<vmem>>, vector<1x32x64xf32>
    %476 = vector.shape_cast %475 : vector<1x32x64xf32> to vector<32x64xf32>
    %cst_367 = arith.constant dense<0.000000e+00> : vector<16x64xf32>
    %477 = tpu.matmul %474, %476, %cst_367 {dimension_numbers = #tpu.dot_dimension_numbers<[1], [0], [0], [1], [0, 0, 1, 1], [], []>} : vector<16x32xf32>, vector<32x64xf32>, vector<16x64xf32> -> vector<16x64xf32>
    %c1_368 = arith.constant 1 : index
    %c0_369 = arith.constant 0 : index
    %c0_370 = arith.constant 0 : index
    %478 = vector.load %arg20[%c1_368, %c0_369, %c0_370] : memref<2x1x64xf32, #tpu.memory_space<vmem>>, vector<1x1x64xf32>
    %479 = vector.shape_cast %478 : vector<1x1x64xf32> to vector<1x64xf32>
    %480 = vector.broadcast %479 : vector<1x64xf32> to vector<16x64xf32>
    %481 = arith.addf %477, %480 : vector<16x64xf32>
    %cst_371 = arith.constant 5.000000e-01 : f32
    %482 = vector.broadcast %cst_371 : f32 to vector<16x64xf32>
    %483 = arith.mulf %482, %481 : vector<16x64xf32>
    %cst_372 = arith.constant 1.41421354 : f32
    %484 = vector.broadcast %cst_372 : f32 to vector<16x64xf32>
    %485 = arith.divf %481, %484 : vector<16x64xf32>
    %486 = math.erf %485 : vector<16x64xf32>
    %cst_373 = arith.constant 1.000000e+00 : f32
    %487 = vector.broadcast %cst_373 : f32 to vector<16x64xf32>
    %488 = arith.addf %487, %486 : vector<16x64xf32>
    %489 = arith.mulf %483, %488 : vector<16x64xf32>
    %c1_374 = arith.constant 1 : index
    %c0_375 = arith.constant 0 : index
    %c0_376 = arith.constant 0 : index
    %490 = vector.load %arg21[%c1_374, %c0_375, %c0_376] : memref<2x64x32xf32, #tpu.memory_space<vmem>>, vector<1x64x32xf32>
    %491 = vector.shape_cast %490 : vector<1x64x32xf32> to vector<64x32xf32>
    %cst_377 = arith.constant dense<0.000000e+00> : vector<16x32xf32>
    %492 = tpu.matmul %489, %491, %cst_377 {dimension_numbers = #tpu.dot_dimension_numbers<[1], [0], [0], [1], [0, 0, 1, 1], [], []>} : vector<16x64xf32>, vector<64x32xf32>, vector<16x32xf32> -> vector<16x32xf32>
    %c1_378 = arith.constant 1 : index
    %c0_379 = arith.constant 0 : index
    %c0_380 = arith.constant 0 : index
    %493 = vector.load %arg22[%c1_378, %c0_379, %c0_380] : memref<2x1x32xf32, #tpu.memory_space<vmem>>, vector<1x1x32xf32>
    %494 = vector.shape_cast %493 : vector<1x1x32xf32> to vector<1x32xf32>
    %495 = vector.broadcast %494 : vector<1x32xf32> to vector<16x32xf32>
    %496 = arith.addf %492, %495 : vector<16x32xf32>
    %497 = arith.addf %496, %474 : vector<16x32xf32>
    %c1_381 = arith.constant 1 : index
    %c0_382 = arith.constant 0 : index
    %c0_383 = arith.constant 0 : index
    %498 = vector.load %arg23[%c1_381, %c0_382, %c0_383] : memref<2x1x32xf32, #tpu.memory_space<vmem>>, vector<1x1x32xf32>
    %499 = vector.shape_cast %498 : vector<1x1x32xf32> to vector<1x32xf32>
    %c1_384 = arith.constant 1 : index
    %c0_385 = arith.constant 0 : index
    %c0_386 = arith.constant 0 : index
    %500 = vector.load %arg24[%c1_384, %c0_385, %c0_386] : memref<2x1x32xf32, #tpu.memory_space<vmem>>, vector<1x1x32xf32>
    %501 = vector.shape_cast %500 : vector<1x1x32xf32> to vector<1x32xf32>
    %cst_387 = arith.constant dense<0.000000e+00> : vector<16xf32>
    %502 = vector.multi_reduction <add>, %497, %cst_387 [1] : vector<16x32xf32> to vector<16xf32>
    %503 = vector.shape_cast %502 : vector<16xf32> to vector<16x1xf32>
    %cst_388 = arith.constant 3.200000e+01 : f32
    %504 = vector.broadcast %cst_388 : f32 to vector<16x1xf32>
    %505 = arith.divf %503, %504 : vector<16x1xf32>
    %506 = vector.broadcast %505 : vector<16x1xf32> to vector<16x32xf32>
    %507 = arith.subf %497, %506 : vector<16x32xf32>
    %508 = arith.mulf %507, %507 : vector<16x32xf32>
    %cst_389 = arith.constant dense<0.000000e+00> : vector<16xf32>
    %509 = vector.multi_reduction <add>, %508, %cst_389 [1] : vector<16x32xf32> to vector<16xf32>
    %510 = vector.shape_cast %509 : vector<16xf32> to vector<16x1xf32>
    %cst_390 = arith.constant 3.200000e+01 : f32
    %511 = vector.broadcast %cst_390 : f32 to vector<16x1xf32>
    %512 = arith.divf %510, %511 : vector<16x1xf32>
    %cst_391 = arith.constant 9.99999996E-13 : f32
    %513 = vector.broadcast %cst_391 : f32 to vector<16x1xf32>
    %514 = arith.addf %512, %513 : vector<16x1xf32>
    %515 = math.rsqrt %514 : vector<16x1xf32>
    %516 = vector.broadcast %515 : vector<16x1xf32> to vector<16x32xf32>
    %517 = arith.mulf %507, %516 : vector<16x32xf32>
    %518 = vector.broadcast %499 : vector<1x32xf32> to vector<16x32xf32>
    %519 = arith.mulf %517, %518 : vector<16x32xf32>
    %520 = vector.broadcast %501 : vector<1x32xf32> to vector<16x32xf32>
    %521 = arith.addf %519, %520 : vector<16x32xf32>
    %522 = vector.shape_cast %521 : vector<16x32xf32> to vector<2x8x32xf32>
    %523 = vector.extract_strided_slice %522 {offsets = [0, 0, 0], sizes = [2, 1, 32], strides = [1, 1, 1]} : vector<2x8x32xf32> to vector<2x1x32xf32>
    %524 = vector.shape_cast %523 : vector<2x1x32xf32> to vector<2x32xf32>
    %c0_392 = arith.constant 0 : index
    %c0_393 = arith.constant 0 : index
    %525 = vector.load %arg25[%c0_392, %c0_393] : memref<32x32xf32, #tpu.memory_space<vmem>>, vector<32x32xf32>
    %cst_394 = arith.constant dense<0.000000e+00> : vector<2x32xf32>
    %526 = tpu.matmul %524, %525, %cst_394 {dimension_numbers = #tpu.dot_dimension_numbers<[1], [0], [0], [1], [0, 0, 1, 1], [], []>} : vector<2x32xf32>, vector<32x32xf32>, vector<2x32xf32> -> vector<2x32xf32>
    %c0_395 = arith.constant 0 : index
    %c0_396 = arith.constant 0 : index
    %527 = vector.load %arg26[%c0_395, %c0_396] : memref<1x32xf32, #tpu.memory_space<vmem>>, vector<1x32xf32>
    %528 = vector.broadcast %527 : vector<1x32xf32> to vector<2x32xf32>
    %529 = arith.addf %526, %528 : vector<2x32xf32>
    %530 = math.tanh %529 : vector<2x32xf32>
    %c0_397 = arith.constant 0 : index
    %c0_398 = arith.constant 0 : index
    %531 = vector.load %arg27[%c0_397, %c0_398] : memref<32x128xf32, #tpu.memory_space<vmem>>, vector<32x128xf32>
    %cst_399 = arith.constant dense<0.000000e+00> : vector<2x128xf32>
    %532 = tpu.matmul %530, %531, %cst_399 {dimension_numbers = #tpu.dot_dimension_numbers<[1], [0], [0], [1], [0, 0, 1, 1], [], []>} : vector<2x32xf32>, vector<32x128xf32>, vector<2x128xf32> -> vector<2x128xf32>
    %c0_400 = arith.constant 0 : index
    %c0_401 = arith.constant 0 : index
    %533 = vector.load %arg28[%c0_400, %c0_401] : memref<1x128xf32, #tpu.memory_space<vmem>>, vector<1x128xf32>
    %534 = vector.broadcast %533 : vector<1x128xf32> to vector<2x128xf32>
    %535 = arith.addf %532, %534 : vector<2x128xf32>
    %c0_402 = arith.constant 0 : index
    %c0_403 = arith.constant 0 : index
    %536 = vector.load %arg29[%c0_402, %c0_403] : memref<2x128xf32, #tpu.memory_space<vmem>>, vector<2x128xf32>
    tpu.vector_store %arg29[%c0_402, %c0_403], %535 {strides = array<i32>} : memref<2x128xf32, #tpu.memory_space<vmem>>, vector<2x128xf32>,
    return
  }
  func.func @transform_0(%arg0: i32, %arg1: memref<2x8xi32, #tpu.memory_space<smem>>, %arg2: memref<2x8xi32, #tpu.memory_space<smem>>) -> (i32, i32) {
    %c0_i32 = arith.constant 0 : i32
    %c0_i32_0 = arith.constant 0 : i32
    %c0_i32_1 = arith.constant 0 : i32
    return %c0_i32, %c0_i32_0 : i32, i32
  }
  func.func @transform_1(%arg0: i32, %arg1: memref<2x8xi32, #tpu.memory_space<smem>>, %arg2: memref<2x8xi32, #tpu.memory_space<smem>>) -> (i32, i32) {
    %c0_i32 = arith.constant 0 : i32
    %c0_i32_0 = arith.constant 0 : i32
    %c0_i32_1 = arith.constant 0 : i32
    return %c0_i32, %c0_i32_0 : i32, i32
  }
  func.func @transform_2(%arg0: i32, %arg1: memref<2x8xi32, #tpu.memory_space<smem>>, %arg2: memref<2x8xi32, #tpu.memory_space<smem>>) -> (i32, i32) {
    %c0_i32 = arith.constant 0 : i32
    %c0_i32_0 = arith.constant 0 : i32
    %c0_i32_1 = arith.constant 0 : i32
    return %c0_i32, %c0_i32_0 : i32, i32
  }
  func.func @transform_3(%arg0: i32, %arg1: memref<2x8xi32, #tpu.memory_space<smem>>, %arg2: memref<2x8xi32, #tpu.memory_space<smem>>) -> (i32, i32) {
    %c0_i32 = arith.constant 0 : i32
    %c0_i32_0 = arith.constant 0 : i32
    %c0_i32_1 = arith.constant 0 : i32
    return %c0_i32, %c0_i32_0 : i32, i32
  }
  func.func @transform_4(%arg0: i32, %arg1: memref<2x8xi32, #tpu.memory_space<smem>>, %arg2: memref<2x8xi32, #tpu.memory_space<smem>>) -> (i32, i32) {
    %c0_i32 = arith.constant 0 : i32
    %c0_i32_0 = arith.constant 0 : i32
    %c0_i32_1 = arith.constant 0 : i32
    return %c0_i32, %c0_i32_0 : i32, i32
  }
  func.func @transform_5(%arg0: i32, %arg1: memref<2x8xi32, #tpu.memory_space<smem>>, %arg2: memref<2x8xi32, #tpu.memory_space<smem>>) -> (i32, i32) {
    %c0_i32 = arith.constant 0 : i32
    %c0_i32_0 = arith.constant 0 : i32
    %c0_i32_1 = arith.constant 0 : i32
    return %c0_i32, %c0_i32_0 : i32, i32
  }
  func.func @transform_6(%arg0: i32, %arg1: memref<2x8xi32, #tpu.memory_space<smem>>, %arg2: memref<2x8xi32, #tpu.memory_space<smem>>) -> (i32, i32, i32, i32) {
    %c0_i32 = arith.constant 0 : i32
    %c0_i32_0 = arith.constant 0 : i32
    %c0_i32_1 = arith.constant 0 : i32
    %c0_i32_2 = arith.constant 0 : i32
    %c0_i32_3 = arith.constant 0 : i32
    return %c0_i32, %c0_i32_0, %c0_i32_1, %c0_i32_2 : i32, i32, i32, i32
  }
  func.func @transform_7(%arg0: i32, %arg1: memref<2x8xi32, #tpu.memory_space<smem>>, %arg2: memref<2x8xi32, #tpu.memory_space<smem>>) -> (i32, i32, i32, i32) {
    %c0_i32 = arith.constant 0 : i32
    %c0_i32_0 = arith.constant 0 : i32
    %c0_i32_1 = arith.constant 0 : i32
    %c0_i32_2 = arith.constant 0 : i32
    %c0_i32_3 = arith.constant 0 : i32
    return %c0_i32, %c0_i32_0, %c0_i32_1, %c0_i32_2 : i32, i32, i32, i32
  }
  func.func @transform_8(%arg0: i32, %arg1: memref<2x8xi32, #tpu.memory_space<smem>>, %arg2: memref<2x8xi32, #tpu.memory_space<smem>>) -> (i32, i32, i32, i32) {
    %c0_i32 = arith.constant 0 : i32
    %c0_i32_0 = arith.constant 0 : i32
    %c0_i32_1 = arith.constant 0 : i32
    %c0_i32_2 = arith.constant 0 : i32
    %c0_i32_3 = arith.constant 0 : i32
    return %c0_i32, %c0_i32_0, %c0_i32_1, %c0_i32_2 : i32, i32, i32, i32
  }
  func.func @transform_9(%arg0: i32, %arg1: memref<2x8xi32, #tpu.memory_space<smem>>, %arg2: memref<2x8xi32, #tpu.memory_space<smem>>) -> (i32, i32, i32, i32) {
    %c0_i32 = arith.constant 0 : i32
    %c0_i32_0 = arith.constant 0 : i32
    %c0_i32_1 = arith.constant 0 : i32
    %c0_i32_2 = arith.constant 0 : i32
    %c0_i32_3 = arith.constant 0 : i32
    return %c0_i32, %c0_i32_0, %c0_i32_1, %c0_i32_2 : i32, i32, i32, i32
  }
  func.func @transform_10(%arg0: i32, %arg1: memref<2x8xi32, #tpu.memory_space<smem>>, %arg2: memref<2x8xi32, #tpu.memory_space<smem>>) -> (i32, i32, i32, i32) {
    %c0_i32 = arith.constant 0 : i32
    %c0_i32_0 = arith.constant 0 : i32
    %c0_i32_1 = arith.constant 0 : i32
    %c0_i32_2 = arith.constant 0 : i32
    %c0_i32_3 = arith.constant 0 : i32
    return %c0_i32, %c0_i32_0, %c0_i32_1, %c0_i32_2 : i32, i32, i32, i32
  }
  func.func @transform_11(%arg0: i32, %arg1: memref<2x8xi32, #tpu.memory_space<smem>>, %arg2: memref<2x8xi32, #tpu.memory_space<smem>>) -> (i32, i32, i32, i32) {
    %c0_i32 = arith.constant 0 : i32
    %c0_i32_0 = arith.constant 0 : i32
    %c0_i32_1 = arith.constant 0 : i32
    %c0_i32_2 = arith.constant 0 : i32
    %c0_i32_3 = arith.constant 0 : i32
    return %c0_i32, %c0_i32_0, %c0_i32_1, %c0_i32_2 : i32, i32, i32, i32
  }
  func.func @transform_12(%arg0: i32, %arg1: memref<2x8xi32, #tpu.memory_space<smem>>, %arg2: memref<2x8xi32, #tpu.memory_space<smem>>) -> (i32, i32, i32, i32) {
    %c0_i32 = arith.constant 0 : i32
    %c0_i32_0 = arith.constant 0 : i32
    %c0_i32_1 = arith.constant 0 : i32
    %c0_i32_2 = arith.constant 0 : i32
    %c0_i32_3 = arith.constant 0 : i32
    return %c0_i32, %c0_i32_0, %c0_i32_1, %c0_i32_2 : i32, i32, i32, i32
  }
  func.func @transform_13(%arg0: i32, %arg1: memref<2x8xi32, #tpu.memory_space<smem>>, %arg2: memref<2x8xi32, #tpu.memory_space<smem>>) -> (i32, i32, i32) {
    %c0_i32 = arith.constant 0 : i32
    %c0_i32_0 = arith.constant 0 : i32
    %c0_i32_1 = arith.constant 0 : i32
    %c0_i32_2 = arith.constant 0 : i32
    return %c0_i32, %c0_i32_0, %c0_i32_1 : i32, i32, i32
  }
  func.func @transform_14(%arg0: i32, %arg1: memref<2x8xi32, #tpu.memory_space<smem>>, %arg2: memref<2x8xi32, #tpu.memory_space<smem>>) -> (i32, i32, i32) {
    %c0_i32 = arith.constant 0 : i32
    %c0_i32_0 = arith.constant 0 : i32
    %c0_i32_1 = arith.constant 0 : i32
    %c0_i32_2 = arith.constant 0 : i32
    return %c0_i32, %c0_i32_0, %c0_i32_1 : i32, i32, i32
  }
  func.func @transform_15(%arg0: i32, %arg1: memref<2x8xi32, #tpu.memory_space<smem>>, %arg2: memref<2x8xi32, #tpu.memory_space<smem>>) -> (i32, i32, i32) {
    %c0_i32 = arith.constant 0 : i32
    %c0_i32_0 = arith.constant 0 : i32
    %c0_i32_1 = arith.constant 0 : i32
    %c0_i32_2 = arith.constant 0 : i32
    return %c0_i32, %c0_i32_0, %c0_i32_1 : i32, i32, i32
  }
  func.func @transform_16(%arg0: i32, %arg1: memref<2x8xi32, #tpu.memory_space<smem>>, %arg2: memref<2x8xi32, #tpu.memory_space<smem>>) -> (i32, i32, i32) {
    %c0_i32 = arith.constant 0 : i32
    %c0_i32_0 = arith.constant 0 : i32
    %c0_i32_1 = arith.constant 0 : i32
    %c0_i32_2 = arith.constant 0 : i32
    return %c0_i32, %c0_i32_0, %c0_i32_1 : i32, i32, i32
  }
  func.func @transform_17(%arg0: i32, %arg1: memref<2x8xi32, #tpu.memory_space<smem>>, %arg2: memref<2x8xi32, #tpu.memory_space<smem>>) -> (i32, i32, i32) {
    %c0_i32 = arith.constant 0 : i32
    %c0_i32_0 = arith.constant 0 : i32
    %c0_i32_1 = arith.constant 0 : i32
    %c0_i32_2 = arith.constant 0 : i32
    return %c0_i32, %c0_i32_0, %c0_i32_1 : i32, i32, i32
  }
  func.func @transform_18(%arg0: i32, %arg1: memref<2x8xi32, #tpu.memory_space<smem>>, %arg2: memref<2x8xi32, #tpu.memory_space<smem>>) -> (i32, i32, i32) {
    %c0_i32 = arith.constant 0 : i32
    %c0_i32_0 = arith.constant 0 : i32
    %c0_i32_1 = arith.constant 0 : i32
    %c0_i32_2 = arith.constant 0 : i32
    return %c0_i32, %c0_i32_0, %c0_i32_1 : i32, i32, i32
  }
  func.func @transform_19(%arg0: i32, %arg1: memref<2x8xi32, #tpu.memory_space<smem>>, %arg2: memref<2x8xi32, #tpu.memory_space<smem>>) -> (i32, i32, i32) {
    %c0_i32 = arith.constant 0 : i32
    %c0_i32_0 = arith.constant 0 : i32
    %c0_i32_1 = arith.constant 0 : i32
    %c0_i32_2 = arith.constant 0 : i32
    return %c0_i32, %c0_i32_0, %c0_i32_1 : i32, i32, i32
  }
  func.func @transform_20(%arg0: i32, %arg1: memref<2x8xi32, #tpu.memory_space<smem>>, %arg2: memref<2x8xi32, #tpu.memory_space<smem>>) -> (i32, i32, i32) {
    %c0_i32 = arith.constant 0 : i32
    %c0_i32_0 = arith.constant 0 : i32
    %c0_i32_1 = arith.constant 0 : i32
    %c0_i32_2 = arith.constant 0 : i32
    return %c0_i32, %c0_i32_0, %c0_i32_1 : i32, i32, i32
  }
  func.func @transform_21(%arg0: i32, %arg1: memref<2x8xi32, #tpu.memory_space<smem>>, %arg2: memref<2x8xi32, #tpu.memory_space<smem>>) -> (i32, i32, i32) {
    %c0_i32 = arith.constant 0 : i32
    %c0_i32_0 = arith.constant 0 : i32
    %c0_i32_1 = arith.constant 0 : i32
    %c0_i32_2 = arith.constant 0 : i32
    return %c0_i32, %c0_i32_0, %c0_i32_1 : i32, i32, i32
  }
  func.func @transform_22(%arg0: i32, %arg1: memref<2x8xi32, #tpu.memory_space<smem>>, %arg2: memref<2x8xi32, #tpu.memory_space<smem>>) -> (i32, i32) {
    %c0_i32 = arith.constant 0 : i32
    %c0_i32_0 = arith.constant 0 : i32
    %c0_i32_1 = arith.constant 0 : i32
    return %c0_i32, %c0_i32_0 : i32, i32
  }
  func.func @transform_23(%arg0: i32, %arg1: memref<2x8xi32, #tpu.memory_space<smem>>, %arg2: memref<2x8xi32, #tpu.memory_space<smem>>) -> (i32, i32) {
    %c0_i32 = arith.constant 0 : i32
    %c0_i32_0 = arith.constant 0 : i32
    %c0_i32_1 = arith.constant 0 : i32
    return %c0_i32, %c0_i32_0 : i32, i32
  }
  func.func @transform_24(%arg0: i32, %arg1: memref<2x8xi32, #tpu.memory_space<smem>>, %arg2: memref<2x8xi32, #tpu.memory_space<smem>>) -> (i32, i32) {
    %c0_i32 = arith.constant 0 : i32
    %c0_i32_0 = arith.constant 0 : i32
    %c0_i32_1 = arith.constant 0 : i32
    return %c0_i32, %c0_i32_0 : i32, i32
  }
  func.func @transform_25(%arg0: i32, %arg1: memref<2x8xi32, #tpu.memory_space<smem>>, %arg2: memref<2x8xi32, #tpu.memory_space<smem>>) -> (i32, i32) {
    %c0_i32 = arith.constant 0 : i32
    %c0_i32_0 = arith.constant 0 : i32
    %c0_i32_1 = arith.constant 0 : i32
    return %c0_i32, %c0_i32_0 : i32, i32
  }
  func.func @transform_26(%arg0: i32, %arg1: memref<2x8xi32, #tpu.memory_space<smem>>, %arg2: memref<2x8xi32, #tpu.memory_space<smem>>) -> (i32, i32) {
    %c0_i32 = arith.constant 0 : i32
    %c0_i32_0 = arith.constant 0 : i32
    %c0_i32_1 = arith.constant 0 : i32
    return %c0_i32, %c0_i32_0 : i32, i32
  }
}

</mosaic_0001>

<llo_original>
// kernel: bert_net_forward.1
$region0: #{bert_net_forward.1}
  #allocation0 [shape = 'u32[]', space=smem, size = 0x4, offset = 0x4, fixed_abs, tag = 'smem constant byte address 0x4 - core index']
  #allocation1 [shape = 'u32[144,128]{1,0:T(1,128)}', space=vmem, size = 0x12000, scoped, tag = 'internal scratch']
  #allocation2 [shape = 'f32[16,32]{1,0:T(8,128)}', space=vmem, size = 0x2000, scoped, tag = 'scratch operand']
  #allocation3 [shape = 's32[1]{0}', space=sflag, size = 0x4, scoped, tag = 'scoped memory for bert_net_forward.1']
  #allocation4 [shape = 'u8[1024]{0}', space=smem, size = 0x400, scoped, tag = 'prefetched SMEM operand 0']
  #allocation5 [shape = 'u8[1024]{0}', space=smem, size = 0x400, scoped, tag = 'prefetched SMEM operand 1']
  %s0 = inlined_call_operand.vmem [shape: s32[2,8], index: 0, kind: input, shape index: {}]
  %s1 = inlined_call_operand.vmem [shape: s32[2,8], index: 1, kind: input, shape index: {}]
  %s2 = inlined_call_operand.vmem [shape: s32[2,8], index: 2, kind: input, shape index: {}]
  %s3 = inlined_call_operand.vmem [shape: f32[50,32], index: 3, kind: input, shape index: {}]
  %s4 = inlined_call_operand.vmem [shape: f32[16,32], index: 4, kind: input, shape index: {}]
  %s5 = inlined_call_operand.vmem [shape: f32[2,32], index: 5, kind: input, shape index: {}]
  %s6 = inlined_call_operand.vmem [shape: f32[1,32], index: 6, kind: input, shape index: {}]
  %s7 = inlined_call_operand.vmem [shape: f32[1,32], index: 7, kind: input, shape index: {}]
  %s8 = inlined_call_operand.vmem [shape: f32[2,2,32,16], index: 8, kind: input, shape index: {}]
  %s9 = inlined_call_operand.vmem [shape: f32[2,2,1,16], index: 9, kind: input, shape index: {}]
  %s10 = inlined_call_operand.vmem [shape: f32[2,2,32,16], index: 10, kind: input, shape index: {}]
  %s11 = inlined_call_operand.vmem [shape: f32[2,2,1,16], index: 11, kind: input, shape index: {}]
  %s12 = inlined_call_operand.vmem [shape: f32[2,2,32,16], index: 12, kind: input, shape index: {}]
  %s13 = inlined_call_operand.vmem [shape: f32[2,2,1,16], index: 13, kind: input, shape index: {}]
  %s14 = inlined_call_operand.vmem [shape: f32[2,2,16,32], index: 14, kind: input, shape index: {}]
  %s15 = inlined_call_operand.vmem [shape: f32[2,1,32], index: 15, kind: input, shape index: {}]
  %s16 = inlined_call_operand.vmem [shape: f32[2,1,32], index: 16, kind: input, shape index: {}]
  %s17 = inlined_call_operand.vmem [shape: f32[2,1,32], index: 17, kind: input, shape index: {}]
  %s18 = inlined_call_operand.vmem [shape: f32[2,32,64], index: 18, kind: input, shape index: {}]
  %s19 = inlined_call_operand.vmem [shape: f32[2,1,64], index: 19, kind: input, shape index: {}]
  %s20 = inlined_call_operand.vmem [shape: f32[2,64,32], index: 20, kind: input, shape index: {}]
  %s21 = inlined_call_operand.vmem [shape: f32[2,1,32], index: 21, kind: input, shape index: {}]
  %s22 = inlined_call_operand.vmem [shape: f32[2,1,32], index: 22, kind: input, shape index: {}]
  %s23 = inlined_call_operand.vmem [shape: f32[2,1,32], index: 23, kind: input, shape index: {}]
  %s24 = inlined_call_operand.vmem [shape: f32[32,32], index: 24, kind: input, shape index: {}]
  %s25 = inlined_call_operand.vmem [shape: f32[1,32], index: 25, kind: input, shape index: {}]
  %s26 = inlined_call_operand.vmem [shape: f32[32,128], index: 26, kind: input, shape index: {}]
  %s27 = inlined_call_operand.vmem [shape: f32[1,128], index: 27, kind: input, shape index: {}]
  %s28 = inlined_call_operand.hbm [shape: f32[2,128], index: 28, kind: output, shape index: {}]
  %s29 = sld [smem:[#allocation0]]
  $region114: #{bert_net_forward.1} parent=0
    _
  %s31 = ssub.s32 1, %s29
  %s32 = scalar_select 0, %s31, %s29
  %s33 = sshll.u32 %s0, 4
  %s34 = int_to_ptr.vmem [resolvable:$true] %s33
  %36 = dma.vmem_to_smem %s34, 32, [#allocation4], [#allocation3]
  %s37 = sshll.u32 %s1, 4
  %s38 = int_to_ptr.vmem [resolvable:$true] %s37
  %40 = dma.vmem_to_smem %s38, 32, [#allocation5], [#allocation3]
  %41 = dma.done [#allocation3], 64
  %42 = sfence
  $region1: #{bert_net_forward.1} parent=0
    #allocation6 [shape = 'u8[1024]{0}', space=vmem, size = 0x400, scoped, tag = 'output window, operand 0, single buffered']
    #allocation7 [shape = 's32[1]{0}', space=sflag, size = 0x4, scoped, tag = 'scoped memory for bert_net_forward.1']
    %43 = vsyncpa [#allocation7], 0
    // Predicated region
    $region2: #{bert_net_forward.1} parent=1 // pred_check
      _
    $region3: #{bert_net_forward.1} parent=1 // pred_check_branch
      %45 = sbr.rel (0) target = $region5
    $region4: #{bert_net_forward.1} parent=1 // pred_region
      _
    $region5: #{bert_net_forward.1} parent=1 // pred_fallthru
      _
    // Predicated region
    $region6: #{bert_net_forward.1} parent=1 // pred_check
      _
    $region7: #{bert_net_forward.1} parent=1 // pred_check_branch
      %47 = sbr.rel (0) target = $region9
    $region8: #{bert_net_forward.1} parent=1 // pred_region
      _
    $region9: #{bert_net_forward.1} parent=1 // pred_fallthru
      _
    // Predicated region
    $region10: #{bert_net_forward.1} parent=1 // pred_check
      _
    $region11: #{bert_net_forward.1} parent=1 // pred_check_branch
      %49 = sbr.rel (0) target = $region13
    $region12: #{bert_net_forward.1} parent=1 // pred_region
      _
    $region13: #{bert_net_forward.1} parent=1 // pred_fallthru
      _
    // Predicated region
    $region14: #{bert_net_forward.1} parent=1 // pred_check
      _
    $region15: #{bert_net_forward.1} parent=1 // pred_check_branch
      %51 = sbr.rel (0) target = $region17
    $region16: #{bert_net_forward.1} parent=1 // pred_region
      _
    $region17: #{bert_net_forward.1} parent=1 // pred_fallthru
      _
    // Predicated region
    $region18: #{bert_net_forward.1} parent=1 // pred_check
      _
    $region19: #{bert_net_forward.1} parent=1 // pred_check_branch
      %53 = sbr.rel (0) target = $region21
    $region20: #{bert_net_forward.1} parent=1 // pred_region
      _
    $region21: #{bert_net_forward.1} parent=1 // pred_fallthru
      _
    // Predicated region
    $region22: #{bert_net_forward.1} parent=1 // pred_check
      _
    $region23: #{bert_net_forward.1} parent=1 // pred_check_branch
      %55 = sbr.rel (0) target = $region25
    $region24: #{bert_net_forward.1} parent=1 // pred_region
      _
    $region25: #{bert_net_forward.1} parent=1 // pred_fallthru
      _
    // Predicated region
    $region26: #{bert_net_forward.1} parent=1 // pred_check
      _
    $region27: #{bert_net_forward.1} parent=1 // pred_check_branch
      %57 = sbr.rel (0) target = $region29
    $region28: #{bert_net_forward.1} parent=1 // pred_region
      _
    $region29: #{bert_net_forward.1} parent=1 // pred_fallthru
      _
    // Predicated region
    $region30: #{bert_net_forward.1} parent=1 // pred_check
      _
    $region31: #{bert_net_forward.1} parent=1 // pred_check_branch
      %59 = sbr.rel (0) target = $region33
    $region32: #{bert_net_forward.1} parent=1 // pred_region
      _
    $region33: #{bert_net_forward.1} parent=1 // pred_fallthru
      _
    // Predicated region
    $region34: #{bert_net_forward.1} parent=1 // pred_check
      _
    $region35: #{bert_net_forward.1} parent=1 // pred_check_branch
      %61 = sbr.rel (0) target = $region37
    $region36: #{bert_net_forward.1} parent=1 // pred_region
      _
    $region37: #{bert_net_forward.1} parent=1 // pred_fallthru
      _
    // Predicated region
    $region38: #{bert_net_forward.1} parent=1 // pred_check
      _
    $region39: #{bert_net_forward.1} parent=1 // pred_check_branch
      %63 = sbr.rel (0) target = $region41
    $region40: #{bert_net_forward.1} parent=1 // pred_region
      _
    $region41: #{bert_net_forward.1} parent=1 // pred_fallthru
      _
    // Predicated region
    $region42: #{bert_net_forward.1} parent=1 // pred_check
      _
    $region43: #{bert_net_forward.1} parent=1 // pred_check_branch
      %65 = sbr.rel (0) target = $region45
    $region44: #{bert_net_forward.1} parent=1 // pred_region
      _
    $region45: #{bert_net_forward.1} parent=1 // pred_fallthru
      _
    // Predicated region
    $region46: #{bert_net_forward.1} parent=1 // pred_check
      _
    $region47: #{bert_net_forward.1} parent=1 // pred_check_branch
      %67 = sbr.rel (0) target = $region49
    $region48: #{bert_net_forward.1} parent=1 // pred_region
      _
    $region49: #{bert_net_forward.1} parent=1 // pred_fallthru
      _
    // Predicated region
    $region50: #{bert_net_forward.1} parent=1 // pred_check
      _
    $region51: #{bert_net_forward.1} parent=1 // pred_check_branch
      %69 = sbr.rel (0) target = $region53
    $region52: #{bert_net_forward.1} parent=1 // pred_region
      _
    $region53: #{bert_net_forward.1} parent=1 // pred_fallthru
      _
    // Predicated region
    $region54: #{bert_net_forward.1} parent=1 // pred_check
      _
    $region55: #{bert_net_forward.1} parent=1 // pred_check_branch
      %71 = sbr.rel (0) target = $region57
    $region56: #{bert_net_forward.1} parent=1 // pred_region
      _
    $region57: #{bert_net_forward.1} parent=1 // pred_fallthru
      _
    // Predicated region
    $region58: #{bert_net_forward.1} parent=1 // pred_check
      _
    $region59: #{bert_net_forward.1} parent=1 // pred_check_branch
      %73 = sbr.rel (0) target = $region61
    $region60: #{bert_net_forward.1} parent=1 // pred_region
      _
    $region61: #{bert_net_forward.1} parent=1 // pred_fallthru
      _
    // Predicated region
    $region62: #{bert_net_forward.1} parent=1 // pred_check
      _
    $region63: #{bert_net_forward.1} parent=1 // pred_check_branch
      %75 = sbr.rel (0) target = $region65
    $region64: #{bert_net_forward.1} parent=1 // pred_region
      _
    $region65: #{bert_net_forward.1} parent=1 // pred_fallthru
      _
    // Predicated region
    $region66: #{bert_net_forward.1} parent=1 // pred_check
      _
    $region67: #{bert_net_forward.1} parent=1 // pred_check_branch
      %77 = sbr.rel (0) target = $region69
    $region68: #{bert_net_forward.1} parent=1 // pred_region
      _
    $region69: #{bert_net_forward.1} parent=1 // pred_fallthru
      _
    // Predicated region
    $region70: #{bert_net_forward.1} parent=1 // pred_check
      _
    $region71: #{bert_net_forward.1} parent=1 // pred_check_branch
      %79 = sbr.rel (0) target = $region73
    $region72: #{bert_net_forward.1} parent=1 // pred_region
      _
    $region73: #{bert_net_forward.1} parent=1 // pred_fallthru
      _
    // Predicated region
    $region74: #{bert_net_forward.1} parent=1 // pred_check
      _
    $region75: #{bert_net_forward.1} parent=1 // pred_check_branch
      %81 = sbr.rel (0) target = $region77
    $region76: #{bert_net_forward.1} parent=1 // pred_region
      _
    $region77: #{bert_net_forward.1} parent=1 // pred_fallthru
      _
    // Predicated region
    $region78: #{bert_net_forward.1} parent=1 // pred_check
      _
    $region79: #{bert_net_forward.1} parent=1 // pred_check_branch
      %83 = sbr.rel (0) target = $region81
    $region80: #{bert_net_forward.1} parent=1 // pred_region
      _
    $region81: #{bert_net_forward.1} parent=1 // pred_fallthru
      _
    // Predicated region
    $region82: #{bert_net_forward.1} parent=1 // pred_check
      _
    $region83: #{bert_net_forward.1} parent=1 // pred_check_branch
      %85 = sbr.rel (0) target = $region85
    $region84: #{bert_net_forward.1} parent=1 // pred_region
      _
    $region85: #{bert_net_forward.1} parent=1 // pred_fallthru
      _
    // Predicated region
    $region86: #{bert_net_forward.1} parent=1 // pred_check
      _
    $region87: #{bert_net_forward.1} parent=1 // pred_check_branch
      %87 = sbr.rel (0) target = $region89
    $region88: #{bert_net_forward.1} parent=1 // pred_region
      _
    $region89: #{bert_net_forward.1} parent=1 // pred_fallthru
      _
    // Predicated region
    $region90: #{bert_net_forward.1} parent=1 // pred_check
      _
    $region91: #{bert_net_forward.1} parent=1 // pred_check_branch
      %89 = sbr.rel (0) target = $region93
    $region92: #{bert_net_forward.1} parent=1 // pred_region
      _
    $region93: #{bert_net_forward.1} parent=1 // pred_fallthru
      _
    // Predicated region
    $region94: #{bert_net_forward.1} parent=1 // pred_check
      _
    $region95: #{bert_net_forward.1} parent=1 // pred_check_branch
      %91 = sbr.rel (0) target = $region97
    $region96: #{bert_net_forward.1} parent=1 // pred_region
      _
    $region97: #{bert_net_forward.1} parent=1 // pred_fallthru
      _
    // Predicated region
    $region98: #{bert_net_forward.1} parent=1 // pred_check
      _
    $region99: #{bert_net_forward.1} parent=1 // pred_check_branch
      %93 = sbr.rel (0) target = $region101
    $region100: #{bert_net_forward.1} parent=1 // pred_region
      _
    $region101: #{bert_net_forward.1} parent=1 // pred_fallthru
      _
    // Predicated region
    $region102: #{bert_net_forward.1} parent=1 // pred_check
      _
    $region103: #{bert_net_forward.1} parent=1 // pred_check_branch
      %95 = sbr.rel (0) target = $region105
    $region104: #{bert_net_forward.1} parent=1 // pred_region
      _
    $region105: #{bert_net_forward.1} parent=1 // pred_fallthru
      _
    %s96 = sld [smem:[#allocation4]]
    %s97 = sld [smem:[#allocation5]]
    %s98 = scalar_lea.vmem %s3, %s96
    %v99 = vld [vmem:[%s98] sm:$0x1]
    %v100 = vld [vmem:[%s4] sm:$0x1]
    %v101 = vadd.f32 %v99, %v100
    %s102 = scalar_lea.vmem %s5, %s97
    %v103 = vld [vmem:[%s102] sm:$0x1]
    %v104 = vadd.f32 %v101, %v103
    %vm105 = vcmask 253952
    %106 = vst.msk [vmem:[#allocation2] sm:$0x1] %vm105, %v104
    %s107 = sld [smem:[#allocation4 + $0x1]]
    %s108 = sld [smem:[#allocation5 + $0x1]]
    %s109 = scalar_lea.vmem %s3, %s107
    %v110 = vld [vmem:[%s109] sm:$0x1]
    %v111 = vld [vmem:[%s4 + $0x1] sm:$0x1]
    %v112 = vadd.f32 %v110, %v111
    %s113 = scalar_lea.vmem %s5, %s108
    %v114 = vld [vmem:[%s113] sm:$0x1]
    %v115 = vadd.f32 %v112, %v114
    %116 = vst.msk [vmem:[#allocation2 + $0x1] sm:$0x1] %vm105, %v115
    %s117 = sld [smem:[#allocation4 + $0x2]]
    %s118 = sld [smem:[#allocation5 + $0x2]]
    %s119 = scalar_lea.vmem %s3, %s117
    %v120 = vld [vmem:[%s119] sm:$0x1]
    %v121 = vld [vmem:[%s4 + $0x2] sm:$0x1]
    %v122 = vadd.f32 %v120, %v121
    %s123 = scalar_lea.vmem %s5, %s118
    %v124 = vld [vmem:[%s123] sm:$0x1]
    %v125 = vadd.f32 %v122, %v124
    %126 = vst.msk [vmem:[#allocation2 + $0x2] sm:$0x1] %vm105, %v125
    %s127 = sld [smem:[#allocation4 + $0x3]]
    %s128 = sld [smem:[#allocation5 + $0x3]]
    %s129 = scalar_lea.vmem %s3, %s127
    %v130 = vld [vmem:[%s129] sm:$0x1]
    %v131 = vld [vmem:[%s4 + $0x3] sm:$0x1]
    %v132 = vadd.f32 %v130, %v131
    %s133 = scalar_lea.vmem %s5, %s128
    %v134 = vld [vmem:[%s133] sm:$0x1]
    %v135 = vadd.f32 %v132, %v134
    %136 = vst.msk [vmem:[#allocation2 + $0x3] sm:$0x1] %vm105, %v135
    %s137 = sld [smem:[#allocation4 + $0x4]]
    %s138 = sld [smem:[#allocation5 + $0x4]]
    %s139 = scalar_lea.vmem %s3, %s137
    %v140 = vld [vmem:[%s139] sm:$0x1]
    %v141 = vld [vmem:[%s4 + $0x4] sm:$0x1]
    %v142 = vadd.f32 %v140, %v141
    %s143 = scalar_lea.vmem %s5, %s138
    %v144 = vld [vmem:[%s143] sm:$0x1]
    %v145 = vadd.f32 %v142, %v144
    %146 = vst.msk [vmem:[#allocation2 + $0x4] sm:$0x1] %vm105, %v145
    %s147 = sld [smem:[#allocation4 + $0x5]]
    %s148 = sld [smem:[#allocation5 + $0x5]]
    %s149 = scalar_lea.vmem %s3, %s147
    %v150 = vld [vmem:[%s149] sm:$0x1]
    %v151 = vld [vmem:[%s4 + $0x5] sm:$0x1]
    %v152 = vadd.f32 %v150, %v151
    %s153 = scalar_lea.vmem %s5, %s148
    %v154 = vld [vmem:[%s153] sm:$0x1]
    %v155 = vadd.f32 %v152, %v154
    %156 = vst.msk [vmem:[#allocation2 + $0x5] sm:$0x1] %vm105, %v155
    %s157 = sld [smem:[#allocation4 + $0x6]]
    %s158 = sld [smem:[#allocation5 + $0x6]]
    %s159 = scalar_lea.vmem %s3, %s157
    %v160 = vld [vmem:[%s159] sm:$0x1]
    %v161 = vld [vmem:[%s4 + $0x6] sm:$0x1]
    %v162 = vadd.f32 %v160, %v161
    %s163 = scalar_lea.vmem %s5, %s158
    %v164 = vld [vmem:[%s163] sm:$0x1]
    %v165 = vadd.f32 %v162, %v164
    %166 = vst.msk [vmem:[#allocation2 + $0x6] sm:$0x1] %vm105, %v165
    %s167 = sld [smem:[#allocation4 + $0x7]]
    %s168 = sld [smem:[#allocation5 + $0x7]]
    %s169 = scalar_lea.vmem %s3, %s167
    %v170 = vld [vmem:[%s169] sm:$0x1]
    %v171 = vld [vmem:[%s4 + $0x7] sm:$0x1]
    %v172 = vadd.f32 %v170, %v171
    %s173 = scalar_lea.vmem %s5, %s168
    %v174 = vld [vmem:[%s173] sm:$0x1]
    %v175 = vadd.f32 %v172, %v174
    %176 = vst.msk [vmem:[#allocation2 + $0x7] sm:$0x1] %vm105, %v175
    %s177 = sld [smem:[#allocation4 + $0x80]]
    %s178 = sld [smem:[#allocation5 + $0x80]]
    %s179 = scalar_lea.vmem %s3, %s177
    %v180 = vld [vmem:[%s179] sm:$0x1]
    %v181 = vld [vmem:[%s4] sm:$0x1]
    %v182 = vadd.f32 %v180, %v181
    %s183 = scalar_lea.vmem %s5, %s178
    %v184 = vld [vmem:[%s183] sm:$0x1]
    %v185 = vadd.f32 %v182, %v184
    %186 = vst.msk [vmem:[#allocation2 + $0x8] sm:$0x1] %vm105, %v185
    %s187 = sld [smem:[#allocation4 + $0x81]]
    %s188 = sld [smem:[#allocation5 + $0x81]]
    %s189 = scalar_lea.vmem %s3, %s187
    %v190 = vld [vmem:[%s189] sm:$0x1]
    %v191 = vld [vmem:[%s4 + $0x1] sm:$0x1]
    %v192 = vadd.f32 %v190, %v191
    %s193 = scalar_lea.vmem %s5, %s188
    %v194 = vld [vmem:[%s193] sm:$0x1]
    %v195 = vadd.f32 %v192, %v194
    %196 = vst.msk [vmem:[#allocation2 + $0x9] sm:$0x1] %vm105, %v195
    %s197 = sld [smem:[#allocation4 + $0x82]]
    %s198 = sld [smem:[#allocation5 + $0x82]]
    %s199 = scalar_lea.vmem %s3, %s197
    %v200 = vld [vmem:[%s199] sm:$0x1]
    %v201 = vld [vmem:[%s4 + $0x2] sm:$0x1]
    %v202 = vadd.f32 %v200, %v201
    %s203 = scalar_lea.vmem %s5, %s198
    %v204 = vld [vmem:[%s203] sm:$0x1]
    %v205 = vadd.f32 %v202, %v204
    %206 = vst.msk [vmem:[#allocation2 + $0xa] sm:$0x1] %vm105, %v205
    %s207 = sld [smem:[#allocation4 + $0x83]]
    %s208 = sld [smem:[#allocation5 + $0x83]]
    %s209 = scalar_lea.vmem %s3, %s207
    %v210 = vld [vmem:[%s209] sm:$0x1]
    %v211 = vld [vmem:[%s4 + $0x3] sm:$0x1]
    %v212 = vadd.f32 %v210, %v211
    %s213 = scalar_lea.vmem %s5, %s208
    %v214 = vld [vmem:[%s213] sm:$0x1]
    %v215 = vadd.f32 %v212, %v214
    %216 = vst.msk [vmem:[#allocation2 + $0xb] sm:$0x1] %vm105, %v215
    %s217 = sld [smem:[#allocation4 + $0x84]]
    %s218 = sld [smem:[#allocation5 + $0x84]]
    %s219 = scalar_lea.vmem %s3, %s217
    %v220 = vld [vmem:[%s219] sm:$0x1]
    %v221 = vld [vmem:[%s4 + $0x4] sm:$0x1]
    %v222 = vadd.f32 %v220, %v221
    %s223 = scalar_lea.vmem %s5, %s218
    %v224 = vld [vmem:[%s223] sm:$0x1]
    %v225 = vadd.f32 %v222, %v224
    %226 = vst.msk [vmem:[#allocation2 + $0xc] sm:$0x1] %vm105, %v225
    %s227 = sld [smem:[#allocation4 + $0x85]]
    %s228 = sld [smem:[#allocation5 + $0x85]]
    %s229 = scalar_lea.vmem %s3, %s227
    %v230 = vld [vmem:[%s229] sm:$0x1]
    %v231 = vld [vmem:[%s4 + $0x5] sm:$0x1]
    %v232 = vadd.f32 %v230, %v231
    %s233 = scalar_lea.vmem %s5, %s228
    %v234 = vld [vmem:[%s233] sm:$0x1]
    %v235 = vadd.f32 %v232, %v234
    %236 = vst.msk [vmem:[#allocation2 + $0xd] sm:$0x1] %vm105, %v235
    %s237 = sld [smem:[#allocation4 + $0x86]]
    %s238 = sld [smem:[#allocation5 + $0x86]]
    %s239 = scalar_lea.vmem %s3, %s237
    %v240 = vld [vmem:[%s239] sm:$0x1]
    %v241 = vld [vmem:[%s4 + $0x6] sm:$0x1]
    %v242 = vadd.f32 %v240, %v241
    %s243 = scalar_lea.vmem %s5, %s238
    %v244 = vld [vmem:[%s243] sm:$0x1]
    %v245 = vadd.f32 %v242, %v244
    %246 = vst.msk [vmem:[#allocation2 + $0xe] sm:$0x1] %vm105, %v245
    %s247 = sld [smem:[#allocation4 + $0x87]]
    %s248 = sld [smem:[#allocation5 + $0x87]]
    %s249 = scalar_lea.vmem %s3, %s247
    %v250 = vld [vmem:[%s249] sm:$0x1]
    %v251 = vld [vmem:[%s4 + $0x7] sm:$0x1]
    %v252 = vadd.f32 %v250, %v251
    %s253 = scalar_lea.vmem %s5, %s248
    %v254 = vld [vmem:[%s253] sm:$0x1]
    %v255 = vadd.f32 %v252, %v254
    %256 = vst.msk [vmem:[#allocation2 + $0xf] sm:$0x1] %vm105, %v255
    %v257 = vld [vmem:[#allocation2] sm:$0xff]
    %v258 = vld [vmem:[#allocation2 + $0x8] sm:$0xff]
    %v259 = vld [vmem:[%s6] sm:$0x1]
    %v260 = vld [vmem:[%s7] sm:$0x1]
    %vm261 = vcmask 261120
    %v262 = vsel %vm261, %v257, 0.0
    %263 = vadd.xlane.f32.xlu0 %v262
    %v264 = vpop.xlane.xlu0 %263
    %v265 = vsel %vm261, %v258, 0.0
    %266 = vadd.xlane.f32.xlu0 %v265
    %v267 = vpop.xlane.xlu0 %266
    %v268 = vrcp.pop 32.0
    %v269 = vmul.f32 %v264, %v268
    %v270 = vmul.f32 %v267, %v268
    %v271 = vsub.f32 %v257, %v269
    %v272 = vsub.f32 %v258, %v270
    %v273 = vmul.f32 %v271, %v271
    %v274 = vmul.f32 %v272, %v272
    %v275 = vsel %vm261, %v273, 0.0
    %276 = vadd.xlane.f32.xlu0 %v275
    %v277 = vpop.xlane.xlu0 %276
    %v278 = vsel %vm261, %v274, 0.0
    %279 = vadd.xlane.f32.xlu0 %v278
    %v280 = vpop.xlane.xlu0 %279
    %v281 = vmul.f32 %v277, %v268
    %v282 = vmul.f32 %v280, %v268
    %v283 = vadd.f32 %v281, 1e-12
    %v284 = vadd.f32 %v282, 1e-12
    %v285 = vrsqrt.pop %v283
    %v286 = vrsqrt.pop %v284
    %v287 = vmul.f32 %v271, %v285
    %v288 = vmul.f32 %v272, %v286
    %v290 = vlaneseq
    %v291 = vshrl.u32 %v290, 7
    %v292 = vsub.s32 0, %v291
    %v293 = vrot.slane %v259, %v292
    %v295 = vmul.f32 %v287, %v293
    %v296 = vmul.f32 %v288, %v293
    %v298 = vlaneseq
    %v299 = vshrl.u32 %v298, 7
    %v300 = vsub.s32 0, %v299
    %v301 = vrot.slane %v260, %v300
    %v303 = vadd.f32 %v295, %v301
    %v304 = vadd.f32 %v296, %v301
    %v305 = vld [vmem:[%s2] sm:$0x3]
    %v306 = vcvt.s32.f32 %v305
    %v307 = vsub.f32 1.0, %v306
    %v308 = vmul.f32 %v307, -10000.0
    %v311 = vunpack.c.l.s4 1966171168
    %v312 = vunpack.c.0.s8 %v311
    %v313 = vlaneseq
    %v314 = vshrl.u32 %v313, 7
    %v315 = vsub.s32 %v312, %v314
    %v316 = vrot.slane %v308, %v315
    %v317 = vcombine.high %v316, %v316
    %v319 = vunpack.c.l.s4 1966171168
    %v320 = vunpack.c.0.s8 %v319
    %v321 = vlaneseq
    %v322 = vshrl.u32 %v321, 7
    %v323 = vsub.s32 %v320, %v322
    %v324 = vrot.slane %v316, %v323
    %v326 = vunpack.c.l.s4 1966171168
    %v327 = vunpack.c.0.s8 %v326
    %v328 = vlaneseq
    %v329 = vshrl.u32 %v328, 7
    %v330 = vsub.s32 %v327, %v329
    %v331 = vrot.slane %v317, %v330
    %v332 = vlaneseq
    %v333 = vshrl.u32 %v332, 7
    %v334 = vsub.s32 0, %v333
    %v335 = vrot.slane %v324, %v334
    %v336 = vlaneseq
    %v337 = vshrl.u32 %v336, 7
    %v338 = vsub.s32 0, %v337
    %v339 = vrot.slane %v331, %v338
    %v342 = vld [vmem:[%s8] sm:$0xff]
    %v343 = vld [vmem:[%s8 + $0x8] sm:$0xff]
    %v344 = vld [vmem:[%s8 + $0x10] sm:$0xff]
    %v345 = vld [vmem:[%s8 + $0x18] sm:$0xff]
    %v346 = vld [vmem:[%s9] sm:$0x1]
    %v348 = vlaneseq
    %v349 = vshrl.u32 %v348, 7
    %v350 = vsub.s32 0, %v349
    %v351 = vrot.slane %v346, %v350
    %v354 = vsel %vm261, %v303, 0
    %v357 = vsel %vm261, %v304, 0
    %359 = vmatprep.subr.mxu0 0.0
    %360 = vmatpush1.msra.mxu0 %v342
    %361 = vmatprep.subr.mxu0 0.0
    %362 = vmatpush1.msra.mxu0 %v343
    %363 = vmatprep.subr.mxu0 0.0
    %364 = vmatpush1.msra.mxu0 %v344
    %365 = vmatprep.subr.mxu0 0.0
    %366 = vmatpush1.msra.mxu0 %v345
    %367 = vmatprep.subr.mxu0 0.0
    %368 = vmatpush1.msra.mxu0 0.0
    %369 = vmatprep.subr.mxu0 0.0
    %370 = vmatpush1.msra.mxu0 0.0
    %371 = vmatprep.subr.mxu0 0.0
    %372 = vmatpush1.msra.mxu0 0.0
    %373 = vmatprep.subr.mxu0 0.0
    %374 = vmatpush1.msra.mxu0 0.0
    %375 = vmatprep.subr.mxu0 0.0
    %376 = vmatpush1.msra.mxu0 0.0
    %377 = vmatprep.subr.mxu0 0.0
    %378 = vmatpush1.msra.mxu0 0.0
    %379 = vmatprep.subr.mxu0 0.0
    %380 = vmatpush1.msra.mxu0 0.0
    %381 = vmatprep.subr.mxu0 0.0
    %382 = vmatpush1.msra.mxu0 0.0
    %383 = vmatprep.subr.mxu0 0.0
    %384 = vmatpush1.msra.mxu0 0.0
    %385 = vmatprep.subr.mxu0 0.0
    %386 = vmatpush1.msra.mxu0 0.0
    %387 = vmatprep.subr.mxu0 0.0
    %388 = vmatpush1.msra.mxu0 0.0
    %389 = vmatprep.subr.mxu0 0.0
    %390 = vmatpush1.msra.mxu0 0.0
    %391 = vmatprep.subr.mxu0 0.0
    %392 = vmatpush1.msra.mxu0 0.0
    %393 = vmatprep.subr.mxu0 0.0
    %394 = vmatpush1.msra.mxu0 0.0
    %395 = vmatprep.subr.mxu0 0.0
    %396 = vmatpush1.msra.mxu0 0.0
    %397 = vmatprep.subr.mxu0 0.0
    %398 = vmatpush1.msra.mxu0 0.0
    %399 = vmatprep.subr.mxu0 0.0
    %400 = vmatpush1.msra.mxu0 0.0
    %401 = vmatprep.subr.mxu0 0.0
    %402 = vmatpush1.msra.mxu0 0.0
    %403 = vmatprep.subr.mxu0 0.0
    %404 = vmatpush1.msra.mxu0 0.0
    %405 = vmatprep.subr.mxu0 0.0
    %406 = vmatpush1.msra.mxu0 0.0
    %407 = vmatprep.subr.mxu0 0.0
    %408 = vmatpush1.msra.mxu0 0.0
    %409 = vmatprep.subr.mxu0 0.0
    %410 = vmatpush1.msra.mxu0 0.0
    %411 = vmatprep.subr.mxu0 0.0
    %412 = vmatpush1.msra.mxu0 0.0
    %413 = vmatprep.subr.mxu0 0.0
    %414 = vmatpush1.msra.mxu0 0.0
    %415 = vmatprep.subr.mxu0 0.0
    %416 = vmatpush1.msra.mxu0 0.0
    %417 = vmatprep.subr.mxu0 0.0
    %418 = vmatpush1.msra.mxu0 0.0
    %419 = vmatprep.subr.mxu0 0.0
    %420 = vmatpush1.msra.mxu0 0.0
    %421 = vmatprep.subr.mxu0 0.0
    %422 = vmatpush1.msra.mxu0 0.0
    %423 = vmatprep.mubr.f32.mxu0 0.0
    %424 = vmatmul.mubr.f32.gmra.mrb[0].mxu0 %v354
    %v425 = vpop.f32.mrb[0].mxu0
    %v426 = vadd.f32 %v351, %v425
    %v427 = vpop.f32.mrb[0].mxu0
    %428 = vmatprep.mubr.f32.mxu0 0.0
    %429 = vmatmul.mubr.f32.gmra.mrb[0].mxu0 %v357
    %v430 = vpop.f32.mrb[0].mxu0
    %v431 = vadd.f32 %v351, %v430
    %v432 = vpop.f32.mrb[0].mxu0
    %433 = vdwg.mxu0
    %v434 = vld [vmem:[%s10] sm:$0xff]
    %v435 = vld [vmem:[%s10 + $0x8] sm:$0xff]
    %v436 = vld [vmem:[%s10 + $0x10] sm:$0xff]
    %v437 = vld [vmem:[%s10 + $0x18] sm:$0xff]
    %v438 = vld [vmem:[%s11] sm:$0x1]
    %v440 = vlaneseq
    %v441 = vshrl.u32 %v440, 7
    %v442 = vsub.s32 0, %v441
    %v443 = vrot.slane %v438, %v442
    %445 = vmatprep.subr.mxu0 0.0
    %446 = vmatpush1.msra.mxu0 %v434
    %447 = vmatprep.subr.mxu0 0.0
    %448 = vmatpush1.msra.mxu0 %v435
    %449 = vmatprep.subr.mxu0 0.0
    %450 = vmatpush1.msra.mxu0 %v436
    %451 = vmatprep.subr.mxu0 0.0
    %452 = vmatpush1.msra.mxu0 %v437
    %453 = vmatprep.subr.mxu0 0.0
    %454 = vmatpush1.msra.mxu0 0.0
    %455 = vmatprep.subr.mxu0 0.0
    %456 = vmatpush1.msra.mxu0 0.0
    %457 = vmatprep.subr.mxu0 0.0
    %458 = vmatpush1.msra.mxu0 0.0
    %459 = vmatprep.subr.mxu0 0.0
    %460 = vmatpush1.msra.mxu0 0.0
    %461 = vmatprep.subr.mxu0 0.0
    %462 = vmatpush1.msra.mxu0 0.0
    %463 = vmatprep.subr.mxu0 0.0
    %464 = vmatpush1.msra.mxu0 0.0
    %465 = vmatprep.subr.mxu0 0.0
    %466 = vmatpush1.msra.mxu0 0.0
    %467 = vmatprep.subr.mxu0 0.0
    %468 = vmatpush1.msra.mxu0 0.0
    %469 = vmatprep.subr.mxu0 0.0
    %470 = vmatpush1.msra.mxu0 0.0
    %471 = vmatprep.subr.mxu0 0.0
    %472 = vmatpush1.msra.mxu0 0.0
    %473 = vmatprep.subr.mxu0 0.0
    %474 = vmatpush1.msra.mxu0 0.0
    %475 = vmatprep.subr.mxu0 0.0
    %476 = vmatpush1.msra.mxu0 0.0
    %477 = vmatprep.subr.mxu0 0.0
    %478 = vmatpush1.msra.mxu0 0.0
    %479 = vmatprep.subr.mxu0 0.0
    %480 = vmatpush1.msra.mxu0 0.0
    %481 = vmatprep.subr.mxu0 0.0
    %482 = vmatpush1.msra.mxu0 0.0
    %483 = vmatprep.subr.mxu0 0.0
    %484 = vmatpush1.msra.mxu0 0.0
    %485 = vmatprep.subr.mxu0 0.0
    %486 = vmatpush1.msra.mxu0 0.0
    %487 = vmatprep.subr.mxu0 0.0
    %488 = vmatpush1.msra.mxu0 0.0
    %489 = vmatprep.subr.mxu0 0.0
    %490 = vmatpush1.msra.mxu0 0.0
    %491 = vmatprep.subr.mxu0 0.0
    %492 = vmatpush1.msra.mxu0 0.0
    %493 = vmatprep.subr.mxu0 0.0
    %494 = vmatpush1.msra.mxu0 0.0
    %495 = vmatprep.subr.mxu0 0.0
    %496 = vmatpush1.msra.mxu0 0.0
    %497 = vmatprep.subr.mxu0 0.0
    %498 = vmatpush1.msra.mxu0 0.0
    %499 = vmatprep.subr.mxu0 0.0
    %500 = vmatpush1.msra.mxu0 0.0
    %501 = vmatprep.subr.mxu0 0.0
    %502 = vmatpush1.msra.mxu0 0.0
    %503 = vmatprep.subr.mxu0 0.0
    %504 = vmatpush1.msra.mxu0 0.0
    %505 = vmatprep.subr.mxu0 0.0
    %506 = vmatpush1.msra.mxu0 0.0
    %507 = vmatprep.subr.mxu0 0.0
    %508 = vmatpush1.msra.mxu0 0.0
    %509 = vmatprep.mubr.f32.mxu0 0.0
    %510 = vmatmul.mubr.f32.gmra.mrb[0].mxu0 %v354
    %v511 = vpop.f32.mrb[0].mxu0
    %v512 = vadd.f32 %v443, %v511
    %v513 = vpop.f32.mrb[0].mxu0
    %514 = vmatprep.mubr.f32.mxu0 0.0
    %515 = vmatmul.mubr.f32.gmra.mrb[0].mxu0 %v357
    %v516 = vpop.f32.mrb[0].mxu0
    %v517 = vadd.f32 %v443, %v516
    %v518 = vpop.f32.mrb[0].mxu0
    %519 = vdwg.mxu0
    %v520 = vld [vmem:[%s12] sm:$0xff]
    %v521 = vld [vmem:[%s12 + $0x8] sm:$0xff]
    %v522 = vld [vmem:[%s12 + $0x10] sm:$0xff]
    %v523 = vld [vmem:[%s12 + $0x18] sm:$0xff]
    %v524 = vld [vmem:[%s13] sm:$0x1]
    %v526 = vlaneseq
    %v527 = vshrl.u32 %v526, 7
    %v528 = vsub.s32 0, %v527
    %v529 = vrot.slane %v524, %v528
    %531 = vmatprep.subr.mxu0 0.0
    %532 = vmatpush1.msra.mxu0 %v520
    %533 = vmatprep.subr.mxu0 0.0
    %534 = vmatpush1.msra.mxu0 %v521
    %535 = vmatprep.subr.mxu0 0.0
    %536 = vmatpush1.msra.mxu0 %v522
    %537 = vmatprep.subr.mxu0 0.0
    %538 = vmatpush1.msra.mxu0 %v523
    %539 = vmatprep.subr.mxu0 0.0
    %540 = vmatpush1.msra.mxu0 0.0
    %541 = vmatprep.subr.mxu0 0.0
    %542 = vmatpush1.msra.mxu0 0.0
    %543 = vmatprep.subr.mxu0 0.0
    %544 = vmatpush1.msra.mxu0 0.0
    %545 = vmatprep.subr.mxu0 0.0
    %546 = vmatpush1.msra.mxu0 0.0
    %547 = vmatprep.subr.mxu0 0.0
    %548 = vmatpush1.msra.mxu0 0.0
    %549 = vmatprep.subr.mxu0 0.0
    %550 = vmatpush1.msra.mxu0 0.0
    %551 = vmatprep.subr.mxu0 0.0
    %552 = vmatpush1.msra.mxu0 0.0
    %553 = vmatprep.subr.mxu0 0.0
    %554 = vmatpush1.msra.mxu0 0.0
    %555 = vmatprep.subr.mxu0 0.0
    %556 = vmatpush1.msra.mxu0 0.0
    %557 = vmatprep.subr.mxu0 0.0
    %558 = vmatpush1.msra.mxu0 0.0
    %559 = vmatprep.subr.mxu0 0.0
    %560 = vmatpush1.msra.mxu0 0.0
    %561 = vmatprep.subr.mxu0 0.0
    %562 = vmatpush1.msra.mxu0 0.0
    %563 = vmatprep.subr.mxu0 0.0
    %564 = vmatpush1.msra.mxu0 0.0
    %565 = vmatprep.subr.mxu0 0.0
    %566 = vmatpush1.msra.mxu0 0.0
    %567 = vmatprep.subr.mxu0 0.0
    %568 = vmatpush1.msra.mxu0 0.0
    %569 = vmatprep.subr.mxu0 0.0
    %570 = vmatpush1.msra.mxu0 0.0
    %571 = vmatprep.subr.mxu0 0.0
    %572 = vmatpush1.msra.mxu0 0.0
    %573 = vmatprep.subr.mxu0 0.0
    %574 = vmatpush1.msra.mxu0 0.0
    %575 = vmatprep.subr.mxu0 0.0
    %576 = vmatpush1.msra.mxu0 0.0
    %577 = vmatprep.subr.mxu0 0.0
    %578 = vmatpush1.msra.mxu0 0.0
    %579 = vmatprep.subr.mxu0 0.0
    %580 = vmatpush1.msra.mxu0 0.0
    %581 = vmatprep.subr.mxu0 0.0
    %582 = vmatpush1.msra.mxu0 0.0
    %583 = vmatprep.subr.mxu0 0.0
    %584 = vmatpush1.msra.mxu0 0.0
    %585 = vmatprep.subr.mxu0 0.0
    %586 = vmatpush1.msra.mxu0 0.0
    %587 = vmatprep.subr.mxu0 0.0
    %588 = vmatpush1.msra.mxu0 0.0
    %589 = vmatprep.subr.mxu0 0.0
    %590 = vmatpush1.msra.mxu0 0.0
    %591 = vmatprep.subr.mxu0 0.0
    %592 = vmatpush1.msra.mxu0 0.0
    %593 = vmatprep.subr.mxu0 0.0
    %594 = vmatpush1.msra.mxu0 0.0
    %595 = vmatprep.mubr.f32.mxu0 0.0
    %596 = vmatmul.mubr.f32.gmra.mrb[0].mxu0 %v354
    %v597 = vpop.f32.mrb[0].mxu0
    %v598 = vadd.f32 %v529, %v597
    %v599 = vpop.f32.mrb[0].mxu0
    %600 = vmatprep.mubr.f32.mxu0 0.0
    %601 = vmatmul.mubr.f32.gmra.mrb[0].mxu0 %v357
    %v602 = vpop.f32.mrb[0].mxu0
    %v603 = vadd.f32 %v529, %v602
    %v604 = vpop.f32.mrb[0].mxu0
    %605 = vdwg.mxu0
    %vm606 = vcmask 130048
    %v608 = vsel %vm606, %v426, 0
    %v611 = vsel %vm606, %v512, 0
    %613 = vmatprep.subr.mxu0 0.0
    %614 = vmatpush1.xpose.msra.mxu0 %v611
    %615 = vmatprep.subr.mxu0 0.0
    %616 = vmatpush1.xpose.msra.mxu0 0.0
    %617 = vmatprep.subr.mxu0 0.0
    %618 = vmatpush1.xpose.msra.mxu0 0.0
    %619 = vmatprep.subr.mxu0 0.0
    %620 = vmatpush1.xpose.msra.mxu0 0.0
    %621 = vmatprep.subr.mxu0 0.0
    %622 = vmatpush1.xpose.msra.mxu0 0.0
    %623 = vmatprep.subr.mxu0 0.0
    %624 = vmatpush1.xpose.msra.mxu0 0.0
    %625 = vmatprep.subr.mxu0 0.0
    %626 = vmatpush1.xpose.msra.mxu0 0.0
    %627 = vmatprep.subr.mxu0 0.0
    %628 = vmatpush1.xpose.msra.mxu0 0.0
    %629 = vmatprep.subr.mxu0 0.0
    %630 = vmatpush1.xpose.msra.mxu0 0.0
    %631 = vmatprep.subr.mxu0 0.0
    %632 = vmatpush1.xpose.msra.mxu0 0.0
    %633 = vmatprep.subr.mxu0 0.0
    %634 = vmatpush1.xpose.msra.mxu0 0.0
    %635 = vmatprep.subr.mxu0 0.0
    %636 = vmatpush1.xpose.msra.mxu0 0.0
    %637 = vmatprep.subr.mxu0 0.0
    %638 = vmatpush1.xpose.msra.mxu0 0.0
    %639 = vmatprep.subr.mxu0 0.0
    %640 = vmatpush1.xpose.msra.mxu0 0.0
    %641 = vmatprep.subr.mxu0 0.0
    %642 = vmatpush1.xpose.msra.mxu0 0.0
    %643 = vmatprep.subr.mxu0 0.0
    %644 = vmatpush1.xpose.msra.mxu0 0.0
    %645 = vmatprep.subr.mxu0 0.0
    %646 = vmatpush1.xpose.msra.mxu0 0.0
    %647 = vmatprep.subr.mxu0 0.0
    %648 = vmatpush1.xpose.msra.mxu0 0.0
    %649 = vmatprep.subr.mxu0 0.0
    %650 = vmatpush1.xpose.msra.mxu0 0.0
    %651 = vmatprep.subr.mxu0 0.0
    %652 = vmatpush1.xpose.msra.mxu0 0.0
    %653 = vmatprep.subr.mxu0 0.0
    %654 = vmatpush1.xpose.msra.mxu0 0.0
    %655 = vmatprep.subr.mxu0 0.0
    %656 = vmatpush1.xpose.msra.mxu0 0.0
    %657 = vmatprep.subr.mxu0 0.0
    %658 = vmatpush1.xpose.msra.mxu0 0.0
    %659 = vmatprep.subr.mxu0 0.0
    %660 = vmatpush1.xpose.msra.mxu0 0.0
    %661 = vmatprep.subr.mxu0 0.0
    %662 = vmatpush1.xpose.msra.mxu0 0.0
    %663 = vmatprep.subr.mxu0 0.0
    %664 = vmatpush1.xpose.msra.mxu0 0.0
    %665 = vmatprep.subr.mxu0 0.0
    %666 = vmatpush1.xpose.msra.mxu0 0.0
    %667 = vmatprep.subr.mxu0 0.0
    %668 = vmatpush1.xpose.msra.mxu0 0.0
    %669 = vmatprep.subr.mxu0 0.0
    %670 = vmatpush1.xpose.msra.mxu0 0.0
    %671 = vmatprep.subr.mxu0 0.0
    %672 = vmatpush1.xpose.msra.mxu0 0.0
    %673 = vmatprep.subr.mxu0 0.0
    %674 = vmatpush1.xpose.msra.mxu0 0.0
    %675 = vmatprep.subr.mxu0 0.0
    %676 = vmatpush1.xpose.msra.mxu0 0.0
    %677 = vmatprep.mubr.f32.mxu0 0.0
    %678 = vmatmul.mubr.f32.gmra.mrb[0].mxu0 %v608
    %v679 = vpop.f32.mrb[0].mxu0
    %v680 = vadd.f32 0.0, %v679
    %v681 = vpop.f32.mrb[0].mxu0
    %682 = vdwg.mxu0
    %v684 = vsel %vm606, %v431, 0
    %v687 = vsel %vm606, %v517, 0
    %689 = vmatprep.subr.mxu0 0.0
    %690 = vmatpush1.xpose.msra.mxu0 %v687
    %691 = vmatprep.subr.mxu0 0.0
    %692 = vmatpush1.xpose.msra.mxu0 0.0
    %693 = vmatprep.subr.mxu0 0.0
    %694 = vmatpush1.xpose.msra.mxu0 0.0
    %695 = vmatprep.subr.mxu0 0.0
    %696 = vmatpush1.xpose.msra.mxu0 0.0
    %697 = vmatprep.subr.mxu0 0.0
    %698 = vmatpush1.xpose.msra.mxu0 0.0
    %699 = vmatprep.subr.mxu0 0.0
    %700 = vmatpush1.xpose.msra.mxu0 0.0
    %701 = vmatprep.subr.mxu0 0.0
    %702 = vmatpush1.xpose.msra.mxu0 0.0
    %703 = vmatprep.subr.mxu0 0.0
    %704 = vmatpush1.xpose.msra.mxu0 0.0
    %705 = vmatprep.subr.mxu0 0.0
    %706 = vmatpush1.xpose.msra.mxu0 0.0
    %707 = vmatprep.subr.mxu0 0.0
    %708 = vmatpush1.xpose.msra.mxu0 0.0
    %709 = vmatprep.subr.mxu0 0.0
    %710 = vmatpush1.xpose.msra.mxu0 0.0
    %711 = vmatprep.subr.mxu0 0.0
    %712 = vmatpush1.xpose.msra.mxu0 0.0
    %713 = vmatprep.subr.mxu0 0.0
    %714 = vmatpush1.xpose.msra.mxu0 0.0
    %715 = vmatprep.subr.mxu0 0.0
    %716 = vmatpush1.xpose.msra.mxu0 0.0
    %717 = vmatprep.subr.mxu0 0.0
    %718 = vmatpush1.xpose.msra.mxu0 0.0
    %719 = vmatprep.subr.mxu0 0.0
    %720 = vmatpush1.xpose.msra.mxu0 0.0
    %721 = vmatprep.subr.mxu0 0.0
    %722 = vmatpush1.xpose.msra.mxu0 0.0
    %723 = vmatprep.subr.mxu0 0.0
    %724 = vmatpush1.xpose.msra.mxu0 0.0
    %725 = vmatprep.subr.mxu0 0.0
    %726 = vmatpush1.xpose.msra.mxu0 0.0
    %727 = vmatprep.subr.mxu0 0.0
    %728 = vmatpush1.xpose.msra.mxu0 0.0
    %729 = vmatprep.subr.mxu0 0.0
    %730 = vmatpush1.xpose.msra.mxu0 0.0
    %731 = vmatprep.subr.mxu0 0.0
    %732 = vmatpush1.xpose.msra.mxu0 0.0
    %733 = vmatprep.subr.mxu0 0.0
    %734 = vmatpush1.xpose.msra.mxu0 0.0
    %735 = vmatprep.subr.mxu0 0.0
    %736 = vmatpush1.xpose.msra.mxu0 0.0
    %737 = vmatprep.subr.mxu0 0.0
    %738 = vmatpush1.xpose.msra.mxu0 0.0
    %739 = vmatprep.subr.mxu0 0.0
    %740 = vmatpush1.xpose.msra.mxu0 0.0
    %741 = vmatprep.subr.mxu0 0.0
    %742 = vmatpush1.xpose.msra.mxu0 0.0
    %743 = vmatprep.subr.mxu0 0.0
    %744 = vmatpush1.xpose.msra.mxu0 0.0
    %745 = vmatprep.subr.mxu0 0.0
    %746 = vmatpush1.xpose.msra.mxu0 0.0
    %747 = vmatprep.subr.mxu0 0.0
    %748 = vmatpush1.xpose.msra.mxu0 0.0
    %749 = vmatprep.subr.mxu0 0.0
    %750 = vmatpush1.xpose.msra.mxu0 0.0
    %751 = vmatprep.subr.mxu0 0.0
    %752 = vmatpush1.xpose.msra.mxu0 0.0
    %753 = vmatprep.mubr.f32.mxu0 0.0
    %754 = vmatmul.mubr.f32.gmra.mrb[0].mxu0 %v684
    %v755 = vpop.f32.mrb[0].mxu0
    %v756 = vadd.f32 0.0, %v755
    %v757 = vpop.f32.mrb[0].mxu0
    %758 = vdwg.mxu0
    %v759 = vmul.f32 %v680, 0.25
    %v760 = vmul.f32 %v756, 0.25
    %v761 = vadd.f32 %v759, %v335
    %v762 = vadd.f32 %v760, %v339
    %vm763 = vcmask 64512
    %v764 = vsel %vm763, %v761, -inf
    %765 = vmax.xlane.f32.xlu0 %v764
    %v766 = vpop.xlane.xlu0 %765
    %v767 = vsel %vm763, %v762, -inf
    %768 = vmax.xlane.f32.xlu0 %v767
    %v769 = vpop.xlane.xlu0 %768
    %v770 = vsub.f32 %v761, %v766
    %v771 = vsub.f32 %v762, %v769
    %v772 = vmul.f32 %v770, 1.442695
    %v773 = vpow.pop %v772
    %v774 = vmul.f32 %v771, 1.442695
    %v775 = vpow.pop %v774
    %v776 = vsel %vm763, %v773, 0.0
    %777 = vadd.xlane.f32.xlu0 %v776
    %v778 = vpop.xlane.xlu0 %777
    %v779 = vsel %vm763, %v775, 0.0
    %780 = vadd.xlane.f32.xlu0 %v779
    %v781 = vpop.xlane.xlu0 %780
    %v782 = vrcp.pop %v778
    %v783 = vrcp.pop %v781
    %v784 = vmul.f32 %v773, %v782
    %v785 = vmul.f32 %v775, %v783
    %v787 = vsel %vm763, %v784, 0
    %789 = vmatprep.subr.mxu0 0.0
    %790 = vmatpush1.msra.mxu0 %v598
    %791 = vmatprep.subr.mxu0 0.0
    %792 = vmatpush1.msra.mxu0 0.0
    %793 = vmatprep.subr.mxu0 0.0
    %794 = vmatpush1.msra.mxu0 0.0
    %795 = vmatprep.subr.mxu0 0.0
    %796 = vmatpush1.msra.mxu0 0.0
    %797 = vmatprep.subr.mxu0 0.0
    %798 = vmatpush1.msra.mxu0 0.0
    %799 = vmatprep.subr.mxu0 0.0
    %800 = vmatpush1.msra.mxu0 0.0
    %801 = vmatprep.subr.mxu0 0.0
    %802 = vmatpush1.msra.mxu0 0.0
    %803 = vmatprep.subr.mxu0 0.0
    %804 = vmatpush1.msra.mxu0 0.0
    %805 = vmatprep.subr.mxu0 0.0
    %806 = vmatpush1.msra.mxu0 0.0
    %807 = vmatprep.subr.mxu0 0.0
    %808 = vmatpush1.msra.mxu0 0.0
    %809 = vmatprep.subr.mxu0 0.0
    %810 = vmatpush1.msra.mxu0 0.0
    %811 = vmatprep.subr.mxu0 0.0
    %812 = vmatpush1.msra.mxu0 0.0
    %813 = vmatprep.subr.mxu0 0.0
    %814 = vmatpush1.msra.mxu0 0.0
    %815 = vmatprep.subr.mxu0 0.0
    %816 = vmatpush1.msra.mxu0 0.0
    %817 = vmatprep.subr.mxu0 0.0
    %818 = vmatpush1.msra.mxu0 0.0
    %819 = vmatprep.subr.mxu0 0.0
    %820 = vmatpush1.msra.mxu0 0.0
    %821 = vmatprep.subr.mxu0 0.0
    %822 = vmatpush1.msra.mxu0 0.0
    %823 = vmatprep.subr.mxu0 0.0
    %824 = vmatpush1.msra.mxu0 0.0
    %825 = vmatprep.subr.mxu0 0.0
    %826 = vmatpush1.msra.mxu0 0.0
    %827 = vmatprep.subr.mxu0 0.0
    %828 = vmatpush1.msra.mxu0 0.0
    %829 = vmatprep.subr.mxu0 0.0
    %830 = vmatpush1.msra.mxu0 0.0
    %831 = vmatprep.subr.mxu0 0.0
    %832 = vmatpush1.msra.mxu0 0.0
    %833 = vmatprep.subr.mxu0 0.0
    %834 = vmatpush1.msra.mxu0 0.0
    %835 = vmatprep.subr.mxu0 0.0
    %836 = vmatpush1.msra.mxu0 0.0
    %837 = vmatprep.subr.mxu0 0.0
    %838 = vmatpush1.msra.mxu0 0.0
    %839 = vmatprep.subr.mxu0 0.0
    %840 = vmatpush1.msra.mxu0 0.0
    %841 = vmatprep.subr.mxu0 0.0
    %842 = vmatpush1.msra.mxu0 0.0
    %843 = vmatprep.subr.mxu0 0.0
    %844 = vmatpush1.msra.mxu0 0.0
    %845 = vmatprep.subr.mxu0 0.0
    %846 = vmatpush1.msra.mxu0 0.0
    %847 = vmatprep.subr.mxu0 0.0
    %848 = vmatpush1.msra.mxu0 0.0
    %849 = vmatprep.subr.mxu0 0.0
    %850 = vmatpush1.msra.mxu0 0.0
    %851 = vmatprep.subr.mxu0 0.0
    %852 = vmatpush1.msra.mxu0 0.0
    %853 = vmatprep.mubr.f32.mxu0 0.0
    %854 = vmatmul.mubr.f32.gmra.mrb[0].mxu0 %v787
    %v855 = vpop.f32.mrb[0].mxu0
    %v856 = vadd.f32 0.0, %v855
    %v857 = vpop.f32.mrb[0].mxu0
    %858 = vdwg.mxu0
    %v860 = vsel %vm763, %v785, 0
    %862 = vmatprep.subr.mxu0 0.0
    %863 = vmatpush1.msra.mxu0 %v603
    %864 = vmatprep.subr.mxu0 0.0
    %865 = vmatpush1.msra.mxu0 0.0
    %866 = vmatprep.subr.mxu0 0.0
    %867 = vmatpush1.msra.mxu0 0.0
    %868 = vmatprep.subr.mxu0 0.0
    %869 = vmatpush1.msra.mxu0 0.0
    %870 = vmatprep.subr.mxu0 0.0
    %871 = vmatpush1.msra.mxu0 0.0
    %872 = vmatprep.subr.mxu0 0.0
    %873 = vmatpush1.msra.mxu0 0.0
    %874 = vmatprep.subr.mxu0 0.0
    %875 = vmatpush1.msra.mxu0 0.0
    %876 = vmatprep.subr.mxu0 0.0
    %877 = vmatpush1.msra.mxu0 0.0
    %878 = vmatprep.subr.mxu0 0.0
    %879 = vmatpush1.msra.mxu0 0.0
    %880 = vmatprep.subr.mxu0 0.0
    %881 = vmatpush1.msra.mxu0 0.0
    %882 = vmatprep.subr.mxu0 0.0
    %883 = vmatpush1.msra.mxu0 0.0
    %884 = vmatprep.subr.mxu0 0.0
    %885 = vmatpush1.msra.mxu0 0.0
    %886 = vmatprep.subr.mxu0 0.0
    %887 = vmatpush1.msra.mxu0 0.0
    %888 = vmatprep.subr.mxu0 0.0
    %889 = vmatpush1.msra.mxu0 0.0
    %890 = vmatprep.subr.mxu0 0.0
    %891 = vmatpush1.msra.mxu0 0.0
    %892 = vmatprep.subr.mxu0 0.0
    %893 = vmatpush1.msra.mxu0 0.0
    %894 = vmatprep.subr.mxu0 0.0
    %895 = vmatpush1.msra.mxu0 0.0
    %896 = vmatprep.subr.mxu0 0.0
    %897 = vmatpush1.msra.mxu0 0.0
    %898 = vmatprep.subr.mxu0 0.0
    %899 = vmatpush1.msra.mxu0 0.0
    %900 = vmatprep.subr.mxu0 0.0
    %901 = vmatpush1.msra.mxu0 0.0
    %902 = vmatprep.subr.mxu0 0.0
    %903 = vmatpush1.msra.mxu0 0.0
    %904 = vmatprep.subr.mxu0 0.0
    %905 = vmatpush1.msra.mxu0 0.0
    %906 = vmatprep.subr.mxu0 0.0
    %907 = vmatpush1.msra.mxu0 0.0
    %908 = vmatprep.subr.mxu0 0.0
    %909 = vmatpush1.msra.mxu0 0.0
    %910 = vmatprep.subr.mxu0 0.0
    %911 = vmatpush1.msra.mxu0 0.0
    %912 = vmatprep.subr.mxu0 0.0
    %913 = vmatpush1.msra.mxu0 0.0
    %914 = vmatprep.subr.mxu0 0.0
    %915 = vmatpush1.msra.mxu0 0.0
    %916 = vmatprep.subr.mxu0 0.0
    %917 = vmatpush1.msra.mxu0 0.0
    %918 = vmatprep.subr.mxu0 0.0
    %919 = vmatpush1.msra.mxu0 0.0
    %920 = vmatprep.subr.mxu0 0.0
    %921 = vmatpush1.msra.mxu0 0.0
    %922 = vmatprep.subr.mxu0 0.0
    %923 = vmatpush1.msra.mxu0 0.0
    %924 = vmatprep.subr.mxu0 0.0
    %925 = vmatpush1.msra.mxu0 0.0
    %926 = vmatprep.mubr.f32.mxu0 0.0
    %927 = vmatmul.mubr.f32.gmra.mrb[0].mxu0 %v860
    %v928 = vpop.f32.mrb[0].mxu0
    %v929 = vadd.f32 0.0, %v928
    %v930 = vpop.f32.mrb[0].mxu0
    %931 = vdwg.mxu0
    %v932 = vld [vmem:[%s14] sm:$0xff]
    %v933 = vld [vmem:[%s14 + $0x8] sm:$0xff]
    %s934 = scalar_lea.vmem %s8, 32
    %v935 = vld [vmem:[%s934] sm:$0xff]
    %v936 = vld [vmem:[%s934 + $0x8] sm:$0xff]
    %v937 = vld [vmem:[%s934 + $0x10] sm:$0xff]
    %v938 = vld [vmem:[%s934 + $0x18] sm:$0xff]
    %s939 = scalar_lea.vmem %s9, 1
    %v940 = vld [vmem:[%s939] sm:$0x1]
    %v942 = vlaneseq
    %v943 = vshrl.u32 %v942, 7
    %v944 = vsub.s32 0, %v943
    %v945 = vrot.slane %v940, %v944
    %947 = vmatprep.subr.mxu0 0.0
    %948 = vmatpush1.msra.mxu0 %v935
    %949 = vmatprep.subr.mxu0 0.0
    %950 = vmatpush1.msra.mxu0 %v936
    %951 = vmatprep.subr.mxu0 0.0
    %952 = vmatpush1.msra.mxu0 %v937
    %953 = vmatprep.subr.mxu0 0.0
    %954 = vmatpush1.msra.mxu0 %v938
    %955 = vmatprep.subr.mxu0 0.0
    %956 = vmatpush1.msra.mxu0 0.0
    %957 = vmatprep.subr.mxu0 0.0
    %958 = vmatpush1.msra.mxu0 0.0
    %959 = vmatprep.subr.mxu0 0.0
    %960 = vmatpush1.msra.mxu0 0.0
    %961 = vmatprep.subr.mxu0 0.0
    %962 = vmatpush1.msra.mxu0 0.0
    %963 = vmatprep.subr.mxu0 0.0
    %964 = vmatpush1.msra.mxu0 0.0
    %965 = vmatprep.subr.mxu0 0.0
    %966 = vmatpush1.msra.mxu0 0.0
    %967 = vmatprep.subr.mxu0 0.0
    %968 = vmatpush1.msra.mxu0 0.0
    %969 = vmatprep.subr.mxu0 0.0
    %970 = vmatpush1.msra.mxu0 0.0
    %971 = vmatprep.subr.mxu0 0.0
    %972 = vmatpush1.msra.mxu0 0.0
    %973 = vmatprep.subr.mxu0 0.0
    %974 = vmatpush1.msra.mxu0 0.0
    %975 = vmatprep.subr.mxu0 0.0
    %976 = vmatpush1.msra.mxu0 0.0
    %977 = vmatprep.subr.mxu0 0.0
    %978 = vmatpush1.msra.mxu0 0.0
    %979 = vmatprep.subr.mxu0 0.0
    %980 = vmatpush1.msra.mxu0 0.0
    %981 = vmatprep.subr.mxu0 0.0
    %982 = vmatpush1.msra.mxu0 0.0
    %983 = vmatprep.subr.mxu0 0.0
    %984 = vmatpush1.msra.mxu0 0.0
    %985 = vmatprep.subr.mxu0 0.0
    %986 = vmatpush1.msra.mxu0 0.0
    %987 = vmatprep.subr.mxu0 0.0
    %988 = vmatpush1.msra.mxu0 0.0
    %989 = vmatprep.subr.mxu0 0.0
    %990 = vmatpush1.msra.mxu0 0.0
    %991 = vmatprep.subr.mxu0 0.0
    %992 = vmatpush1.msra.mxu0 0.0
    %993 = vmatprep.subr.mxu0 0.0
    %994 = vmatpush1.msra.mxu0 0.0
    %995 = vmatprep.subr.mxu0 0.0
    %996 = vmatpush1.msra.mxu0 0.0
    %997 = vmatprep.subr.mxu0 0.0
    %998 = vmatpush1.msra.mxu0 0.0
    %999 = vmatprep.subr.mxu0 0.0
    %1000 = vmatpush1.msra.mxu0 0.0
    %1001 = vmatprep.subr.mxu0 0.0
    %1002 = vmatpush1.msra.mxu0 0.0
    %1003 = vmatprep.subr.mxu0 0.0
    %1004 = vmatpush1.msra.mxu0 0.0
    %1005 = vmatprep.subr.mxu0 0.0
    %1006 = vmatpush1.msra.mxu0 0.0
    %1007 = vmatprep.subr.mxu0 0.0
    %1008 = vmatpush1.msra.mxu0 0.0
    %1009 = vmatprep.subr.mxu0 0.0
    %1010 = vmatpush1.msra.mxu0 0.0
    %1011 = vmatprep.mubr.f32.mxu0 0.0
    %1012 = vmatmul.mubr.f32.gmra.mrb[0].mxu0 %v354
    %v1013 = vpop.f32.mrb[0].mxu0
    %v1014 = vadd.f32 %v945, %v1013
    %v1015 = vpop.f32.mrb[0].mxu0
    %1016 = vmatprep.mubr.f32.mxu0 0.0
    %1017 = vmatmul.mubr.f32.gmra.mrb[0].mxu0 %v357
    %v1018 = vpop.f32.mrb[0].mxu0
    %v1019 = vadd.f32 %v945, %v1018
    %v1020 = vpop.f32.mrb[0].mxu0
    %1021 = vdwg.mxu0
    %s1022 = scalar_lea.vmem %s10, 32
    %v1023 = vld [vmem:[%s1022] sm:$0xff]
    %v1024 = vld [vmem:[%s1022 + $0x8] sm:$0xff]
    %v1025 = vld [vmem:[%s1022 + $0x10] sm:$0xff]
    %v1026 = vld [vmem:[%s1022 + $0x18] sm:$0xff]
    %s1027 = scalar_lea.vmem %s11, 1
    %v1028 = vld [vmem:[%s1027] sm:$0x1]
    %v1030 = vlaneseq
    %v1031 = vshrl.u32 %v1030, 7
    %v1032 = vsub.s32 0, %v1031
    %v1033 = vrot.slane %v1028, %v1032
    %1035 = vmatprep.subr.mxu0 0.0
    %1036 = vmatpush1.msra.mxu0 %v1023
    %1037 = vmatprep.subr.mxu0 0.0
    %1038 = vmatpush1.msra.mxu0 %v1024
    %1039 = vmatprep.subr.mxu0 0.0
    %1040 = vmatpush1.msra.mxu0 %v1025
    %1041 = vmatprep.subr.mxu0 0.0
    %1042 = vmatpush1.msra.mxu0 %v1026
    %1043 = vmatprep.subr.mxu0 0.0
    %1044 = vmatpush1.msra.mxu0 0.0
    %1045 = vmatprep.subr.mxu0 0.0
    %1046 = vmatpush1.msra.mxu0 0.0
    %1047 = vmatprep.subr.mxu0 0.0
    %1048 = vmatpush1.msra.mxu0 0.0
    %1049 = vmatprep.subr.mxu0 0.0
    %1050 = vmatpush1.msra.mxu0 0.0
    %1051 = vmatprep.subr.mxu0 0.0
    %1052 = vmatpush1.msra.mxu0 0.0
    %1053 = vmatprep.subr.mxu0 0.0
    %1054 = vmatpush1.msra.mxu0 0.0
    %1055 = vmatprep.subr.mxu0 0.0
    %1056 = vmatpush1.msra.mxu0 0.0
    %1057 = vmatprep.subr.mxu0 0.0
    %1058 = vmatpush1.msra.mxu0 0.0
    %1059 = vmatprep.subr.mxu0 0.0
    %1060 = vmatpush1.msra.mxu0 0.0
    %1061 = vmatprep.subr.mxu0 0.0
    %1062 = vmatpush1.msra.mxu0 0.0
    %1063 = vmatprep.subr.mxu0 0.0
    %1064 = vmatpush1.msra.mxu0 0.0
    %1065 = vmatprep.subr.mxu0 0.0
    %1066 = vmatpush1.msra.mxu0 0.0
    %1067 = vmatprep.subr.mxu0 0.0
    %1068 = vmatpush1.msra.mxu0 0.0
    %1069 = vmatprep.subr.mxu0 0.0
    %1070 = vmatpush1.msra.mxu0 0.0
    %1071 = vmatprep.subr.mxu0 0.0
    %1072 = vmatpush1.msra.mxu0 0.0
    %1073 = vmatprep.subr.mxu0 0.0
    %1074 = vmatpush1.msra.mxu0 0.0
    %1075 = vmatprep.subr.mxu0 0.0
    %1076 = vmatpush1.msra.mxu0 0.0
    %1077 = vmatprep.subr.mxu0 0.0
    %1078 = vmatpush1.msra.mxu0 0.0
    %1079 = vmatprep.subr.mxu0 0.0
    %1080 = vmatpush1.msra.mxu0 0.0
    %1081 = vmatprep.subr.mxu0 0.0
    %1082 = vmatpush1.msra.mxu0 0.0
    %1083 = vmatprep.subr.mxu0 0.0
    %1084 = vmatpush1.msra.mxu0 0.0
    %1085 = vmatprep.subr.mxu0 0.0
    %1086 = vmatpush1.msra.mxu0 0.0
    %1087 = vmatprep.subr.mxu0 0.0
    %1088 = vmatpush1.msra.mxu0 0.0
    %1089 = vmatprep.subr.mxu0 0.0
    %1090 = vmatpush1.msra.mxu0 0.0
    %1091 = vmatprep.subr.mxu0 0.0
    %1092 = vmatpush1.msra.mxu0 0.0
    %1093 = vmatprep.subr.mxu0 0.0
    %1094 = vmatpush1.msra.mxu0 0.0
    %1095 = vmatprep.subr.mxu0 0.0
    %1096 = vmatpush1.msra.mxu0 0.0
    %1097 = vmatprep.subr.mxu0 0.0
    %1098 = vmatpush1.msra.mxu0 0.0
    %1099 = vmatprep.mubr.f32.mxu0 0.0
    %1100 = vmatmul.mubr.f32.gmra.mrb[0].mxu0 %v354
    %v1101 = vpop.f32.mrb[0].mxu0
    %v1102 = vadd.f32 %v1033, %v1101
    %v1103 = vpop.f32.mrb[0].mxu0
    %1104 = vmatprep.mubr.f32.mxu0 0.0
    %1105 = vmatmul.mubr.f32.gmra.mrb[0].mxu0 %v357
    %v1106 = vpop.f32.mrb[0].mxu0
    %v1107 = vadd.f32 %v1033, %v1106
    %v1108 = vpop.f32.mrb[0].mxu0
    %1109 = vdwg.mxu0
    %s1110 = scalar_lea.vmem %s12, 32
    %v1111 = vld [vmem:[%s1110] sm:$0xff]
    %v1112 = vld [vmem:[%s1110 + $0x8] sm:$0xff]
    %v1113 = vld [vmem:[%s1110 + $0x10] sm:$0xff]
    %v1114 = vld [vmem:[%s1110 + $0x18] sm:$0xff]
    %s1115 = scalar_lea.vmem %s13, 1
    %v1116 = vld [vmem:[%s1115] sm:$0x1]
    %v1118 = vlaneseq
    %v1119 = vshrl.u32 %v1118, 7
    %v1120 = vsub.s32 0, %v1119
    %v1121 = vrot.slane %v1116, %v1120
    %1123 = vmatprep.subr.mxu0 0.0
    %1124 = vmatpush1.msra.mxu0 %v1111
    %1125 = vmatprep.subr.mxu0 0.0
    %1126 = vmatpush1.msra.mxu0 %v1112
    %1127 = vmatprep.subr.mxu0 0.0
    %1128 = vmatpush1.msra.mxu0 %v1113
    %1129 = vmatprep.subr.mxu0 0.0
    %1130 = vmatpush1.msra.mxu0 %v1114
    %1131 = vmatprep.subr.mxu0 0.0
    %1132 = vmatpush1.msra.mxu0 0.0
    %1133 = vmatprep.subr.mxu0 0.0
    %1134 = vmatpush1.msra.mxu0 0.0
    %1135 = vmatprep.subr.mxu0 0.0
    %1136 = vmatpush1.msra.mxu0 0.0
    %1137 = vmatprep.subr.mxu0 0.0
    %1138 = vmatpush1.msra.mxu0 0.0
    %1139 = vmatprep.subr.mxu0 0.0
    %1140 = vmatpush1.msra.mxu0 0.0
    %1141 = vmatprep.subr.mxu0 0.0
    %1142 = vmatpush1.msra.mxu0 0.0
    %1143 = vmatprep.subr.mxu0 0.0
    %1144 = vmatpush1.msra.mxu0 0.0
    %1145 = vmatprep.subr.mxu0 0.0
    %1146 = vmatpush1.msra.mxu0 0.0
    %1147 = vmatprep.subr.mxu0 0.0
    %1148 = vmatpush1.msra.mxu0 0.0
    %1149 = vmatprep.subr.mxu0 0.0
    %1150 = vmatpush1.msra.mxu0 0.0
    %1151 = vmatprep.subr.mxu0 0.0
    %1152 = vmatpush1.msra.mxu0 0.0
    %1153 = vmatprep.subr.mxu0 0.0
    %1154 = vmatpush1.msra.mxu0 0.0
    %1155 = vmatprep.subr.mxu0 0.0
    %1156 = vmatpush1.msra.mxu0 0.0
    %1157 = vmatprep.subr.mxu0 0.0
    %1158 = vmatpush1.msra.mxu0 0.0
    %1159 = vmatprep.subr.mxu0 0.0
    %1160 = vmatpush1.msra.mxu0 0.0
    %1161 = vmatprep.subr.mxu0 0.0
    %1162 = vmatpush1.msra.mxu0 0.0
    %1163 = vmatprep.subr.mxu0 0.0
    %1164 = vmatpush1.msra.mxu0 0.0
    %1165 = vmatprep.subr.mxu0 0.0
    %1166 = vmatpush1.msra.mxu0 0.0
    %1167 = vmatprep.subr.mxu0 0.0
    %1168 = vmatpush1.msra.mxu0 0.0
    %1169 = vmatprep.subr.mxu0 0.0
    %1170 = vmatpush1.msra.mxu0 0.0
    %1171 = vmatprep.subr.mxu0 0.0
    %1172 = vmatpush1.msra.mxu0 0.0
    %1173 = vmatprep.subr.mxu0 0.0
    %1174 = vmatpush1.msra.mxu0 0.0
    %1175 = vmatprep.subr.mxu0 0.0
    %1176 = vmatpush1.msra.mxu0 0.0
    %1177 = vmatprep.subr.mxu0 0.0
    %1178 = vmatpush1.msra.mxu0 0.0
    %1179 = vmatprep.subr.mxu0 0.0
    %1180 = vmatpush1.msra.mxu0 0.0
    %1181 = vmatprep.subr.mxu0 0.0
    %1182 = vmatpush1.msra.mxu0 0.0
    %1183 = vmatprep.subr.mxu0 0.0
    %1184 = vmatpush1.msra.mxu0 0.0
    %1185 = vmatprep.subr.mxu0 0.0
    %1186 = vmatpush1.msra.mxu0 0.0
    %1187 = vmatprep.mubr.f32.mxu0 0.0
    %1188 = vmatmul.mubr.f32.gmra.mrb[0].mxu0 %v354
    %v1189 = vpop.f32.mrb[0].mxu0
    %v1190 = vadd.f32 %v1121, %v1189
    %v1191 = vpop.f32.mrb[0].mxu0
    %1192 = vmatprep.mubr.f32.mxu0 0.0
    %1193 = vmatmul.mubr.f32.gmra.mrb[0].mxu0 %v357
    %v1194 = vpop.f32.mrb[0].mxu0
    %v1195 = vadd.f32 %v1121, %v1194
    %v1196 = vpop.f32.mrb[0].mxu0
    %1197 = vdwg.mxu0
    %v1199 = vsel %vm606, %v1014, 0
    %v1202 = vsel %vm606, %v1102, 0
    %1204 = vmatprep.subr.mxu0 0.0
    %1205 = vmatpush1.xpose.msra.mxu0 %v1202
    %1206 = vmatprep.subr.mxu0 0.0
    %1207 = vmatpush1.xpose.msra.mxu0 0.0
    %1208 = vmatprep.subr.mxu0 0.0
    %1209 = vmatpush1.xpose.msra.mxu0 0.0
    %1210 = vmatprep.subr.mxu0 0.0
    %1211 = vmatpush1.xpose.msra.mxu0 0.0
    %1212 = vmatprep.subr.mxu0 0.0
    %1213 = vmatpush1.xpose.msra.mxu0 0.0
    %1214 = vmatprep.subr.mxu0 0.0
    %1215 = vmatpush1.xpose.msra.mxu0 0.0
    %1216 = vmatprep.subr.mxu0 0.0
    %1217 = vmatpush1.xpose.msra.mxu0 0.0
    %1218 = vmatprep.subr.mxu0 0.0
    %1219 = vmatpush1.xpose.msra.mxu0 0.0
    %1220 = vmatprep.subr.mxu0 0.0
    %1221 = vmatpush1.xpose.msra.mxu0 0.0
    %1222 = vmatprep.subr.mxu0 0.0
    %1223 = vmatpush1.xpose.msra.mxu0 0.0
    %1224 = vmatprep.subr.mxu0 0.0
    %1225 = vmatpush1.xpose.msra.mxu0 0.0
    %1226 = vmatprep.subr.mxu0 0.0
    %1227 = vmatpush1.xpose.msra.mxu0 0.0
    %1228 = vmatprep.subr.mxu0 0.0
    %1229 = vmatpush1.xpose.msra.mxu0 0.0
    %1230 = vmatprep.subr.mxu0 0.0
    %1231 = vmatpush1.xpose.msra.mxu0 0.0
    %1232 = vmatprep.subr.mxu0 0.0
    %1233 = vmatpush1.xpose.msra.mxu0 0.0
    %1234 = vmatprep.subr.mxu0 0.0
    %1235 = vmatpush1.xpose.msra.mxu0 0.0
    %1236 = vmatprep.subr.mxu0 0.0
    %1237 = vmatpush1.xpose.msra.mxu0 0.0
    %1238 = vmatprep.subr.mxu0 0.0
    %1239 = vmatpush1.xpose.msra.mxu0 0.0
    %1240 = vmatprep.subr.mxu0 0.0
    %1241 = vmatpush1.xpose.msra.mxu0 0.0
    %1242 = vmatprep.subr.mxu0 0.0
    %1243 = vmatpush1.xpose.msra.mxu0 0.0
    %1244 = vmatprep.subr.mxu0 0.0
    %1245 = vmatpush1.xpose.msra.mxu0 0.0
    %1246 = vmatprep.subr.mxu0 0.0
    %1247 = vmatpush1.xpose.msra.mxu0 0.0
    %1248 = vmatprep.subr.mxu0 0.0
    %1249 = vmatpush1.xpose.msra.mxu0 0.0
    %1250 = vmatprep.subr.mxu0 0.0
    %1251 = vmatpush1.xpose.msra.mxu0 0.0
    %1252 = vmatprep.subr.mxu0 0.0
    %1253 = vmatpush1.xpose.msra.mxu0 0.0
    %1254 = vmatprep.subr.mxu0 0.0
    %1255 = vmatpush1.xpose.msra.mxu0 0.0
    %1256 = vmatprep.subr.mxu0 0.0
    %1257 = vmatpush1.xpose.msra.mxu0 0.0
    %1258 = vmatprep.subr.mxu0 0.0
    %1259 = vmatpush1.xpose.msra.mxu0 0.0
    %1260 = vmatprep.subr.mxu0 0.0
    %1261 = vmatpush1.xpose.msra.mxu0 0.0
    %1262 = vmatprep.subr.mxu0 0.0
    %1263 = vmatpush1.xpose.msra.mxu0 0.0
    %1264 = vmatprep.subr.mxu0 0.0
    %1265 = vmatpush1.xpose.msra.mxu0 0.0
    %1266 = vmatprep.subr.mxu0 0.0
    %1267 = vmatpush1.xpose.msra.mxu0 0.0
    %1268 = vmatprep.mubr.f32.mxu0 0.0
    %1269 = vmatmul.mubr.f32.gmra.mrb[0].mxu0 %v1199
    %v1270 = vpop.f32.mrb[0].mxu0
    %v1271 = vadd.f32 0.0, %v1270
    %v1272 = vpop.f32.mrb[0].mxu0
    %1273 = vdwg.mxu0
    %v1275 = vsel %vm606, %v1019, 0
    %v1278 = vsel %vm606, %v1107, 0
    %1280 = vmatprep.subr.mxu0 0.0
    %1281 = vmatpush1.xpose.msra.mxu0 %v1278
    %1282 = vmatprep.subr.mxu0 0.0
    %1283 = vmatpush1.xpose.msra.mxu0 0.0
    %1284 = vmatprep.subr.mxu0 0.0
    %1285 = vmatpush1.xpose.msra.mxu0 0.0
    %1286 = vmatprep.subr.mxu0 0.0
    %1287 = vmatpush1.xpose.msra.mxu0 0.0
    %1288 = vmatprep.subr.mxu0 0.0
    %1289 = vmatpush1.xpose.msra.mxu0 0.0
    %1290 = vmatprep.subr.mxu0 0.0
    %1291 = vmatpush1.xpose.msra.mxu0 0.0
    %1292 = vmatprep.subr.mxu0 0.0
    %1293 = vmatpush1.xpose.msra.mxu0 0.0
    %1294 = vmatprep.subr.mxu0 0.0
    %1295 = vmatpush1.xpose.msra.mxu0 0.0
    %1296 = vmatprep.subr.mxu0 0.0
    %1297 = vmatpush1.xpose.msra.mxu0 0.0
    %1298 = vmatprep.subr.mxu0 0.0
    %1299 = vmatpush1.xpose.msra.mxu0 0.0
    %1300 = vmatprep.subr.mxu0 0.0
    %1301 = vmatpush1.xpose.msra.mxu0 0.0
    %1302 = vmatprep.subr.mxu0 0.0
    %1303 = vmatpush1.xpose.msra.mxu0 0.0
    %1304 = vmatprep.subr.mxu0 0.0
    %1305 = vmatpush1.xpose.msra.mxu0 0.0
    %1306 = vmatprep.subr.mxu0 0.0
    %1307 = vmatpush1.xpose.msra.mxu0 0.0
    %1308 = vmatprep.subr.mxu0 0.0
    %1309 = vmatpush1.xpose.msra.mxu0 0.0
    %1310 = vmatprep.subr.mxu0 0.0
    %1311 = vmatpush1.xpose.msra.mxu0 0.0
    %1312 = vmatprep.subr.mxu0 0.0
    %1313 = vmatpush1.xpose.msra.mxu0 0.0
    %1314 = vmatprep.subr.mxu0 0.0
    %1315 = vmatpush1.xpose.msra.mxu0 0.0
    %1316 = vmatprep.subr.mxu0 0.0
    %1317 = vmatpush1.xpose.msra.mxu0 0.0
    %1318 = vmatprep.subr.mxu0 0.0
    %1319 = vmatpush1.xpose.msra.mxu0 0.0
    %1320 = vmatprep.subr.mxu0 0.0
    %1321 = vmatpush1.xpose.msra.mxu0 0.0
    %1322 = vmatprep.subr.mxu0 0.0
    %1323 = vmatpush1.xpose.msra.mxu0 0.0
    %1324 = vmatprep.subr.mxu0 0.0
    %1325 = vmatpush1.xpose.msra.mxu0 0.0
    %1326 = vmatprep.subr.mxu0 0.0
    %1327 = vmatpush1.xpose.msra.mxu0 0.0
    %1328 = vmatprep.subr.mxu0 0.0
    %1329 = vmatpush1.xpose.msra.mxu0 0.0
    %1330 = vmatprep.subr.mxu0 0.0
    %1331 = vmatpush1.xpose.msra.mxu0 0.0
    %1332 = vmatprep.subr.mxu0 0.0
    %1333 = vmatpush1.xpose.msra.mxu0 0.0
    %1334 = vmatprep.subr.mxu0 0.0
    %1335 = vmatpush1.xpose.msra.mxu0 0.0
    %1336 = vmatprep.subr.mxu0 0.0
    %1337 = vmatpush1.xpose.msra.mxu0 0.0
    %1338 = vmatprep.subr.mxu0 0.0
    %1339 = vmatpush1.xpose.msra.mxu0 0.0
    %1340 = vmatprep.subr.mxu0 0.0
    %1341 = vmatpush1.xpose.msra.mxu0 0.0
    %1342 = vmatprep.subr.mxu0 0.0
    %1343 = vmatpush1.xpose.msra.mxu0 0.0
    %1344 = vmatprep.mubr.f32.mxu0 0.0
    %1345 = vmatmul.mubr.f32.gmra.mrb[0].mxu0 %v1275
    %v1346 = vpop.f32.mrb[0].mxu0
    %v1347 = vadd.f32 0.0, %v1346
    %v1348 = vpop.f32.mrb[0].mxu0
    %1349 = vdwg.mxu0
    %v1350 = vmul.f32 %v1271, 0.25
    %v1351 = vmul.f32 %v1347, 0.25
    %v1352 = vadd.f32 %v1350, %v335
    %v1353 = vadd.f32 %v1351, %v339
    %v1354 = vsel %vm763, %v1352, -inf
    %1355 = vmax.xlane.f32.xlu0 %v1354
    %v1356 = vpop.xlane.xlu0 %1355
    %v1357 = vsel %vm763, %v1353, -inf
    %1358 = vmax.xlane.f32.xlu0 %v1357
    %v1359 = vpop.xlane.xlu0 %1358
    %v1360 = vsub.f32 %v1352, %v1356
    %v1361 = vsub.f32 %v1353, %v1359
    %v1362 = vmul.f32 %v1360, 1.442695
    %v1363 = vpow.pop %v1362
    %v1364 = vmul.f32 %v1361, 1.442695
    %v1365 = vpow.pop %v1364
    %v1366 = vsel %vm763, %v1363, 0.0
    %1367 = vadd.xlane.f32.xlu0 %v1366
    %v1368 = vpop.xlane.xlu0 %1367
    %v1369 = vsel %vm763, %v1365, 0.0
    %1370 = vadd.xlane.f32.xlu0 %v1369
    %v1371 = vpop.xlane.xlu0 %1370
    %v1372 = vrcp.pop %v1368
    %v1373 = vrcp.pop %v1371
    %v1374 = vmul.f32 %v1363, %v1372
    %v1375 = vmul.f32 %v1365, %v1373
    %v1377 = vsel %vm763, %v1374, 0
    %1379 = vmatprep.subr.mxu0 0.0
    %1380 = vmatpush1.msra.mxu0 %v1190
    %1381 = vmatprep.subr.mxu0 0.0
    %1382 = vmatpush1.msra.mxu0 0.0
    %1383 = vmatprep.subr.mxu0 0.0
    %1384 = vmatpush1.msra.mxu0 0.0
    %1385 = vmatprep.subr.mxu0 0.0
    %1386 = vmatpush1.msra.mxu0 0.0
    %1387 = vmatprep.subr.mxu0 0.0
    %1388 = vmatpush1.msra.mxu0 0.0
    %1389 = vmatprep.subr.mxu0 0.0
    %1390 = vmatpush1.msra.mxu0 0.0
    %1391 = vmatprep.subr.mxu0 0.0
    %1392 = vmatpush1.msra.mxu0 0.0
    %1393 = vmatprep.subr.mxu0 0.0
    %1394 = vmatpush1.msra.mxu0 0.0
    %1395 = vmatprep.subr.mxu0 0.0
    %1396 = vmatpush1.msra.mxu0 0.0
    %1397 = vmatprep.subr.mxu0 0.0
    %1398 = vmatpush1.msra.mxu0 0.0
    %1399 = vmatprep.subr.mxu0 0.0
    %1400 = vmatpush1.msra.mxu0 0.0
    %1401 = vmatprep.subr.mxu0 0.0
    %1402 = vmatpush1.msra.mxu0 0.0
    %1403 = vmatprep.subr.mxu0 0.0
    %1404 = vmatpush1.msra.mxu0 0.0
    %1405 = vmatprep.subr.mxu0 0.0
    %1406 = vmatpush1.msra.mxu0 0.0
    %1407 = vmatprep.subr.mxu0 0.0
    %1408 = vmatpush1.msra.mxu0 0.0
    %1409 = vmatprep.subr.mxu0 0.0
    %1410 = vmatpush1.msra.mxu0 0.0
    %1411 = vmatprep.subr.mxu0 0.0
    %1412 = vmatpush1.msra.mxu0 0.0
    %1413 = vmatprep.subr.mxu0 0.0
    %1414 = vmatpush1.msra.mxu0 0.0
    %1415 = vmatprep.subr.mxu0 0.0
    %1416 = vmatpush1.msra.mxu0 0.0
    %1417 = vmatprep.subr.mxu0 0.0
    %1418 = vmatpush1.msra.mxu0 0.0
    %1419 = vmatprep.subr.mxu0 0.0
    %1420 = vmatpush1.msra.mxu0 0.0
    %1421 = vmatprep.subr.mxu0 0.0
    %1422 = vmatpush1.msra.mxu0 0.0
    %1423 = vmatprep.subr.mxu0 0.0
    %1424 = vmatpush1.msra.mxu0 0.0
    %1425 = vmatprep.subr.mxu0 0.0
    %1426 = vmatpush1.msra.mxu0 0.0
    %1427 = vmatprep.subr.mxu0 0.0
    %1428 = vmatpush1.msra.mxu0 0.0
    %1429 = vmatprep.subr.mxu0 0.0
    %1430 = vmatpush1.msra.mxu0 0.0
    %1431 = vmatprep.subr.mxu0 0.0
    %1432 = vmatpush1.msra.mxu0 0.0
    %1433 = vmatprep.subr.mxu0 0.0
    %1434 = vmatpush1.msra.mxu0 0.0
    %1435 = vmatprep.subr.mxu0 0.0
    %1436 = vmatpush1.msra.mxu0 0.0
    %1437 = vmatprep.subr.mxu0 0.0
    %1438 = vmatpush1.msra.mxu0 0.0
    %1439 = vmatprep.subr.mxu0 0.0
    %1440 = vmatpush1.msra.mxu0 0.0
    %1441 = vmatprep.subr.mxu0 0.0
    %1442 = vmatpush1.msra.mxu0 0.0
    %1443 = vmatprep.mubr.f32.mxu0 0.0
    %1444 = vmatmul.mubr.f32.gmra.mrb[0].mxu0 %v1377
    %v1445 = vpop.f32.mrb[0].mxu0
    %v1446 = vadd.f32 0.0, %v1445
    %v1447 = vpop.f32.mrb[0].mxu0
    %1448 = vdwg.mxu0
    %v1450 = vsel %vm763, %v1375, 0
    %1452 = vmatprep.subr.mxu0 0.0
    %1453 = vmatpush1.msra.mxu0 %v1195
    %1454 = vmatprep.subr.mxu0 0.0
    %1455 = vmatpush1.msra.mxu0 0.0
    %1456 = vmatprep.subr.mxu0 0.0
    %1457 = vmatpush1.msra.mxu0 0.0
    %1458 = vmatprep.subr.mxu0 0.0
    %1459 = vmatpush1.msra.mxu0 0.0
    %1460 = vmatprep.subr.mxu0 0.0
    %1461 = vmatpush1.msra.mxu0 0.0
    %1462 = vmatprep.subr.mxu0 0.0
    %1463 = vmatpush1.msra.mxu0 0.0
    %1464 = vmatprep.subr.mxu0 0.0
    %1465 = vmatpush1.msra.mxu0 0.0
    %1466 = vmatprep.subr.mxu0 0.0
    %1467 = vmatpush1.msra.mxu0 0.0
    %1468 = vmatprep.subr.mxu0 0.0
    %1469 = vmatpush1.msra.mxu0 0.0
    %1470 = vmatprep.subr.mxu0 0.0
    %1471 = vmatpush1.msra.mxu0 0.0
    %1472 = vmatprep.subr.mxu0 0.0
    %1473 = vmatpush1.msra.mxu0 0.0
    %1474 = vmatprep.subr.mxu0 0.0
    %1475 = vmatpush1.msra.mxu0 0.0
    %1476 = vmatprep.subr.mxu0 0.0
    %1477 = vmatpush1.msra.mxu0 0.0
    %1478 = vmatprep.subr.mxu0 0.0
    %1479 = vmatpush1.msra.mxu0 0.0
    %1480 = vmatprep.subr.mxu0 0.0
    %1481 = vmatpush1.msra.mxu0 0.0
    %1482 = vmatprep.subr.mxu0 0.0
    %1483 = vmatpush1.msra.mxu0 0.0
    %1484 = vmatprep.subr.mxu0 0.0
    %1485 = vmatpush1.msra.mxu0 0.0
    %1486 = vmatprep.subr.mxu0 0.0
    %1487 = vmatpush1.msra.mxu0 0.0
    %1488 = vmatprep.subr.mxu0 0.0
    %1489 = vmatpush1.msra.mxu0 0.0
    %1490 = vmatprep.subr.mxu0 0.0
    %1491 = vmatpush1.msra.mxu0 0.0
    %1492 = vmatprep.subr.mxu0 0.0
    %1493 = vmatpush1.msra.mxu0 0.0
    %1494 = vmatprep.subr.mxu0 0.0
    %1495 = vmatpush1.msra.mxu0 0.0
    %1496 = vmatprep.subr.mxu0 0.0
    %1497 = vmatpush1.msra.mxu0 0.0
    %1498 = vmatprep.subr.mxu0 0.0
    %1499 = vmatpush1.msra.mxu0 0.0
    %1500 = vmatprep.subr.mxu0 0.0
    %1501 = vmatpush1.msra.mxu0 0.0
    %1502 = vmatprep.subr.mxu0 0.0
    %1503 = vmatpush1.msra.mxu0 0.0
    %1504 = vmatprep.subr.mxu0 0.0
    %1505 = vmatpush1.msra.mxu0 0.0
    %1506 = vmatprep.subr.mxu0 0.0
    %1507 = vmatpush1.msra.mxu0 0.0
    %1508 = vmatprep.subr.mxu0 0.0
    %1509 = vmatpush1.msra.mxu0 0.0
    %1510 = vmatprep.subr.mxu0 0.0
    %1511 = vmatpush1.msra.mxu0 0.0
    %1512 = vmatprep.subr.mxu0 0.0
    %1513 = vmatpush1.msra.mxu0 0.0
    %1514 = vmatprep.subr.mxu0 0.0
    %1515 = vmatpush1.msra.mxu0 0.0
    %1516 = vmatprep.mubr.f32.mxu0 0.0
    %1517 = vmatmul.mubr.f32.gmra.mrb[0].mxu0 %v1450
    %v1518 = vpop.f32.mrb[0].mxu0
    %v1519 = vadd.f32 0.0, %v1518
    %v1520 = vpop.f32.mrb[0].mxu0
    %1521 = vdwg.mxu0
    %s1522 = scalar_lea.vmem %s14, 16
    %v1523 = vld [vmem:[%s1522] sm:$0xff]
    %v1524 = vld [vmem:[%s1522 + $0x8] sm:$0xff]
    %v1526 = vsel %vm606, %v1446, 0
    %v1529 = vsel %vm606, %v1519, 0
    %1531 = vmatprep.subr.mxu0 0.0
    %1532 = vmatpush1.msra.mxu0 %v1523
    %1533 = vmatprep.subr.mxu0 0.0
    %1534 = vmatpush1.msra.mxu0 %v1524
    %1535 = vmatprep.subr.mxu0 0.0
    %1536 = vmatpush1.msra.mxu0 0.0
    %1537 = vmatprep.subr.mxu0 0.0
    %1538 = vmatpush1.msra.mxu0 0.0
    %1539 = vmatprep.subr.mxu0 0.0
    %1540 = vmatpush1.msra.mxu0 0.0
    %1541 = vmatprep.subr.mxu0 0.0
    %1542 = vmatpush1.msra.mxu0 0.0
    %1543 = vmatprep.subr.mxu0 0.0
    %1544 = vmatpush1.msra.mxu0 0.0
    %1545 = vmatprep.subr.mxu0 0.0
    %1546 = vmatpush1.msra.mxu0 0.0
    %1547 = vmatprep.subr.mxu0 0.0
    %1548 = vmatpush1.msra.mxu0 0.0
    %1549 = vmatprep.subr.mxu0 0.0
    %1550 = vmatpush1.msra.mxu0 0.0
    %1551 = vmatprep.subr.mxu0 0.0
    %1552 = vmatpush1.msra.mxu0 0.0
    %1553 = vmatprep.subr.mxu0 0.0
    %1554 = vmatpush1.msra.mxu0 0.0
    %1555 = vmatprep.subr.mxu0 0.0
    %1556 = vmatpush1.msra.mxu0 0.0
    %1557 = vmatprep.subr.mxu0 0.0
    %1558 = vmatpush1.msra.mxu0 0.0
    %1559 = vmatprep.subr.mxu0 0.0
    %1560 = vmatpush1.msra.mxu0 0.0
    %1561 = vmatprep.subr.mxu0 0.0
    %1562 = vmatpush1.msra.mxu0 0.0
    %1563 = vmatprep.subr.mxu0 0.0
    %1564 = vmatpush1.msra.mxu0 0.0
    %1565 = vmatprep.subr.mxu0 0.0
    %1566 = vmatpush1.msra.mxu0 0.0
    %1567 = vmatprep.subr.mxu0 0.0
    %1568 = vmatpush1.msra.mxu0 0.0
    %1569 = vmatprep.subr.mxu0 0.0
    %1570 = vmatpush1.msra.mxu0 0.0
    %1571 = vmatprep.subr.mxu0 0.0
    %1572 = vmatpush1.msra.mxu0 0.0
    %1573 = vmatprep.subr.mxu0 0.0
    %1574 = vmatpush1.msra.mxu0 0.0
    %1575 = vmatprep.subr.mxu0 0.0
    %1576 = vmatpush1.msra.mxu0 0.0
    %1577 = vmatprep.subr.mxu0 0.0
    %1578 = vmatpush1.msra.mxu0 0.0
    %1579 = vmatprep.subr.mxu0 0.0
    %1580 = vmatpush1.msra.mxu0 0.0
    %1581 = vmatprep.subr.mxu0 0.0
    %1582 = vmatpush1.msra.mxu0 0.0
    %1583 = vmatprep.subr.mxu0 0.0
    %1584 = vmatpush1.msra.mxu0 0.0
    %1585 = vmatprep.subr.mxu0 0.0
    %1586 = vmatpush1.msra.mxu0 0.0
    %1587 = vmatprep.subr.mxu0 0.0
    %1588 = vmatpush1.msra.mxu0 0.0
    %1589 = vmatprep.subr.mxu0 0.0
    %1590 = vmatpush1.msra.mxu0 0.0
    %1591 = vmatprep.subr.mxu0 0.0
    %1592 = vmatpush1.msra.mxu0 0.0
    %1593 = vmatprep.subr.mxu0 0.0
    %1594 = vmatpush1.msra.mxu0 0.0
    %1595 = vmatprep.mubr.f32.mxu0 0.0
    %1596 = vmatmul.mubr.f32.gmra.mrb[0].mxu0 %v1526
    %v1597 = vpop.f32.mrb[0].mxu0
    %v1598 = vadd.f32 0.0, %v1597
    %v1599 = vpop.f32.mrb[0].mxu0
    %1600 = vmatprep.mubr.f32.mxu0 0.0
    %1601 = vmatmul.mubr.f32.gmra.mrb[0].mxu0 %v1529
    %v1602 = vpop.f32.mrb[0].mxu0
    %v1603 = vadd.f32 0.0, %v1602
    %v1604 = vpop.f32.mrb[0].mxu0
    %1605 = vdwg.mxu0
    %v1607 = vsel %vm606, %v856, 0
    %v1610 = vsel %vm606, %v929, 0
    %1612 = vmatprep.subr.mxu0 0.0
    %1613 = vmatpush1.msra.mxu0 %v932
    %1614 = vmatprep.subr.mxu0 0.0
    %1615 = vmatpush1.msra.mxu0 %v933
    %1616 = vmatprep.subr.mxu0 0.0
    %1617 = vmatpush1.msra.mxu0 0.0
    %1618 = vmatprep.subr.mxu0 0.0
    %1619 = vmatpush1.msra.mxu0 0.0
    %1620 = vmatprep.subr.mxu0 0.0
    %1621 = vmatpush1.msra.mxu0 0.0
    %1622 = vmatprep.subr.mxu0 0.0
    %1623 = vmatpush1.msra.mxu0 0.0
    %1624 = vmatprep.subr.mxu0 0.0
    %1625 = vmatpush1.msra.mxu0 0.0
    %1626 = vmatprep.subr.mxu0 0.0
    %1627 = vmatpush1.msra.mxu0 0.0
    %1628 = vmatprep.subr.mxu0 0.0
    %1629 = vmatpush1.msra.mxu0 0.0
    %1630 = vmatprep.subr.mxu0 0.0
    %1631 = vmatpush1.msra.mxu0 0.0
    %1632 = vmatprep.subr.mxu0 0.0
    %1633 = vmatpush1.msra.mxu0 0.0
    %1634 = vmatprep.subr.mxu0 0.0
    %1635 = vmatpush1.msra.mxu0 0.0
    %1636 = vmatprep.subr.mxu0 0.0
    %1637 = vmatpush1.msra.mxu0 0.0
    %1638 = vmatprep.subr.mxu0 0.0
    %1639 = vmatpush1.msra.mxu0 0.0
    %1640 = vmatprep.subr.mxu0 0.0
    %1641 = vmatpush1.msra.mxu0 0.0
    %1642 = vmatprep.subr.mxu0 0.0
    %1643 = vmatpush1.msra.mxu0 0.0
    %1644 = vmatprep.subr.mxu0 0.0
    %1645 = vmatpush1.msra.mxu0 0.0
    %1646 = vmatprep.subr.mxu0 0.0
    %1647 = vmatpush1.msra.mxu0 0.0
    %1648 = vmatprep.subr.mxu0 0.0
    %1649 = vmatpush1.msra.mxu0 0.0
    %1650 = vmatprep.subr.mxu0 0.0
    %1651 = vmatpush1.msra.mxu0 0.0
    %1652 = vmatprep.subr.mxu0 0.0
    %1653 = vmatpush1.msra.mxu0 0.0
    %1654 = vmatprep.subr.mxu0 0.0
    %1655 = vmatpush1.msra.mxu0 0.0
    %1656 = vmatprep.subr.mxu0 0.0
    %1657 = vmatpush1.msra.mxu0 0.0
    %1658 = vmatprep.subr.mxu0 0.0
    %1659 = vmatpush1.msra.mxu0 0.0
    %1660 = vmatprep.subr.mxu0 0.0
    %1661 = vmatpush1.msra.mxu0 0.0
    %1662 = vmatprep.subr.mxu0 0.0
    %1663 = vmatpush1.msra.mxu0 0.0
    %1664 = vmatprep.subr.mxu0 0.0
    %1665 = vmatpush1.msra.mxu0 0.0
    %1666 = vmatprep.subr.mxu0 0.0
    %1667 = vmatpush1.msra.mxu0 0.0
    %1668 = vmatprep.subr.mxu0 0.0
    %1669 = vmatpush1.msra.mxu0 0.0
    %1670 = vmatprep.subr.mxu0 0.0
    %1671 = vmatpush1.msra.mxu0 0.0
    %1672 = vmatprep.subr.mxu0 0.0
    %1673 = vmatpush1.msra.mxu0 0.0
    %1674 = vmatprep.subr.mxu0 0.0
    %1675 = vmatpush1.msra.mxu0 0.0
    %1676 = vmatprep.mubr.f32.mxu0 0.0
    %1677 = vmatmul.mubr.f32.gmra.mrb[0].mxu0 %v1607
    %v1678 = vpop.f32.mrb[0].mxu0
    %v1679 = vadd.f32 %v1598, %v1678
    %v1680 = vpop.f32.mrb[0].mxu0
    %1681 = vmatprep.mubr.f32.mxu0 0.0
    %1682 = vmatmul.mubr.f32.gmra.mrb[0].mxu0 %v1610
    %v1683 = vpop.f32.mrb[0].mxu0
    %v1684 = vadd.f32 %v1603, %v1683
    %v1685 = vpop.f32.mrb[0].mxu0
    %1686 = vdwg.mxu0
    %v1687 = vld [vmem:[%s15] sm:$0x1]
    %v1689 = vlaneseq
    %v1690 = vshrl.u32 %v1689, 7
    %v1691 = vsub.s32 0, %v1690
    %v1692 = vrot.slane %v1687, %v1691
    %v1694 = vadd.f32 %v1679, %v1692
    %v1695 = vadd.f32 %v1684, %v1692
    %v1696 = vadd.f32 %v1694, %v303
    %v1697 = vadd.f32 %v1695, %v304
    %v1698 = vld [vmem:[%s16] sm:$0x1]
    %v1699 = vld [vmem:[%s17] sm:$0x1]
    %v1700 = vsel %vm261, %v1696, 0.0
    %1701 = vadd.xlane.f32.xlu0 %v1700
    %v1702 = vpop.xlane.xlu0 %1701
    %v1703 = vsel %vm261, %v1697, 0.0
    %1704 = vadd.xlane.f32.xlu0 %v1703
    %v1705 = vpop.xlane.xlu0 %1704
    %v1706 = vmul.f32 %v1702, %v268
    %v1707 = vmul.f32 %v1705, %v268
    %v1708 = vsub.f32 %v1696, %v1706
    %v1709 = vsub.f32 %v1697, %v1707
    %v1710 = vmul.f32 %v1708, %v1708
    %v1711 = vmul.f32 %v1709, %v1709
    %v1712 = vsel %vm261, %v1710, 0.0
    %1713 = vadd.xlane.f32.xlu0 %v1712
    %v1714 = vpop.xlane.xlu0 %1713
    %v1715 = vsel %vm261, %v1711, 0.0
    %1716 = vadd.xlane.f32.xlu0 %v1715
    %v1717 = vpop.xlane.xlu0 %1716
    %v1718 = vmul.f32 %v1714, %v268
    %v1719 = vmul.f32 %v1717, %v268
    %v1720 = vadd.f32 %v1718, 1e-12
    %v1721 = vadd.f32 %v1719, 1e-12
    %v1722 = vrsqrt.pop %v1720
    %v1723 = vrsqrt.pop %v1721
    %v1724 = vmul.f32 %v1708, %v1722
    %v1725 = vmul.f32 %v1709, %v1723
    %v1727 = vlaneseq
    %v1728 = vshrl.u32 %v1727, 7
    %v1729 = vsub.s32 0, %v1728
    %v1730 = vrot.slane %v1698, %v1729
    %v1732 = vmul.f32 %v1724, %v1730
    %v1733 = vmul.f32 %v1725, %v1730
    %v1735 = vlaneseq
    %v1736 = vshrl.u32 %v1735, 7
    %v1737 = vsub.s32 0, %v1736
    %v1738 = vrot.slane %v1699, %v1737
    %v1740 = vadd.f32 %v1732, %v1738
    %v1741 = vadd.f32 %v1733, %v1738
    %v1742 = vld [vmem:[%s18] sm:$0xff]
    %v1743 = vld [vmem:[%s18 + $0x8] sm:$0xff]
    %v1744 = vld [vmem:[%s18 + $0x10] sm:$0xff]
    %v1745 = vld [vmem:[%s18 + $0x18] sm:$0xff]
    %v1746 = vld [vmem:[%s19] sm:$0x1]
    %v1748 = vlaneseq
    %v1749 = vshrl.u32 %v1748, 7
    %v1750 = vsub.s32 0, %v1749
    %v1751 = vrot.slane %v1746, %v1750
    %v1754 = vsel %vm261, %v1740, 0
    %v1757 = vsel %vm261, %v1741, 0
    %1759 = vmatprep.subr.mxu0 0.0
    %1760 = vmatpush1.msra.mxu0 %v1742
    %1761 = vmatprep.subr.mxu0 0.0
    %1762 = vmatpush1.msra.mxu0 %v1743
    %1763 = vmatprep.subr.mxu0 0.0
    %1764 = vmatpush1.msra.mxu0 %v1744
    %1765 = vmatprep.subr.mxu0 0.0
    %1766 = vmatpush1.msra.mxu0 %v1745
    %1767 = vmatprep.subr.mxu0 0.0
    %1768 = vmatpush1.msra.mxu0 0.0
    %1769 = vmatprep.subr.mxu0 0.0
    %1770 = vmatpush1.msra.mxu0 0.0
    %1771 = vmatprep.subr.mxu0 0.0
    %1772 = vmatpush1.msra.mxu0 0.0
    %1773 = vmatprep.subr.mxu0 0.0
    %1774 = vmatpush1.msra.mxu0 0.0
    %1775 = vmatprep.subr.mxu0 0.0
    %1776 = vmatpush1.msra.mxu0 0.0
    %1777 = vmatprep.subr.mxu0 0.0
    %1778 = vmatpush1.msra.mxu0 0.0
    %1779 = vmatprep.subr.mxu0 0.0
    %1780 = vmatpush1.msra.mxu0 0.0
    %1781 = vmatprep.subr.mxu0 0.0
    %1782 = vmatpush1.msra.mxu0 0.0
    %1783 = vmatprep.subr.mxu0 0.0
    %1784 = vmatpush1.msra.mxu0 0.0
    %1785 = vmatprep.subr.mxu0 0.0
    %1786 = vmatpush1.msra.mxu0 0.0
    %1787 = vmatprep.subr.mxu0 0.0
    %1788 = vmatpush1.msra.mxu0 0.0
    %1789 = vmatprep.subr.mxu0 0.0
    %1790 = vmatpush1.msra.mxu0 0.0
    %1791 = vmatprep.subr.mxu0 0.0
    %1792 = vmatpush1.msra.mxu0 0.0
    %1793 = vmatprep.subr.mxu0 0.0
    %1794 = vmatpush1.msra.mxu0 0.0
    %1795 = vmatprep.subr.mxu0 0.0
    %1796 = vmatpush1.msra.mxu0 0.0
    %1797 = vmatprep.subr.mxu0 0.0
    %1798 = vmatpush1.msra.mxu0 0.0
    %1799 = vmatprep.subr.mxu0 0.0
    %1800 = vmatpush1.msra.mxu0 0.0
    %1801 = vmatprep.subr.mxu0 0.0
    %1802 = vmatpush1.msra.mxu0 0.0
    %1803 = vmatprep.subr.mxu0 0.0
    %1804 = vmatpush1.msra.mxu0 0.0
    %1805 = vmatprep.subr.mxu0 0.0
    %1806 = vmatpush1.msra.mxu0 0.0
    %1807 = vmatprep.subr.mxu0 0.0
    %1808 = vmatpush1.msra.mxu0 0.0
    %1809 = vmatprep.subr.mxu0 0.0
    %1810 = vmatpush1.msra.mxu0 0.0
    %1811 = vmatprep.subr.mxu0 0.0
    %1812 = vmatpush1.msra.mxu0 0.0
    %1813 = vmatprep.subr.mxu0 0.0
    %1814 = vmatpush1.msra.mxu0 0.0
    %1815 = vmatprep.subr.mxu0 0.0
    %1816 = vmatpush1.msra.mxu0 0.0
    %1817 = vmatprep.subr.mxu0 0.0
    %1818 = vmatpush1.msra.mxu0 0.0
    %1819 = vmatprep.subr.mxu0 0.0
    %1820 = vmatpush1.msra.mxu0 0.0
    %1821 = vmatprep.subr.mxu0 0.0
    %1822 = vmatpush1.msra.mxu0 0.0
    %1823 = vmatprep.mubr.f32.mxu0 0.0
    %1824 = vmatmul.mubr.f32.gmra.mrb[0].mxu0 %v1754
    %v1825 = vpop.f32.mrb[0].mxu0
    %v1826 = vadd.f32 %v1751, %v1825
    %v1827 = vpop.f32.mrb[0].mxu0
    %1828 = vmatprep.mubr.f32.mxu0 0.0
    %1829 = vmatmul.mubr.f32.gmra.mrb[0].mxu0 %v1757
    %v1830 = vpop.f32.mrb[0].mxu0
    %v1831 = vadd.f32 %v1751, %v1830
    %v1832 = vpop.f32.mrb[0].mxu0
    %1833 = vdwg.mxu0
    %v1834 = vmul.f32 %v1826, 0.5
    %v1835 = vmul.f32 %v1831, 0.5
    %v1836 = vrcp.pop 1.4142135
    %v1837 = vmul.f32 %v1826, %v1836
    %v1838 = vmul.f32 %v1831, %v1836
    %v1839 = verf.f32.pop %v1837
    %v1840 = verf.f32.pop %v1838
    %v1841 = vadd.f32 %v1839, 1.0
    %v1842 = vadd.f32 %v1840, 1.0
    %v1843 = vmul.f32 %v1834, %v1841
    %v1844 = vmul.f32 %v1835, %v1842
    %v1845 = vld [vmem:[%s20] sm:$0xff]
    %v1846 = vld [vmem:[%s20 + $0x8] sm:$0xff]
    %v1847 = vld [vmem:[%s20 + $0x10] sm:$0xff]
    %v1848 = vld [vmem:[%s20 + $0x18] sm:$0xff]
    %v1849 = vld [vmem:[%s20 + $0x20] sm:$0xff]
    %v1850 = vld [vmem:[%s20 + $0x28] sm:$0xff]
    %v1851 = vld [vmem:[%s20 + $0x30] sm:$0xff]
    %v1852 = vld [vmem:[%s20 + $0x38] sm:$0xff]
    %v1853 = vld [vmem:[%s21] sm:$0x1]
    %v1855 = vlaneseq
    %v1856 = vshrl.u32 %v1855, 7
    %v1857 = vsub.s32 0, %v1856
    %v1858 = vrot.slane %v1853, %v1857
    %vm1860 = vcmask 523264
    %v1862 = vsel %vm1860, %v1843, 0
    %v1865 = vsel %vm1860, %v1844, 0
    %1867 = vmatprep.subr.mxu0 0.0
    %1868 = vmatpush1.msra.mxu0 %v1845
    %1869 = vmatprep.subr.mxu0 0.0
    %1870 = vmatpush1.msra.mxu0 %v1846
    %1871 = vmatprep.subr.mxu0 0.0
    %1872 = vmatpush1.msra.mxu0 %v1847
    %1873 = vmatprep.subr.mxu0 0.0
    %1874 = vmatpush1.msra.mxu0 %v1848
    %1875 = vmatprep.subr.mxu0 0.0
    %1876 = vmatpush1.msra.mxu0 %v1849
    %1877 = vmatprep.subr.mxu0 0.0
    %1878 = vmatpush1.msra.mxu0 %v1850
    %1879 = vmatprep.subr.mxu0 0.0
    %1880 = vmatpush1.msra.mxu0 %v1851
    %1881 = vmatprep.subr.mxu0 0.0
    %1882 = vmatpush1.msra.mxu0 %v1852
    %1883 = vmatprep.subr.mxu0 0.0
    %1884 = vmatpush1.msra.mxu0 0.0
    %1885 = vmatprep.subr.mxu0 0.0
    %1886 = vmatpush1.msra.mxu0 0.0
    %1887 = vmatprep.subr.mxu0 0.0
    %1888 = vmatpush1.msra.mxu0 0.0
    %1889 = vmatprep.subr.mxu0 0.0
    %1890 = vmatpush1.msra.mxu0 0.0
    %1891 = vmatprep.subr.mxu0 0.0
    %1892 = vmatpush1.msra.mxu0 0.0
    %1893 = vmatprep.subr.mxu0 0.0
    %1894 = vmatpush1.msra.mxu0 0.0
    %1895 = vmatprep.subr.mxu0 0.0
    %1896 = vmatpush1.msra.mxu0 0.0
    %1897 = vmatprep.subr.mxu0 0.0
    %1898 = vmatpush1.msra.mxu0 0.0
    %1899 = vmatprep.subr.mxu0 0.0
    %1900 = vmatpush1.msra.mxu0 0.0
    %1901 = vmatprep.subr.mxu0 0.0
    %1902 = vmatpush1.msra.mxu0 0.0
    %1903 = vmatprep.subr.mxu0 0.0
    %1904 = vmatpush1.msra.mxu0 0.0
    %1905 = vmatprep.subr.mxu0 0.0
    %1906 = vmatpush1.msra.mxu0 0.0
    %1907 = vmatprep.subr.mxu0 0.0
    %1908 = vmatpush1.msra.mxu0 0.0
    %1909 = vmatprep.subr.mxu0 0.0
    %1910 = vmatpush1.msra.mxu0 0.0
    %1911 = vmatprep.subr.mxu0 0.0
    %1912 = vmatpush1.msra.mxu0 0.0
    %1913 = vmatprep.subr.mxu0 0.0
    %1914 = vmatpush1.msra.mxu0 0.0
    %1915 = vmatprep.subr.mxu0 0.0
    %1916 = vmatpush1.msra.mxu0 0.0
    %1917 = vmatprep.subr.mxu0 0.0
    %1918 = vmatpush1.msra.mxu0 0.0
    %1919 = vmatprep.subr.mxu0 0.0
    %1920 = vmatpush1.msra.mxu0 0.0
    %1921 = vmatprep.subr.mxu0 0.0
    %1922 = vmatpush1.msra.mxu0 0.0
    %1923 = vmatprep.subr.mxu0 0.0
    %1924 = vmatpush1.msra.mxu0 0.0
    %1925 = vmatprep.subr.mxu0 0.0
    %1926 = vmatpush1.msra.mxu0 0.0
    %1927 = vmatprep.subr.mxu0 0.0
    %1928 = vmatpush1.msra.mxu0 0.0
    %1929 = vmatprep.subr.mxu0 0.0
    %1930 = vmatpush1.msra.mxu0 0.0
    %1931 = vmatprep.mubr.f32.mxu0 0.0
    %1932 = vmatmul.mubr.f32.gmra.mrb[0].mxu0 %v1862
    %v1933 = vpop.f32.mrb[0].mxu0
    %v1934 = vadd.f32 %v1858, %v1933
    %v1935 = vpop.f32.mrb[0].mxu0
    %1936 = vmatprep.mubr.f32.mxu0 0.0
    %1937 = vmatmul.mubr.f32.gmra.mrb[0].mxu0 %v1865
    %v1938 = vpop.f32.mrb[0].mxu0
    %v1939 = vadd.f32 %v1858, %v1938
    %v1940 = vpop.f32.mrb[0].mxu0
    %1941 = vdwg.mxu0
    %v1942 = vadd.f32 %v1934, %v1740
    %v1943 = vadd.f32 %v1939, %v1741
    %v1944 = vld [vmem:[%s22] sm:$0x1]
    %v1945 = vld [vmem:[%s23] sm:$0x1]
    %v1946 = vsel %vm261, %v1942, 0.0
    %1947 = vadd.xlane.f32.xlu0 %v1946
    %v1948 = vpop.xlane.xlu0 %1947
    %v1949 = vsel %vm261, %v1943, 0.0
    %1950 = vadd.xlane.f32.xlu0 %v1949
    %v1951 = vpop.xlane.xlu0 %1950
    %v1952 = vmul.f32 %v1948, %v268
    %v1953 = vmul.f32 %v1951, %v268
    %v1954 = vsub.f32 %v1942, %v1952
    %v1955 = vsub.f32 %v1943, %v1953
    %v1956 = vmul.f32 %v1954, %v1954
    %v1957 = vmul.f32 %v1955, %v1955
    %v1958 = vsel %vm261, %v1956, 0.0
    %1959 = vadd.xlane.f32.xlu0 %v1958
    %v1960 = vpop.xlane.xlu0 %1959
    %v1961 = vsel %vm261, %v1957, 0.0
    %1962 = vadd.xlane.f32.xlu0 %v1961
    %v1963 = vpop.xlane.xlu0 %1962
    %v1964 = vmul.f32 %v1960, %v268
    %v1965 = vmul.f32 %v1963, %v268
    %v1966 = vadd.f32 %v1964, 1e-12
    %v1967 = vadd.f32 %v1965, 1e-12
    %v1968 = vrsqrt.pop %v1966
    %v1969 = vrsqrt.pop %v1967
    %v1970 = vmul.f32 %v1954, %v1968
    %v1971 = vmul.f32 %v1955, %v1969
    %v1973 = vlaneseq
    %v1974 = vshrl.u32 %v1973, 7
    %v1975 = vsub.s32 0, %v1974
    %v1976 = vrot.slane %v1944, %v1975
    %v1978 = vmul.f32 %v1970, %v1976
    %v1979 = vmul.f32 %v1971, %v1976
    %v1981 = vlaneseq
    %v1982 = vshrl.u32 %v1981, 7
    %v1983 = vsub.s32 0, %v1982
    %v1984 = vrot.slane %v1945, %v1983
    %v1986 = vadd.f32 %v1978, %v1984
    %v1987 = vadd.f32 %v1979, %v1984
    %s1988 = scalar_lea.vmem %s8, 64
    %v1989 = vld [vmem:[%s1988] sm:$0xff]
    %v1990 = vld [vmem:[%s1988 + $0x8] sm:$0xff]
    %v1991 = vld [vmem:[%s1988 + $0x10] sm:$0xff]
    %v1992 = vld [vmem:[%s1988 + $0x18] sm:$0xff]
    %s1993 = scalar_lea.vmem %s9, 2
    %v1994 = vld [vmem:[%s1993] sm:$0x1]
    %v1996 = vlaneseq
    %v1997 = vshrl.u32 %v1996, 7
    %v1998 = vsub.s32 0, %v1997
    %v1999 = vrot.slane %v1994, %v1998
    %v2002 = vsel %vm261, %v1986, 0
    %v2005 = vsel %vm261, %v1987, 0
    %2007 = vmatprep.subr.mxu0 0.0
    %2008 = vmatpush1.msra.mxu0 %v1989
    %2009 = vmatprep.subr.mxu0 0.0
    %2010 = vmatpush1.msra.mxu0 %v1990
    %2011 = vmatprep.subr.mxu0 0.0
    %2012 = vmatpush1.msra.mxu0 %v1991
    %2013 = vmatprep.subr.mxu0 0.0
    %2014 = vmatpush1.msra.mxu0 %v1992
    %2015 = vmatprep.subr.mxu0 0.0
    %2016 = vmatpush1.msra.mxu0 0.0
    %2017 = vmatprep.subr.mxu0 0.0
    %2018 = vmatpush1.msra.mxu0 0.0
    %2019 = vmatprep.subr.mxu0 0.0
    %2020 = vmatpush1.msra.mxu0 0.0
    %2021 = vmatprep.subr.mxu0 0.0
    %2022 = vmatpush1.msra.mxu0 0.0
    %2023 = vmatprep.subr.mxu0 0.0
    %2024 = vmatpush1.msra.mxu0 0.0
    %2025 = vmatprep.subr.mxu0 0.0
    %2026 = vmatpush1.msra.mxu0 0.0
    %2027 = vmatprep.subr.mxu0 0.0
    %2028 = vmatpush1.msra.mxu0 0.0
    %2029 = vmatprep.subr.mxu0 0.0
    %2030 = vmatpush1.msra.mxu0 0.0
    %2031 = vmatprep.subr.mxu0 0.0
    %2032 = vmatpush1.msra.mxu0 0.0
    %2033 = vmatprep.subr.mxu0 0.0
    %2034 = vmatpush1.msra.mxu0 0.0
    %2035 = vmatprep.subr.mxu0 0.0
    %2036 = vmatpush1.msra.mxu0 0.0
    %2037 = vmatprep.subr.mxu0 0.0
    %2038 = vmatpush1.msra.mxu0 0.0
    %2039 = vmatprep.subr.mxu0 0.0
    %2040 = vmatpush1.msra.mxu0 0.0
    %2041 = vmatprep.subr.mxu0 0.0
    %2042 = vmatpush1.msra.mxu0 0.0
    %2043 = vmatprep.subr.mxu0 0.0
    %2044 = vmatpush1.msra.mxu0 0.0
    %2045 = vmatprep.subr.mxu0 0.0
    %2046 = vmatpush1.msra.mxu0 0.0
    %2047 = vmatprep.subr.mxu0 0.0
    %2048 = vmatpush1.msra.mxu0 0.0
    %2049 = vmatprep.subr.mxu0 0.0
    %2050 = vmatpush1.msra.mxu0 0.0
    %2051 = vmatprep.subr.mxu0 0.0
    %2052 = vmatpush1.msra.mxu0 0.0
    %2053 = vmatprep.subr.mxu0 0.0
    %2054 = vmatpush1.msra.mxu0 0.0
    %2055 = vmatprep.subr.mxu0 0.0
    %2056 = vmatpush1.msra.mxu0 0.0
    %2057 = vmatprep.subr.mxu0 0.0
    %2058 = vmatpush1.msra.mxu0 0.0
    %2059 = vmatprep.subr.mxu0 0.0
    %2060 = vmatpush1.msra.mxu0 0.0
    %2061 = vmatprep.subr.mxu0 0.0
    %2062 = vmatpush1.msra.mxu0 0.0
    %2063 = vmatprep.subr.mxu0 0.0
    %2064 = vmatpush1.msra.mxu0 0.0
    %2065 = vmatprep.subr.mxu0 0.0
    %2066 = vmatpush1.msra.mxu0 0.0
    %2067 = vmatprep.subr.mxu0 0.0
    %2068 = vmatpush1.msra.mxu0 0.0
    %2069 = vmatprep.subr.mxu0 0.0
    %2070 = vmatpush1.msra.mxu0 0.0
    %2071 = vmatprep.mubr.f32.mxu0 0.0
    %2072 = vmatmul.mubr.f32.gmra.mrb[0].mxu0 %v2002
    %v2073 = vpop.f32.mrb[0].mxu0
    %v2074 = vadd.f32 %v1999, %v2073
    %v2075 = vpop.f32.mrb[0].mxu0
    %2076 = vmatprep.mubr.f32.mxu0 0.0
    %2077 = vmatmul.mubr.f32.gmra.mrb[0].mxu0 %v2005
    %v2078 = vpop.f32.mrb[0].mxu0
    %v2079 = vadd.f32 %v1999, %v2078
    %v2080 = vpop.f32.mrb[0].mxu0
    %2081 = vdwg.mxu0
    %s2082 = scalar_lea.vmem %s10, 64
    %v2083 = vld [vmem:[%s2082] sm:$0xff]
    %v2084 = vld [vmem:[%s2082 + $0x8] sm:$0xff]
    %v2085 = vld [vmem:[%s2082 + $0x10] sm:$0xff]
    %v2086 = vld [vmem:[%s2082 + $0x18] sm:$0xff]
    %s2087 = scalar_lea.vmem %s11, 2
    %v2088 = vld [vmem:[%s2087] sm:$0x1]
    %v2090 = vlaneseq
    %v2091 = vshrl.u32 %v2090, 7
    %v2092 = vsub.s32 0, %v2091
    %v2093 = vrot.slane %v2088, %v2092
    %2095 = vmatprep.subr.mxu0 0.0
    %2096 = vmatpush1.msra.mxu0 %v2083
    %2097 = vmatprep.subr.mxu0 0.0
    %2098 = vmatpush1.msra.mxu0 %v2084
    %2099 = vmatprep.subr.mxu0 0.0
    %2100 = vmatpush1.msra.mxu0 %v2085
    %2101 = vmatprep.subr.mxu0 0.0
    %2102 = vmatpush1.msra.mxu0 %v2086
    %2103 = vmatprep.subr.mxu0 0.0
    %2104 = vmatpush1.msra.mxu0 0.0
    %2105 = vmatprep.subr.mxu0 0.0
    %2106 = vmatpush1.msra.mxu0 0.0
    %2107 = vmatprep.subr.mxu0 0.0
    %2108 = vmatpush1.msra.mxu0 0.0
    %2109 = vmatprep.subr.mxu0 0.0
    %2110 = vmatpush1.msra.mxu0 0.0
    %2111 = vmatprep.subr.mxu0 0.0
    %2112 = vmatpush1.msra.mxu0 0.0
    %2113 = vmatprep.subr.mxu0 0.0
    %2114 = vmatpush1.msra.mxu0 0.0
    %2115 = vmatprep.subr.mxu0 0.0
    %2116 = vmatpush1.msra.mxu0 0.0
    %2117 = vmatprep.subr.mxu0 0.0
    %2118 = vmatpush1.msra.mxu0 0.0
    %2119 = vmatprep.subr.mxu0 0.0
    %2120 = vmatpush1.msra.mxu0 0.0
    %2121 = vmatprep.subr.mxu0 0.0
    %2122 = vmatpush1.msra.mxu0 0.0
    %2123 = vmatprep.subr.mxu0 0.0
    %2124 = vmatpush1.msra.mxu0 0.0
    %2125 = vmatprep.subr.mxu0 0.0
    %2126 = vmatpush1.msra.mxu0 0.0
    %2127 = vmatprep.subr.mxu0 0.0
    %2128 = vmatpush1.msra.mxu0 0.0
    %2129 = vmatprep.subr.mxu0 0.0
    %2130 = vmatpush1.msra.mxu0 0.0
    %2131 = vmatprep.subr.mxu0 0.0
    %2132 = vmatpush1.msra.mxu0 0.0
    %2133 = vmatprep.subr.mxu0 0.0
    %2134 = vmatpush1.msra.mxu0 0.0
    %2135 = vmatprep.subr.mxu0 0.0
    %2136 = vmatpush1.msra.mxu0 0.0
    %2137 = vmatprep.subr.mxu0 0.0
    %2138 = vmatpush1.msra.mxu0 0.0
    %2139 = vmatprep.subr.mxu0 0.0
    %2140 = vmatpush1.msra.mxu0 0.0
    %2141 = vmatprep.subr.mxu0 0.0
    %2142 = vmatpush1.msra.mxu0 0.0
    %2143 = vmatprep.subr.mxu0 0.0
    %2144 = vmatpush1.msra.mxu0 0.0
    %2145 = vmatprep.subr.mxu0 0.0
    %2146 = vmatpush1.msra.mxu0 0.0
    %2147 = vmatprep.subr.mxu0 0.0
    %2148 = vmatpush1.msra.mxu0 0.0
    %2149 = vmatprep.subr.mxu0 0.0
    %2150 = vmatpush1.msra.mxu0 0.0
    %2151 = vmatprep.subr.mxu0 0.0
    %2152 = vmatpush1.msra.mxu0 0.0
    %2153 = vmatprep.subr.mxu0 0.0
    %2154 = vmatpush1.msra.mxu0 0.0
    %2155 = vmatprep.subr.mxu0 0.0
    %2156 = vmatpush1.msra.mxu0 0.0
    %2157 = vmatprep.subr.mxu0 0.0
    %2158 = vmatpush1.msra.mxu0 0.0
    %2159 = vmatprep.mubr.f32.mxu0 0.0
    %2160 = vmatmul.mubr.f32.gmra.mrb[0].mxu0 %v2002
    %v2161 = vpop.f32.mrb[0].mxu0
    %v2162 = vadd.f32 %v2093, %v2161
    %v2163 = vpop.f32.mrb[0].mxu0
    %2164 = vmatprep.mubr.f32.mxu0 0.0
    %2165 = vmatmul.mubr.f32.gmra.mrb[0].mxu0 %v2005
    %v2166 = vpop.f32.mrb[0].mxu0
    %v2167 = vadd.f32 %v2093, %v2166
    %v2168 = vpop.f32.mrb[0].mxu0
    %2169 = vdwg.mxu0
    %s2170 = scalar_lea.vmem %s12, 64
    %v2171 = vld [vmem:[%s2170] sm:$0xff]
    %v2172 = vld [vmem:[%s2170 + $0x8] sm:$0xff]
    %v2173 = vld [vmem:[%s2170 + $0x10] sm:$0xff]
    %v2174 = vld [vmem:[%s2170 + $0x18] sm:$0xff]
    %s2175 = scalar_lea.vmem %s13, 2
    %v2176 = vld [vmem:[%s2175] sm:$0x1]
    %v2178 = vlaneseq
    %v2179 = vshrl.u32 %v2178, 7
    %v2180 = vsub.s32 0, %v2179
    %v2181 = vrot.slane %v2176, %v2180
    %2183 = vmatprep.subr.mxu0 0.0
    %2184 = vmatpush1.msra.mxu0 %v2171
    %2185 = vmatprep.subr.mxu0 0.0
    %2186 = vmatpush1.msra.mxu0 %v2172
    %2187 = vmatprep.subr.mxu0 0.0
    %2188 = vmatpush1.msra.mxu0 %v2173
    %2189 = vmatprep.subr.mxu0 0.0
    %2190 = vmatpush1.msra.mxu0 %v2174
    %2191 = vmatprep.subr.mxu0 0.0
    %2192 = vmatpush1.msra.mxu0 0.0
    %2193 = vmatprep.subr.mxu0 0.0
    %2194 = vmatpush1.msra.mxu0 0.0
    %2195 = vmatprep.subr.mxu0 0.0
    %2196 = vmatpush1.msra.mxu0 0.0
    %2197 = vmatprep.subr.mxu0 0.0
    %2198 = vmatpush1.msra.mxu0 0.0
    %2199 = vmatprep.subr.mxu0 0.0
    %2200 = vmatpush1.msra.mxu0 0.0
    %2201 = vmatprep.subr.mxu0 0.0
    %2202 = vmatpush1.msra.mxu0 0.0
    %2203 = vmatprep.subr.mxu0 0.0
    %2204 = vmatpush1.msra.mxu0 0.0
    %2205 = vmatprep.subr.mxu0 0.0
    %2206 = vmatpush1.msra.mxu0 0.0
    %2207 = vmatprep.subr.mxu0 0.0
    %2208 = vmatpush1.msra.mxu0 0.0
    %2209 = vmatprep.subr.mxu0 0.0
    %2210 = vmatpush1.msra.mxu0 0.0
    %2211 = vmatprep.subr.mxu0 0.0
    %2212 = vmatpush1.msra.mxu0 0.0
    %2213 = vmatprep.subr.mxu0 0.0
    %2214 = vmatpush1.msra.mxu0 0.0
    %2215 = vmatprep.subr.mxu0 0.0
    %2216 = vmatpush1.msra.mxu0 0.0
    %2217 = vmatprep.subr.mxu0 0.0
    %2218 = vmatpush1.msra.mxu0 0.0
    %2219 = vmatprep.subr.mxu0 0.0
    %2220 = vmatpush1.msra.mxu0 0.0
    %2221 = vmatprep.subr.mxu0 0.0
    %2222 = vmatpush1.msra.mxu0 0.0
    %2223 = vmatprep.subr.mxu0 0.0
    %2224 = vmatpush1.msra.mxu0 0.0
    %2225 = vmatprep.subr.mxu0 0.0
    %2226 = vmatpush1.msra.mxu0 0.0
    %2227 = vmatprep.subr.mxu0 0.0
    %2228 = vmatpush1.msra.mxu0 0.0
    %2229 = vmatprep.subr.mxu0 0.0
    %2230 = vmatpush1.msra.mxu0 0.0
    %2231 = vmatprep.subr.mxu0 0.0
    %2232 = vmatpush1.msra.mxu0 0.0
    %2233 = vmatprep.subr.mxu0 0.0
    %2234 = vmatpush1.msra.mxu0 0.0
    %2235 = vmatprep.subr.mxu0 0.0
    %2236 = vmatpush1.msra.mxu0 0.0
    %2237 = vmatprep.subr.mxu0 0.0
    %2238 = vmatpush1.msra.mxu0 0.0
    %2239 = vmatprep.subr.mxu0 0.0
    %2240 = vmatpush1.msra.mxu0 0.0
    %2241 = vmatprep.subr.mxu0 0.0
    %2242 = vmatpush1.msra.mxu0 0.0
    %2243 = vmatprep.subr.mxu0 0.0
    %2244 = vmatpush1.msra.mxu0 0.0
    %2245 = vmatprep.subr.mxu0 0.0
    %2246 = vmatpush1.msra.mxu0 0.0
    %2247 = vmatprep.mubr.f32.mxu0 0.0
    %2248 = vmatmul.mubr.f32.gmra.mrb[0].mxu0 %v2002
    %v2249 = vpop.f32.mrb[0].mxu0
    %v2250 = vadd.f32 %v2181, %v2249
    %v2251 = vpop.f32.mrb[0].mxu0
    %2252 = vmatprep.mubr.f32.mxu0 0.0
    %2253 = vmatmul.mubr.f32.gmra.mrb[0].mxu0 %v2005
    %v2254 = vpop.f32.mrb[0].mxu0
    %v2255 = vadd.f32 %v2181, %v2254
    %v2256 = vpop.f32.mrb[0].mxu0
    %2257 = vdwg.mxu0
    %v2259 = vsel %vm606, %v2074, 0
    %v2262 = vsel %vm606, %v2162, 0
    %2264 = vmatprep.subr.mxu0 0.0
    %2265 = vmatpush1.xpose.msra.mxu0 %v2262
    %2266 = vmatprep.subr.mxu0 0.0
    %2267 = vmatpush1.xpose.msra.mxu0 0.0
    %2268 = vmatprep.subr.mxu0 0.0
    %2269 = vmatpush1.xpose.msra.mxu0 0.0
    %2270 = vmatprep.subr.mxu0 0.0
    %2271 = vmatpush1.xpose.msra.mxu0 0.0
    %2272 = vmatprep.subr.mxu0 0.0
    %2273 = vmatpush1.xpose.msra.mxu0 0.0
    %2274 = vmatprep.subr.mxu0 0.0
    %2275 = vmatpush1.xpose.msra.mxu0 0.0
    %2276 = vmatprep.subr.mxu0 0.0
    %2277 = vmatpush1.xpose.msra.mxu0 0.0
    %2278 = vmatprep.subr.mxu0 0.0
    %2279 = vmatpush1.xpose.msra.mxu0 0.0
    %2280 = vmatprep.subr.mxu0 0.0
    %2281 = vmatpush1.xpose.msra.mxu0 0.0
    %2282 = vmatprep.subr.mxu0 0.0
    %2283 = vmatpush1.xpose.msra.mxu0 0.0
    %2284 = vmatprep.subr.mxu0 0.0
    %2285 = vmatpush1.xpose.msra.mxu0 0.0
    %2286 = vmatprep.subr.mxu0 0.0
    %2287 = vmatpush1.xpose.msra.mxu0 0.0
    %2288 = vmatprep.subr.mxu0 0.0
    %2289 = vmatpush1.xpose.msra.mxu0 0.0
    %2290 = vmatprep.subr.mxu0 0.0
    %2291 = vmatpush1.xpose.msra.mxu0 0.0
    %2292 = vmatprep.subr.mxu0 0.0
    %2293 = vmatpush1.xpose.msra.mxu0 0.0
    %2294 = vmatprep.subr.mxu0 0.0
    %2295 = vmatpush1.xpose.msra.mxu0 0.0
    %2296 = vmatprep.subr.mxu0 0.0
    %2297 = vmatpush1.xpose.msra.mxu0 0.0
    %2298 = vmatprep.subr.mxu0 0.0
    %2299 = vmatpush1.xpose.msra.mxu0 0.0
    %2300 = vmatprep.subr.mxu0 0.0
    %2301 = vmatpush1.xpose.msra.mxu0 0.0
    %2302 = vmatprep.subr.mxu0 0.0
    %2303 = vmatpush1.xpose.msra.mxu0 0.0
    %2304 = vmatprep.subr.mxu0 0.0
    %2305 = vmatpush1.xpose.msra.mxu0 0.0
    %2306 = vmatprep.subr.mxu0 0.0
    %2307 = vmatpush1.xpose.msra.mxu0 0.0
    %2308 = vmatprep.subr.mxu0 0.0
    %2309 = vmatpush1.xpose.msra.mxu0 0.0
    %2310 = vmatprep.subr.mxu0 0.0
    %2311 = vmatpush1.xpose.msra.mxu0 0.0
    %2312 = vmatprep.subr.mxu0 0.0
    %2313 = vmatpush1.xpose.msra.mxu0 0.0
    %2314 = vmatprep.subr.mxu0 0.0
    %2315 = vmatpush1.xpose.msra.mxu0 0.0
    %2316 = vmatprep.subr.mxu0 0.0
    %2317 = vmatpush1.xpose.msra.mxu0 0.0
    %2318 = vmatprep.subr.mxu0 0.0
    %2319 = vmatpush1.xpose.msra.mxu0 0.0
    %2320 = vmatprep.subr.mxu0 0.0
    %2321 = vmatpush1.xpose.msra.mxu0 0.0
    %2322 = vmatprep.subr.mxu0 0.0
    %2323 = vmatpush1.xpose.msra.mxu0 0.0
    %2324 = vmatprep.subr.mxu0 0.0
    %2325 = vmatpush1.xpose.msra.mxu0 0.0
    %2326 = vmatprep.subr.mxu0 0.0
    %2327 = vmatpush1.xpose.msra.mxu0 0.0
    %2328 = vmatprep.mubr.f32.mxu0 0.0
    %2329 = vmatmul.mubr.f32.gmra.mrb[0].mxu0 %v2259
    %v2330 = vpop.f32.mrb[0].mxu0
    %v2331 = vadd.f32 0.0, %v2330
    %v2332 = vpop.f32.mrb[0].mxu0
    %2333 = vdwg.mxu0
    %v2335 = vsel %vm606, %v2079, 0
    %v2338 = vsel %vm606, %v2167, 0
    %2340 = vmatprep.subr.mxu0 0.0
    %2341 = vmatpush1.xpose.msra.mxu0 %v2338
    %2342 = vmatprep.subr.mxu0 0.0
    %2343 = vmatpush1.xpose.msra.mxu0 0.0
    %2344 = vmatprep.subr.mxu0 0.0
    %2345 = vmatpush1.xpose.msra.mxu0 0.0
    %2346 = vmatprep.subr.mxu0 0.0
    %2347 = vmatpush1.xpose.msra.mxu0 0.0
    %2348 = vmatprep.subr.mxu0 0.0
    %2349 = vmatpush1.xpose.msra.mxu0 0.0
    %2350 = vmatprep.subr.mxu0 0.0
    %2351 = vmatpush1.xpose.msra.mxu0 0.0
    %2352 = vmatprep.subr.mxu0 0.0
    %2353 = vmatpush1.xpose.msra.mxu0 0.0
    %2354 = vmatprep.subr.mxu0 0.0
    %2355 = vmatpush1.xpose.msra.mxu0 0.0
    %2356 = vmatprep.subr.mxu0 0.0
    %2357 = vmatpush1.xpose.msra.mxu0 0.0
    %2358 = vmatprep.subr.mxu0 0.0
    %2359 = vmatpush1.xpose.msra.mxu0 0.0
    %2360 = vmatprep.subr.mxu0 0.0
    %2361 = vmatpush1.xpose.msra.mxu0 0.0
    %2362 = vmatprep.subr.mxu0 0.0
    %2363 = vmatpush1.xpose.msra.mxu0 0.0
    %2364 = vmatprep.subr.mxu0 0.0
    %2365 = vmatpush1.xpose.msra.mxu0 0.0
    %2366 = vmatprep.subr.mxu0 0.0
    %2367 = vmatpush1.xpose.msra.mxu0 0.0
    %2368 = vmatprep.subr.mxu0 0.0
    %2369 = vmatpush1.xpose.msra.mxu0 0.0
    %2370 = vmatprep.subr.mxu0 0.0
    %2371 = vmatpush1.xpose.msra.mxu0 0.0
    %2372 = vmatprep.subr.mxu0 0.0
    %2373 = vmatpush1.xpose.msra.mxu0 0.0
    %2374 = vmatprep.subr.mxu0 0.0
    %2375 = vmatpush1.xpose.msra.mxu0 0.0
    %2376 = vmatprep.subr.mxu0 0.0
    %2377 = vmatpush1.xpose.msra.mxu0 0.0
    %2378 = vmatprep.subr.mxu0 0.0
    %2379 = vmatpush1.xpose.msra.mxu0 0.0
    %2380 = vmatprep.subr.mxu0 0.0
    %2381 = vmatpush1.xpose.msra.mxu0 0.0
    %2382 = vmatprep.subr.mxu0 0.0
    %2383 = vmatpush1.xpose.msra.mxu0 0.0
    %2384 = vmatprep.subr.mxu0 0.0
    %2385 = vmatpush1.xpose.msra.mxu0 0.0
    %2386 = vmatprep.subr.mxu0 0.0
    %2387 = vmatpush1.xpose.msra.mxu0 0.0
    %2388 = vmatprep.subr.mxu0 0.0
    %2389 = vmatpush1.xpose.msra.mxu0 0.0
    %2390 = vmatprep.subr.mxu0 0.0
    %2391 = vmatpush1.xpose.msra.mxu0 0.0
    %2392 = vmatprep.subr.mxu0 0.0
    %2393 = vmatpush1.xpose.msra.mxu0 0.0
    %2394 = vmatprep.subr.mxu0 0.0
    %2395 = vmatpush1.xpose.msra.mxu0 0.0
    %2396 = vmatprep.subr.mxu0 0.0
    %2397 = vmatpush1.xpose.msra.mxu0 0.0
    %2398 = vmatprep.subr.mxu0 0.0
    %2399 = vmatpush1.xpose.msra.mxu0 0.0
    %2400 = vmatprep.subr.mxu0 0.0
    %2401 = vmatpush1.xpose.msra.mxu0 0.0
    %2402 = vmatprep.subr.mxu0 0.0
    %2403 = vmatpush1.xpose.msra.mxu0 0.0
    %2404 = vmatprep.mubr.f32.mxu0 0.0
    %2405 = vmatmul.mubr.f32.gmra.mrb[0].mxu0 %v2335
    %v2406 = vpop.f32.mrb[0].mxu0
    %v2407 = vadd.f32 0.0, %v2406
    %v2408 = vpop.f32.mrb[0].mxu0
    %2409 = vdwg.mxu0
    %v2410 = vmul.f32 %v2331, 0.25
    %v2411 = vmul.f32 %v2407, 0.25
    %v2412 = vadd.f32 %v2410, %v335
    %v2413 = vadd.f32 %v2411, %v339
    %v2414 = vsel %vm763, %v2412, -inf
    %2415 = vmax.xlane.f32.xlu0 %v2414
    %v2416 = vpop.xlane.xlu0 %2415
    %v2417 = vsel %vm763, %v2413, -inf
    %2418 = vmax.xlane.f32.xlu0 %v2417
    %v2419 = vpop.xlane.xlu0 %2418
    %v2420 = vsub.f32 %v2412, %v2416
    %v2421 = vsub.f32 %v2413, %v2419
    %v2422 = vmul.f32 %v2420, 1.442695
    %v2423 = vpow.pop %v2422
    %v2424 = vmul.f32 %v2421, 1.442695
    %v2425 = vpow.pop %v2424
    %v2426 = vsel %vm763, %v2423, 0.0
    %2427 = vadd.xlane.f32.xlu0 %v2426
    %v2428 = vpop.xlane.xlu0 %2427
    %v2429 = vsel %vm763, %v2425, 0.0
    %2430 = vadd.xlane.f32.xlu0 %v2429
    %v2431 = vpop.xlane.xlu0 %2430
    %v2432 = vrcp.pop %v2428
    %v2433 = vrcp.pop %v2431
    %v2434 = vmul.f32 %v2423, %v2432
    %v2435 = vmul.f32 %v2425, %v2433
    %v2437 = vsel %vm763, %v2434, 0
    %2439 = vmatprep.subr.mxu0 0.0
    %2440 = vmatpush1.msra.mxu0 %v2250
    %2441 = vmatprep.subr.mxu0 0.0
    %2442 = vmatpush1.msra.mxu0 0.0
    %2443 = vmatprep.subr.mxu0 0.0
    %2444 = vmatpush1.msra.mxu0 0.0
    %2445 = vmatprep.subr.mxu0 0.0
    %2446 = vmatpush1.msra.mxu0 0.0
    %2447 = vmatprep.subr.mxu0 0.0
    %2448 = vmatpush1.msra.mxu0 0.0
    %2449 = vmatprep.subr.mxu0 0.0
    %2450 = vmatpush1.msra.mxu0 0.0
    %2451 = vmatprep.subr.mxu0 0.0
    %2452 = vmatpush1.msra.mxu0 0.0
    %2453 = vmatprep.subr.mxu0 0.0
    %2454 = vmatpush1.msra.mxu0 0.0
    %2455 = vmatprep.subr.mxu0 0.0
    %2456 = vmatpush1.msra.mxu0 0.0
    %2457 = vmatprep.subr.mxu0 0.0
    %2458 = vmatpush1.msra.mxu0 0.0
    %2459 = vmatprep.subr.mxu0 0.0
    %2460 = vmatpush1.msra.mxu0 0.0
    %2461 = vmatprep.subr.mxu0 0.0
    %2462 = vmatpush1.msra.mxu0 0.0
    %2463 = vmatprep.subr.mxu0 0.0
    %2464 = vmatpush1.msra.mxu0 0.0
    %2465 = vmatprep.subr.mxu0 0.0
    %2466 = vmatpush1.msra.mxu0 0.0
    %2467 = vmatprep.subr.mxu0 0.0
    %2468 = vmatpush1.msra.mxu0 0.0
    %2469 = vmatprep.subr.mxu0 0.0
    %2470 = vmatpush1.msra.mxu0 0.0
    %2471 = vmatprep.subr.mxu0 0.0
    %2472 = vmatpush1.msra.mxu0 0.0
    %2473 = vmatprep.subr.mxu0 0.0
    %2474 = vmatpush1.msra.mxu0 0.0
    %2475 = vmatprep.subr.mxu0 0.0
    %2476 = vmatpush1.msra.mxu0 0.0
    %2477 = vmatprep.subr.mxu0 0.0
    %2478 = vmatpush1.msra.mxu0 0.0
    %2479 = vmatprep.subr.mxu0 0.0
    %2480 = vmatpush1.msra.mxu0 0.0
    %2481 = vmatprep.subr.mxu0 0.0
    %2482 = vmatpush1.msra.mxu0 0.0
    %2483 = vmatprep.subr.mxu0 0.0
    %2484 = vmatpush1.msra.mxu0 0.0
    %2485 = vmatprep.subr.mxu0 0.0
    %2486 = vmatpush1.msra.mxu0 0.0
    %2487 = vmatprep.subr.mxu0 0.0
    %2488 = vmatpush1.msra.mxu0 0.0
    %2489 = vmatprep.subr.mxu0 0.0
    %2490 = vmatpush1.msra.mxu0 0.0
    %2491 = vmatprep.subr.mxu0 0.0
    %2492 = vmatpush1.msra.mxu0 0.0
    %2493 = vmatprep.subr.mxu0 0.0
    %2494 = vmatpush1.msra.mxu0 0.0
    %2495 = vmatprep.subr.mxu0 0.0
    %2496 = vmatpush1.msra.mxu0 0.0
    %2497 = vmatprep.subr.mxu0 0.0
    %2498 = vmatpush1.msra.mxu0 0.0
    %2499 = vmatprep.subr.mxu0 0.0
    %2500 = vmatpush1.msra.mxu0 0.0
    %2501 = vmatprep.subr.mxu0 0.0
    %2502 = vmatpush1.msra.mxu0 0.0
    %2503 = vmatprep.mubr.f32.mxu0 0.0
    %2504 = vmatmul.mubr.f32.gmra.mrb[0].mxu0 %v2437
    %v2505 = vpop.f32.mrb[0].mxu0
    %v2506 = vadd.f32 0.0, %v2505
    %v2507 = vpop.f32.mrb[0].mxu0
    %2508 = vdwg.mxu0
    %v2510 = vsel %vm763, %v2435, 0
    %2512 = vmatprep.subr.mxu0 0.0
    %2513 = vmatpush1.msra.mxu0 %v2255
    %2514 = vmatprep.subr.mxu0 0.0
    %2515 = vmatpush1.msra.mxu0 0.0
    %2516 = vmatprep.subr.mxu0 0.0
    %2517 = vmatpush1.msra.mxu0 0.0
    %2518 = vmatprep.subr.mxu0 0.0
    %2519 = vmatpush1.msra.mxu0 0.0
    %2520 = vmatprep.subr.mxu0 0.0
    %2521 = vmatpush1.msra.mxu0 0.0
    %2522 = vmatprep.subr.mxu0 0.0
    %2523 = vmatpush1.msra.mxu0 0.0
    %2524 = vmatprep.subr.mxu0 0.0
    %2525 = vmatpush1.msra.mxu0 0.0
    %2526 = vmatprep.subr.mxu0 0.0
    %2527 = vmatpush1.msra.mxu0 0.0
    %2528 = vmatprep.subr.mxu0 0.0
    %2529 = vmatpush1.msra.mxu0 0.0
    %2530 = vmatprep.subr.mxu0 0.0
    %2531 = vmatpush1.msra.mxu0 0.0
    %2532 = vmatprep.subr.mxu0 0.0
    %2533 = vmatpush1.msra.mxu0 0.0
    %2534 = vmatprep.subr.mxu0 0.0
    %2535 = vmatpush1.msra.mxu0 0.0
    %2536 = vmatprep.subr.mxu0 0.0
    %2537 = vmatpush1.msra.mxu0 0.0
    %2538 = vmatprep.subr.mxu0 0.0
    %2539 = vmatpush1.msra.mxu0 0.0
    %2540 = vmatprep.subr.mxu0 0.0
    %2541 = vmatpush1.msra.mxu0 0.0
    %2542 = vmatprep.subr.mxu0 0.0
    %2543 = vmatpush1.msra.mxu0 0.0
    %2544 = vmatprep.subr.mxu0 0.0
    %2545 = vmatpush1.msra.mxu0 0.0
    %2546 = vmatprep.subr.mxu0 0.0
    %2547 = vmatpush1.msra.mxu0 0.0
    %2548 = vmatprep.subr.mxu0 0.0
    %2549 = vmatpush1.msra.mxu0 0.0
    %2550 = vmatprep.subr.mxu0 0.0
    %2551 = vmatpush1.msra.mxu0 0.0
    %2552 = vmatprep.subr.mxu0 0.0
    %2553 = vmatpush1.msra.mxu0 0.0
    %2554 = vmatprep.subr.mxu0 0.0
    %2555 = vmatpush1.msra.mxu0 0.0
    %2556 = vmatprep.subr.mxu0 0.0
    %2557 = vmatpush1.msra.mxu0 0.0
    %2558 = vmatprep.subr.mxu0 0.0
    %2559 = vmatpush1.msra.mxu0 0.0
    %2560 = vmatprep.subr.mxu0 0.0
    %2561 = vmatpush1.msra.mxu0 0.0
    %2562 = vmatprep.subr.mxu0 0.0
    %2563 = vmatpush1.msra.mxu0 0.0
    %2564 = vmatprep.subr.mxu0 0.0
    %2565 = vmatpush1.msra.mxu0 0.0
    %2566 = vmatprep.subr.mxu0 0.0
    %2567 = vmatpush1.msra.mxu0 0.0
    %2568 = vmatprep.subr.mxu0 0.0
    %2569 = vmatpush1.msra.mxu0 0.0
    %2570 = vmatprep.subr.mxu0 0.0
    %2571 = vmatpush1.msra.mxu0 0.0
    %2572 = vmatprep.subr.mxu0 0.0
    %2573 = vmatpush1.msra.mxu0 0.0
    %2574 = vmatprep.subr.mxu0 0.0
    %2575 = vmatpush1.msra.mxu0 0.0
    %2576 = vmatprep.mubr.f32.mxu0 0.0
    %2577 = vmatmul.mubr.f32.gmra.mrb[0].mxu0 %v2510
    %v2578 = vpop.f32.mrb[0].mxu0
    %v2579 = vadd.f32 0.0, %v2578
    %v2580 = vpop.f32.mrb[0].mxu0
    %2581 = vdwg.mxu0
    %s2582 = scalar_lea.vmem %s14, 32
    %v2583 = vld [vmem:[%s2582] sm:$0xff]
    %v2584 = vld [vmem:[%s2582 + $0x8] sm:$0xff]
    %s2585 = scalar_lea.vmem %s8, 96
    %v2586 = vld [vmem:[%s2585] sm:$0xff]
    %v2587 = vld [vmem:[%s2585 + $0x8] sm:$0xff]
    %v2588 = vld [vmem:[%s2585 + $0x10] sm:$0xff]
    %v2589 = vld [vmem:[%s2585 + $0x18] sm:$0xff]
    %s2590 = scalar_lea.vmem %s9, 3
    %v2591 = vld [vmem:[%s2590] sm:$0x1]
    %v2593 = vlaneseq
    %v2594 = vshrl.u32 %v2593, 7
    %v2595 = vsub.s32 0, %v2594
    %v2596 = vrot.slane %v2591, %v2595
    %2598 = vmatprep.subr.mxu0 0.0
    %2599 = vmatpush1.msra.mxu0 %v2586
    %2600 = vmatprep.subr.mxu0 0.0
    %2601 = vmatpush1.msra.mxu0 %v2587
    %2602 = vmatprep.subr.mxu0 0.0
    %2603 = vmatpush1.msra.mxu0 %v2588
    %2604 = vmatprep.subr.mxu0 0.0
    %2605 = vmatpush1.msra.mxu0 %v2589
    %2606 = vmatprep.subr.mxu0 0.0
    %2607 = vmatpush1.msra.mxu0 0.0
    %2608 = vmatprep.subr.mxu0 0.0
    %2609 = vmatpush1.msra.mxu0 0.0
    %2610 = vmatprep.subr.mxu0 0.0
    %2611 = vmatpush1.msra.mxu0 0.0
    %2612 = vmatprep.subr.mxu0 0.0
    %2613 = vmatpush1.msra.mxu0 0.0
    %2614 = vmatprep.subr.mxu0 0.0
    %2615 = vmatpush1.msra.mxu0 0.0
    %2616 = vmatprep.subr.mxu0 0.0
    %2617 = vmatpush1.msra.mxu0 0.0
    %2618 = vmatprep.subr.mxu0 0.0
    %2619 = vmatpush1.msra.mxu0 0.0
    %2620 = vmatprep.subr.mxu0 0.0
    %2621 = vmatpush1.msra.mxu0 0.0
    %2622 = vmatprep.subr.mxu0 0.0
    %2623 = vmatpush1.msra.mxu0 0.0
    %2624 = vmatprep.subr.mxu0 0.0
    %2625 = vmatpush1.msra.mxu0 0.0
    %2626 = vmatprep.subr.mxu0 0.0
    %2627 = vmatpush1.msra.mxu0 0.0
    %2628 = vmatprep.subr.mxu0 0.0
    %2629 = vmatpush1.msra.mxu0 0.0
    %2630 = vmatprep.subr.mxu0 0.0
    %2631 = vmatpush1.msra.mxu0 0.0
    %2632 = vmatprep.subr.mxu0 0.0
    %2633 = vmatpush1.msra.mxu0 0.0
    %2634 = vmatprep.subr.mxu0 0.0
    %2635 = vmatpush1.msra.mxu0 0.0
    %2636 = vmatprep.subr.mxu0 0.0
    %2637 = vmatpush1.msra.mxu0 0.0
    %2638 = vmatprep.subr.mxu0 0.0
    %2639 = vmatpush1.msra.mxu0 0.0
    %2640 = vmatprep.subr.mxu0 0.0
    %2641 = vmatpush1.msra.mxu0 0.0
    %2642 = vmatprep.subr.mxu0 0.0
    %2643 = vmatpush1.msra.mxu0 0.0
    %2644 = vmatprep.subr.mxu0 0.0
    %2645 = vmatpush1.msra.mxu0 0.0
    %2646 = vmatprep.subr.mxu0 0.0
    %2647 = vmatpush1.msra.mxu0 0.0
    %2648 = vmatprep.subr.mxu0 0.0
    %2649 = vmatpush1.msra.mxu0 0.0
    %2650 = vmatprep.subr.mxu0 0.0
    %2651 = vmatpush1.msra.mxu0 0.0
    %2652 = vmatprep.subr.mxu0 0.0
    %2653 = vmatpush1.msra.mxu0 0.0
    %2654 = vmatprep.subr.mxu0 0.0
    %2655 = vmatpush1.msra.mxu0 0.0
    %2656 = vmatprep.subr.mxu0 0.0
    %2657 = vmatpush1.msra.mxu0 0.0
    %2658 = vmatprep.subr.mxu0 0.0
    %2659 = vmatpush1.msra.mxu0 0.0
    %2660 = vmatprep.subr.mxu0 0.0
    %2661 = vmatpush1.msra.mxu0 0.0
    %2662 = vmatprep.mubr.f32.mxu0 0.0
    %2663 = vmatmul.mubr.f32.gmra.mrb[0].mxu0 %v2002
    %v2664 = vpop.f32.mrb[0].mxu0
    %v2665 = vadd.f32 %v2596, %v2664
    %v2666 = vpop.f32.mrb[0].mxu0
    %2667 = vmatprep.mubr.f32.mxu0 0.0
    %2668 = vmatmul.mubr.f32.gmra.mrb[0].mxu0 %v2005
    %v2669 = vpop.f32.mrb[0].mxu0
    %v2670 = vadd.f32 %v2596, %v2669
    %v2671 = vpop.f32.mrb[0].mxu0
    %2672 = vdwg.mxu0
    %s2673 = scalar_lea.vmem %s10, 96
    %v2674 = vld [vmem:[%s2673] sm:$0xff]
    %v2675 = vld [vmem:[%s2673 + $0x8] sm:$0xff]
    %v2676 = vld [vmem:[%s2673 + $0x10] sm:$0xff]
    %v2677 = vld [vmem:[%s2673 + $0x18] sm:$0xff]
    %s2678 = scalar_lea.vmem %s11, 3
    %v2679 = vld [vmem:[%s2678] sm:$0x1]
    %v2681 = vlaneseq
    %v2682 = vshrl.u32 %v2681, 7
    %v2683 = vsub.s32 0, %v2682
    %v2684 = vrot.slane %v2679, %v2683
    %2686 = vmatprep.subr.mxu0 0.0
    %2687 = vmatpush1.msra.mxu0 %v2674
    %2688 = vmatprep.subr.mxu0 0.0
    %2689 = vmatpush1.msra.mxu0 %v2675
    %2690 = vmatprep.subr.mxu0 0.0
    %2691 = vmatpush1.msra.mxu0 %v2676
    %2692 = vmatprep.subr.mxu0 0.0
    %2693 = vmatpush1.msra.mxu0 %v2677
    %2694 = vmatprep.subr.mxu0 0.0
    %2695 = vmatpush1.msra.mxu0 0.0
    %2696 = vmatprep.subr.mxu0 0.0
    %2697 = vmatpush1.msra.mxu0 0.0
    %2698 = vmatprep.subr.mxu0 0.0
    %2699 = vmatpush1.msra.mxu0 0.0
    %2700 = vmatprep.subr.mxu0 0.0
    %2701 = vmatpush1.msra.mxu0 0.0
    %2702 = vmatprep.subr.mxu0 0.0
    %2703 = vmatpush1.msra.mxu0 0.0
    %2704 = vmatprep.subr.mxu0 0.0
    %2705 = vmatpush1.msra.mxu0 0.0
    %2706 = vmatprep.subr.mxu0 0.0
    %2707 = vmatpush1.msra.mxu0 0.0
    %2708 = vmatprep.subr.mxu0 0.0
    %2709 = vmatpush1.msra.mxu0 0.0
    %2710 = vmatprep.subr.mxu0 0.0
    %2711 = vmatpush1.msra.mxu0 0.0
    %2712 = vmatprep.subr.mxu0 0.0
    %2713 = vmatpush1.msra.mxu0 0.0
    %2714 = vmatprep.subr.mxu0 0.0
    %2715 = vmatpush1.msra.mxu0 0.0
    %2716 = vmatprep.subr.mxu0 0.0
    %2717 = vmatpush1.msra.mxu0 0.0
    %2718 = vmatprep.subr.mxu0 0.0
    %2719 = vmatpush1.msra.mxu0 0.0
    %2720 = vmatprep.subr.mxu0 0.0
    %2721 = vmatpush1.msra.mxu0 0.0
    %2722 = vmatprep.subr.mxu0 0.0
    %2723 = vmatpush1.msra.mxu0 0.0
    %2724 = vmatprep.subr.mxu0 0.0
    %2725 = vmatpush1.msra.mxu0 0.0
    %2726 = vmatprep.subr.mxu0 0.0
    %2727 = vmatpush1.msra.mxu0 0.0
    %2728 = vmatprep.subr.mxu0 0.0
    %2729 = vmatpush1.msra.mxu0 0.0
    %2730 = vmatprep.subr.mxu0 0.0
    %2731 = vmatpush1.msra.mxu0 0.0
    %2732 = vmatprep.subr.mxu0 0.0
    %2733 = vmatpush1.msra.mxu0 0.0
    %2734 = vmatprep.subr.mxu0 0.0
    %2735 = vmatpush1.msra.mxu0 0.0
    %2736 = vmatprep.subr.mxu0 0.0
    %2737 = vmatpush1.msra.mxu0 0.0
    %2738 = vmatprep.subr.mxu0 0.0
    %2739 = vmatpush1.msra.mxu0 0.0
    %2740 = vmatprep.subr.mxu0 0.0
    %2741 = vmatpush1.msra.mxu0 0.0
    %2742 = vmatprep.subr.mxu0 0.0
    %2743 = vmatpush1.msra.mxu0 0.0
    %2744 = vmatprep.subr.mxu0 0.0
    %2745 = vmatpush1.msra.mxu0 0.0
    %2746 = vmatprep.subr.mxu0 0.0
    %2747 = vmatpush1.msra.mxu0 0.0
    %2748 = vmatprep.subr.mxu0 0.0
    %2749 = vmatpush1.msra.mxu0 0.0
    %2750 = vmatprep.mubr.f32.mxu0 0.0
    %2751 = vmatmul.mubr.f32.gmra.mrb[0].mxu0 %v2002
    %v2752 = vpop.f32.mrb[0].mxu0
    %v2753 = vadd.f32 %v2684, %v2752
    %v2754 = vpop.f32.mrb[0].mxu0
    %2755 = vmatprep.mubr.f32.mxu0 0.0
    %2756 = vmatmul.mubr.f32.gmra.mrb[0].mxu0 %v2005
    %v2757 = vpop.f32.mrb[0].mxu0
    %v2758 = vadd.f32 %v2684, %v2757
    %v2759 = vpop.f32.mrb[0].mxu0
    %2760 = vdwg.mxu0
    %s2761 = scalar_lea.vmem %s12, 96
    %v2762 = vld [vmem:[%s2761] sm:$0xff]
    %v2763 = vld [vmem:[%s2761 + $0x8] sm:$0xff]
    %v2764 = vld [vmem:[%s2761 + $0x10] sm:$0xff]
    %v2765 = vld [vmem:[%s2761 + $0x18] sm:$0xff]
    %s2766 = scalar_lea.vmem %s13, 3
    %v2767 = vld [vmem:[%s2766] sm:$0x1]
    %v2769 = vlaneseq
    %v2770 = vshrl.u32 %v2769, 7
    %v2771 = vsub.s32 0, %v2770
    %v2772 = vrot.slane %v2767, %v2771
    %2774 = vmatprep.subr.mxu0 0.0
    %2775 = vmatpush1.msra.mxu0 %v2762
    %2776 = vmatprep.subr.mxu0 0.0
    %2777 = vmatpush1.msra.mxu0 %v2763
    %2778 = vmatprep.subr.mxu0 0.0
    %2779 = vmatpush1.msra.mxu0 %v2764
    %2780 = vmatprep.subr.mxu0 0.0
    %2781 = vmatpush1.msra.mxu0 %v2765
    %2782 = vmatprep.subr.mxu0 0.0
    %2783 = vmatpush1.msra.mxu0 0.0
    %2784 = vmatprep.subr.mxu0 0.0
    %2785 = vmatpush1.msra.mxu0 0.0
    %2786 = vmatprep.subr.mxu0 0.0
    %2787 = vmatpush1.msra.mxu0 0.0
    %2788 = vmatprep.subr.mxu0 0.0
    %2789 = vmatpush1.msra.mxu0 0.0
    %2790 = vmatprep.subr.mxu0 0.0
    %2791 = vmatpush1.msra.mxu0 0.0
    %2792 = vmatprep.subr.mxu0 0.0
    %2793 = vmatpush1.msra.mxu0 0.0
    %2794 = vmatprep.subr.mxu0 0.0
    %2795 = vmatpush1.msra.mxu0 0.0
    %2796 = vmatprep.subr.mxu0 0.0
    %2797 = vmatpush1.msra.mxu0 0.0
    %2798 = vmatprep.subr.mxu0 0.0
    %2799 = vmatpush1.msra.mxu0 0.0
    %2800 = vmatprep.subr.mxu0 0.0
    %2801 = vmatpush1.msra.mxu0 0.0
    %2802 = vmatprep.subr.mxu0 0.0
    %2803 = vmatpush1.msra.mxu0 0.0
    %2804 = vmatprep.subr.mxu0 0.0
    %2805 = vmatpush1.msra.mxu0 0.0
    %2806 = vmatprep.subr.mxu0 0.0
    %2807 = vmatpush1.msra.mxu0 0.0
    %2808 = vmatprep.subr.mxu0 0.0
    %2809 = vmatpush1.msra.mxu0 0.0
    %2810 = vmatprep.subr.mxu0 0.0
    %2811 = vmatpush1.msra.mxu0 0.0
    %2812 = vmatprep.subr.mxu0 0.0
    %2813 = vmatpush1.msra.mxu0 0.0
    %2814 = vmatprep.subr.mxu0 0.0
    %2815 = vmatpush1.msra.mxu0 0.0
    %2816 = vmatprep.subr.mxu0 0.0
    %2817 = vmatpush1.msra.mxu0 0.0
    %2818 = vmatprep.subr.mxu0 0.0
    %2819 = vmatpush1.msra.mxu0 0.0
    %2820 = vmatprep.subr.mxu0 0.0
    %2821 = vmatpush1.msra.mxu0 0.0
    %2822 = vmatprep.subr.mxu0 0.0
    %2823 = vmatpush1.msra.mxu0 0.0
    %2824 = vmatprep.subr.mxu0 0.0
    %2825 = vmatpush1.msra.mxu0 0.0
    %2826 = vmatprep.subr.mxu0 0.0
    %2827 = vmatpush1.msra.mxu0 0.0
    %2828 = vmatprep.subr.mxu0 0.0
    %2829 = vmatpush1.msra.mxu0 0.0
    %2830 = vmatprep.subr.mxu0 0.0
    %2831 = vmatpush1.msra.mxu0 0.0
    %2832 = vmatprep.subr.mxu0 0.0
    %2833 = vmatpush1.msra.mxu0 0.0
    %2834 = vmatprep.subr.mxu0 0.0
    %2835 = vmatpush1.msra.mxu0 0.0
    %2836 = vmatprep.subr.mxu0 0.0
    %2837 = vmatpush1.msra.mxu0 0.0
    %2838 = vmatprep.mubr.f32.mxu0 0.0
    %2839 = vmatmul.mubr.f32.gmra.mrb[0].mxu0 %v2002
    %v2840 = vpop.f32.mrb[0].mxu0
    %v2841 = vadd.f32 %v2772, %v2840
    %v2842 = vpop.f32.mrb[0].mxu0
    %2843 = vmatprep.mubr.f32.mxu0 0.0
    %2844 = vmatmul.mubr.f32.gmra.mrb[0].mxu0 %v2005
    %v2845 = vpop.f32.mrb[0].mxu0
    %v2846 = vadd.f32 %v2772, %v2845
    %v2847 = vpop.f32.mrb[0].mxu0
    %2848 = vdwg.mxu0
    %v2850 = vsel %vm606, %v2665, 0
    %v2853 = vsel %vm606, %v2753, 0
    %2855 = vmatprep.subr.mxu0 0.0
    %2856 = vmatpush1.xpose.msra.mxu0 %v2853
    %2857 = vmatprep.subr.mxu0 0.0
    %2858 = vmatpush1.xpose.msra.mxu0 0.0
    %2859 = vmatprep.subr.mxu0 0.0
    %2860 = vmatpush1.xpose.msra.mxu0 0.0
    %2861 = vmatprep.subr.mxu0 0.0
    %2862 = vmatpush1.xpose.msra.mxu0 0.0
    %2863 = vmatprep.subr.mxu0 0.0
    %2864 = vmatpush1.xpose.msra.mxu0 0.0
    %2865 = vmatprep.subr.mxu0 0.0
    %2866 = vmatpush1.xpose.msra.mxu0 0.0
    %2867 = vmatprep.subr.mxu0 0.0
    %2868 = vmatpush1.xpose.msra.mxu0 0.0
    %2869 = vmatprep.subr.mxu0 0.0
    %2870 = vmatpush1.xpose.msra.mxu0 0.0
    %2871 = vmatprep.subr.mxu0 0.0
    %2872 = vmatpush1.xpose.msra.mxu0 0.0
    %2873 = vmatprep.subr.mxu0 0.0
    %2874 = vmatpush1.xpose.msra.mxu0 0.0
    %2875 = vmatprep.subr.mxu0 0.0
    %2876 = vmatpush1.xpose.msra.mxu0 0.0
    %2877 = vmatprep.subr.mxu0 0.0
    %2878 = vmatpush1.xpose.msra.mxu0 0.0
    %2879 = vmatprep.subr.mxu0 0.0
    %2880 = vmatpush1.xpose.msra.mxu0 0.0
    %2881 = vmatprep.subr.mxu0 0.0
    %2882 = vmatpush1.xpose.msra.mxu0 0.0
    %2883 = vmatprep.subr.mxu0 0.0
    %2884 = vmatpush1.xpose.msra.mxu0 0.0
    %2885 = vmatprep.subr.mxu0 0.0
    %2886 = vmatpush1.xpose.msra.mxu0 0.0
    %2887 = vmatprep.subr.mxu0 0.0
    %2888 = vmatpush1.xpose.msra.mxu0 0.0
    %2889 = vmatprep.subr.mxu0 0.0
    %2890 = vmatpush1.xpose.msra.mxu0 0.0
    %2891 = vmatprep.subr.mxu0 0.0
    %2892 = vmatpush1.xpose.msra.mxu0 0.0
    %2893 = vmatprep.subr.mxu0 0.0
    %2894 = vmatpush1.xpose.msra.mxu0 0.0
    %2895 = vmatprep.subr.mxu0 0.0
    %2896 = vmatpush1.xpose.msra.mxu0 0.0
    %2897 = vmatprep.subr.mxu0 0.0
    %2898 = vmatpush1.xpose.msra.mxu0 0.0
    %2899 = vmatprep.subr.mxu0 0.0
    %2900 = vmatpush1.xpose.msra.mxu0 0.0
    %2901 = vmatprep.subr.mxu0 0.0
    %2902 = vmatpush1.xpose.msra.mxu0 0.0
    %2903 = vmatprep.subr.mxu0 0.0
    %2904 = vmatpush1.xpose.msra.mxu0 0.0
    %2905 = vmatprep.subr.mxu0 0.0
    %2906 = vmatpush1.xpose.msra.mxu0 0.0
    %2907 = vmatprep.subr.mxu0 0.0
    %2908 = vmatpush1.xpose.msra.mxu0 0.0
    %2909 = vmatprep.subr.mxu0 0.0
    %2910 = vmatpush1.xpose.msra.mxu0 0.0
    %2911 = vmatprep.subr.mxu0 0.0
    %2912 = vmatpush1.xpose.msra.mxu0 0.0
    %2913 = vmatprep.subr.mxu0 0.0
    %2914 = vmatpush1.xpose.msra.mxu0 0.0
    %2915 = vmatprep.subr.mxu0 0.0
    %2916 = vmatpush1.xpose.msra.mxu0 0.0
    %2917 = vmatprep.subr.mxu0 0.0
    %2918 = vmatpush1.xpose.msra.mxu0 0.0
    %2919 = vmatprep.mubr.f32.mxu0 0.0
    %2920 = vmatmul.mubr.f32.gmra.mrb[0].mxu0 %v2850
    %v2921 = vpop.f32.mrb[0].mxu0
    %v2922 = vadd.f32 0.0, %v2921
    %v2923 = vpop.f32.mrb[0].mxu0
    %2924 = vdwg.mxu0
    %v2926 = vsel %vm606, %v2670, 0
    %v2929 = vsel %vm606, %v2758, 0
    %2931 = vmatprep.subr.mxu0 0.0
    %2932 = vmatpush1.xpose.msra.mxu0 %v2929
    %2933 = vmatprep.subr.mxu0 0.0
    %2934 = vmatpush1.xpose.msra.mxu0 0.0
    %2935 = vmatprep.subr.mxu0 0.0
    %2936 = vmatpush1.xpose.msra.mxu0 0.0
    %2937 = vmatprep.subr.mxu0 0.0
    %2938 = vmatpush1.xpose.msra.mxu0 0.0
    %2939 = vmatprep.subr.mxu0 0.0
    %2940 = vmatpush1.xpose.msra.mxu0 0.0
    %2941 = vmatprep.subr.mxu0 0.0
    %2942 = vmatpush1.xpose.msra.mxu0 0.0
    %2943 = vmatprep.subr.mxu0 0.0
    %2944 = vmatpush1.xpose.msra.mxu0 0.0
    %2945 = vmatprep.subr.mxu0 0.0
    %2946 = vmatpush1.xpose.msra.mxu0 0.0
    %2947 = vmatprep.subr.mxu0 0.0
    %2948 = vmatpush1.xpose.msra.mxu0 0.0
    %2949 = vmatprep.subr.mxu0 0.0
    %2950 = vmatpush1.xpose.msra.mxu0 0.0
    %2951 = vmatprep.subr.mxu0 0.0
    %2952 = vmatpush1.xpose.msra.mxu0 0.0
    %2953 = vmatprep.subr.mxu0 0.0
    %2954 = vmatpush1.xpose.msra.mxu0 0.0
    %2955 = vmatprep.subr.mxu0 0.0
    %2956 = vmatpush1.xpose.msra.mxu0 0.0
    %2957 = vmatprep.subr.mxu0 0.0
    %2958 = vmatpush1.xpose.msra.mxu0 0.0
    %2959 = vmatprep.subr.mxu0 0.0
    %2960 = vmatpush1.xpose.msra.mxu0 0.0
    %2961 = vmatprep.subr.mxu0 0.0
    %2962 = vmatpush1.xpose.msra.mxu0 0.0
    %2963 = vmatprep.subr.mxu0 0.0
    %2964 = vmatpush1.xpose.msra.mxu0 0.0
    %2965 = vmatprep.subr.mxu0 0.0
    %2966 = vmatpush1.xpose.msra.mxu0 0.0
    %2967 = vmatprep.subr.mxu0 0.0
    %2968 = vmatpush1.xpose.msra.mxu0 0.0
    %2969 = vmatprep.subr.mxu0 0.0
    %2970 = vmatpush1.xpose.msra.mxu0 0.0
    %2971 = vmatprep.subr.mxu0 0.0
    %2972 = vmatpush1.xpose.msra.mxu0 0.0
    %2973 = vmatprep.subr.mxu0 0.0
    %2974 = vmatpush1.xpose.msra.mxu0 0.0
    %2975 = vmatprep.subr.mxu0 0.0
    %2976 = vmatpush1.xpose.msra.mxu0 0.0
    %2977 = vmatprep.subr.mxu0 0.0
    %2978 = vmatpush1.xpose.msra.mxu0 0.0
    %2979 = vmatprep.subr.mxu0 0.0
    %2980 = vmatpush1.xpose.msra.mxu0 0.0
    %2981 = vmatprep.subr.mxu0 0.0
    %2982 = vmatpush1.xpose.msra.mxu0 0.0
    %2983 = vmatprep.subr.mxu0 0.0
    %2984 = vmatpush1.xpose.msra.mxu0 0.0
    %2985 = vmatprep.subr.mxu0 0.0
    %2986 = vmatpush1.xpose.msra.mxu0 0.0
    %2987 = vmatprep.subr.mxu0 0.0
    %2988 = vmatpush1.xpose.msra.mxu0 0.0
    %2989 = vmatprep.subr.mxu0 0.0
    %2990 = vmatpush1.xpose.msra.mxu0 0.0
    %2991 = vmatprep.subr.mxu0 0.0
    %2992 = vmatpush1.xpose.msra.mxu0 0.0
    %2993 = vmatprep.subr.mxu0 0.0
    %2994 = vmatpush1.xpose.msra.mxu0 0.0
    %2995 = vmatprep.mubr.f32.mxu0 0.0
    %2996 = vmatmul.mubr.f32.gmra.mrb[0].mxu0 %v2926
    %v2997 = vpop.f32.mrb[0].mxu0
    %v2998 = vadd.f32 0.0, %v2997
    %v2999 = vpop.f32.mrb[0].mxu0
    %3000 = vdwg.mxu0
    %v3001 = vmul.f32 %v2922, 0.25
    %v3002 = vmul.f32 %v2998, 0.25
    %v3003 = vadd.f32 %v3001, %v335
    %v3004 = vadd.f32 %v3002, %v339
    %v3005 = vsel %vm763, %v3003, -inf
    %3006 = vmax.xlane.f32.xlu0 %v3005
    %v3007 = vpop.xlane.xlu0 %3006
    %v3008 = vsel %vm763, %v3004, -inf
    %3009 = vmax.xlane.f32.xlu0 %v3008
    %v3010 = vpop.xlane.xlu0 %3009
    %v3011 = vsub.f32 %v3003, %v3007
    %v3012 = vsub.f32 %v3004, %v3010
    %v3013 = vmul.f32 %v3011, 1.442695
    %v3014 = vpow.pop %v3013
    %v3015 = vmul.f32 %v3012, 1.442695
    %v3016 = vpow.pop %v3015
    %v3017 = vsel %vm763, %v3014, 0.0
    %3018 = vadd.xlane.f32.xlu0 %v3017
    %v3019 = vpop.xlane.xlu0 %3018
    %v3020 = vsel %vm763, %v3016, 0.0
    %3021 = vadd.xlane.f32.xlu0 %v3020
    %v3022 = vpop.xlane.xlu0 %3021
    %v3023 = vrcp.pop %v3019
    %v3024 = vrcp.pop %v3022
    %v3025 = vmul.f32 %v3014, %v3023
    %v3026 = vmul.f32 %v3016, %v3024
    %v3028 = vsel %vm763, %v3025, 0
    %3030 = vmatprep.subr.mxu0 0.0
    %3031 = vmatpush1.msra.mxu0 %v2841
    %3032 = vmatprep.subr.mxu0 0.0
    %3033 = vmatpush1.msra.mxu0 0.0
    %3034 = vmatprep.subr.mxu0 0.0
    %3035 = vmatpush1.msra.mxu0 0.0
    %3036 = vmatprep.subr.mxu0 0.0
    %3037 = vmatpush1.msra.mxu0 0.0
    %3038 = vmatprep.subr.mxu0 0.0
    %3039 = vmatpush1.msra.mxu0 0.0
    %3040 = vmatprep.subr.mxu0 0.0
    %3041 = vmatpush1.msra.mxu0 0.0
    %3042 = vmatprep.subr.mxu0 0.0
    %3043 = vmatpush1.msra.mxu0 0.0
    %3044 = vmatprep.subr.mxu0 0.0
    %3045 = vmatpush1.msra.mxu0 0.0
    %3046 = vmatprep.subr.mxu0 0.0
    %3047 = vmatpush1.msra.mxu0 0.0
    %3048 = vmatprep.subr.mxu0 0.0
    %3049 = vmatpush1.msra.mxu0 0.0
    %3050 = vmatprep.subr.mxu0 0.0
    %3051 = vmatpush1.msra.mxu0 0.0
    %3052 = vmatprep.subr.mxu0 0.0
    %3053 = vmatpush1.msra.mxu0 0.0
    %3054 = vmatprep.subr.mxu0 0.0
    %3055 = vmatpush1.msra.mxu0 0.0
    %3056 = vmatprep.subr.mxu0 0.0
    %3057 = vmatpush1.msra.mxu0 0.0
    %3058 = vmatprep.subr.mxu0 0.0
    %3059 = vmatpush1.msra.mxu0 0.0
    %3060 = vmatprep.subr.mxu0 0.0
    %3061 = vmatpush1.msra.mxu0 0.0
    %3062 = vmatprep.subr.mxu0 0.0
    %3063 = vmatpush1.msra.mxu0 0.0
    %3064 = vmatprep.subr.mxu0 0.0
    %3065 = vmatpush1.msra.mxu0 0.0
    %3066 = vmatprep.subr.mxu0 0.0
    %3067 = vmatpush1.msra.mxu0 0.0
    %3068 = vmatprep.subr.mxu0 0.0
    %3069 = vmatpush1.msra.mxu0 0.0
    %3070 = vmatprep.subr.mxu0 0.0
    %3071 = vmatpush1.msra.mxu0 0.0
    %3072 = vmatprep.subr.mxu0 0.0
    %3073 = vmatpush1.msra.mxu0 0.0
    %3074 = vmatprep.subr.mxu0 0.0
    %3075 = vmatpush1.msra.mxu0 0.0
    %3076 = vmatprep.subr.mxu0 0.0
    %3077 = vmatpush1.msra.mxu0 0.0
    %3078 = vmatprep.subr.mxu0 0.0
    %3079 = vmatpush1.msra.mxu0 0.0
    %3080 = vmatprep.subr.mxu0 0.0
    %3081 = vmatpush1.msra.mxu0 0.0
    %3082 = vmatprep.subr.mxu0 0.0
    %3083 = vmatpush1.msra.mxu0 0.0
    %3084 = vmatprep.subr.mxu0 0.0
    %3085 = vmatpush1.msra.mxu0 0.0
    %3086 = vmatprep.subr.mxu0 0.0
    %3087 = vmatpush1.msra.mxu0 0.0
    %3088 = vmatprep.subr.mxu0 0.0
    %3089 = vmatpush1.msra.mxu0 0.0
    %3090 = vmatprep.subr.mxu0 0.0
    %3091 = vmatpush1.msra.mxu0 0.0
    %3092 = vmatprep.subr.mxu0 0.0
    %3093 = vmatpush1.msra.mxu0 0.0
    %3094 = vmatprep.mubr.f32.mxu0 0.0
    %3095 = vmatmul.mubr.f32.gmra.mrb[0].mxu0 %v3028
    %v3096 = vpop.f32.mrb[0].mxu0
    %v3097 = vadd.f32 0.0, %v3096
    %v3098 = vpop.f32.mrb[0].mxu0
    %3099 = vdwg.mxu0
    %v3101 = vsel %vm763, %v3026, 0
    %3103 = vmatprep.subr.mxu0 0.0
    %3104 = vmatpush1.msra.mxu0 %v2846
    %3105 = vmatprep.subr.mxu0 0.0
    %3106 = vmatpush1.msra.mxu0 0.0
    %3107 = vmatprep.subr.mxu0 0.0
    %3108 = vmatpush1.msra.mxu0 0.0
    %3109 = vmatprep.subr.mxu0 0.0
    %3110 = vmatpush1.msra.mxu0 0.0
    %3111 = vmatprep.subr.mxu0 0.0
    %3112 = vmatpush1.msra.mxu0 0.0
    %3113 = vmatprep.subr.mxu0 0.0
    %3114 = vmatpush1.msra.mxu0 0.0
    %3115 = vmatprep.subr.mxu0 0.0
    %3116 = vmatpush1.msra.mxu0 0.0
    %3117 = vmatprep.subr.mxu0 0.0
    %3118 = vmatpush1.msra.mxu0 0.0
    %3119 = vmatprep.subr.mxu0 0.0
    %3120 = vmatpush1.msra.mxu0 0.0
    %3121 = vmatprep.subr.mxu0 0.0
    %3122 = vmatpush1.msra.mxu0 0.0
    %3123 = vmatprep.subr.mxu0 0.0
    %3124 = vmatpush1.msra.mxu0 0.0
    %3125 = vmatprep.subr.mxu0 0.0
    %3126 = vmatpush1.msra.mxu0 0.0
    %3127 = vmatprep.subr.mxu0 0.0
    %3128 = vmatpush1.msra.mxu0 0.0
    %3129 = vmatprep.subr.mxu0 0.0
    %3130 = vmatpush1.msra.mxu0 0.0
    %3131 = vmatprep.subr.mxu0 0.0
    %3132 = vmatpush1.msra.mxu0 0.0
    %3133 = vmatprep.subr.mxu0 0.0
    %3134 = vmatpush1.msra.mxu0 0.0
    %3135 = vmatprep.subr.mxu0 0.0
    %3136 = vmatpush1.msra.mxu0 0.0
    %3137 = vmatprep.subr.mxu0 0.0
    %3138 = vmatpush1.msra.mxu0 0.0
    %3139 = vmatprep.subr.mxu0 0.0
    %3140 = vmatpush1.msra.mxu0 0.0
    %3141 = vmatprep.subr.mxu0 0.0
    %3142 = vmatpush1.msra.mxu0 0.0
    %3143 = vmatprep.subr.mxu0 0.0
    %3144 = vmatpush1.msra.mxu0 0.0
    %3145 = vmatprep.subr.mxu0 0.0
    %3146 = vmatpush1.msra.mxu0 0.0
    %3147 = vmatprep.subr.mxu0 0.0
    %3148 = vmatpush1.msra.mxu0 0.0
    %3149 = vmatprep.subr.mxu0 0.0
    %3150 = vmatpush1.msra.mxu0 0.0
    %3151 = vmatprep.subr.mxu0 0.0
    %3152 = vmatpush1.msra.mxu0 0.0
    %3153 = vmatprep.subr.mxu0 0.0
    %3154 = vmatpush1.msra.mxu0 0.0
    %3155 = vmatprep.subr.mxu0 0.0
    %3156 = vmatpush1.msra.mxu0 0.0
    %3157 = vmatprep.subr.mxu0 0.0
    %3158 = vmatpush1.msra.mxu0 0.0
    %3159 = vmatprep.subr.mxu0 0.0
    %3160 = vmatpush1.msra.mxu0 0.0
    %3161 = vmatprep.subr.mxu0 0.0
    %3162 = vmatpush1.msra.mxu0 0.0
    %3163 = vmatprep.subr.mxu0 0.0
    %3164 = vmatpush1.msra.mxu0 0.0
    %3165 = vmatprep.subr.mxu0 0.0
    %3166 = vmatpush1.msra.mxu0 0.0
    %3167 = vmatprep.mubr.f32.mxu0 0.0
    %3168 = vmatmul.mubr.f32.gmra.mrb[0].mxu0 %v3101
    %v3169 = vpop.f32.mrb[0].mxu0
    %v3170 = vadd.f32 0.0, %v3169
    %v3171 = vpop.f32.mrb[0].mxu0
    %3172 = vdwg.mxu0
    %s3173 = scalar_lea.vmem %s14, 48
    %v3174 = vld [vmem:[%s3173] sm:$0xff]
    %v3175 = vld [vmem:[%s3173 + $0x8] sm:$0xff]
    %v3177 = vsel %vm606, %v3097, 0
    %v3180 = vsel %vm606, %v3170, 0
    %3182 = vmatprep.subr.mxu0 0.0
    %3183 = vmatpush1.msra.mxu0 %v3174
    %3184 = vmatprep.subr.mxu0 0.0
    %3185 = vmatpush1.msra.mxu0 %v3175
    %3186 = vmatprep.subr.mxu0 0.0
    %3187 = vmatpush1.msra.mxu0 0.0
    %3188 = vmatprep.subr.mxu0 0.0
    %3189 = vmatpush1.msra.mxu0 0.0
    %3190 = vmatprep.subr.mxu0 0.0
    %3191 = vmatpush1.msra.mxu0 0.0
    %3192 = vmatprep.subr.mxu0 0.0
    %3193 = vmatpush1.msra.mxu0 0.0
    %3194 = vmatprep.subr.mxu0 0.0
    %3195 = vmatpush1.msra.mxu0 0.0
    %3196 = vmatprep.subr.mxu0 0.0
    %3197 = vmatpush1.msra.mxu0 0.0
    %3198 = vmatprep.subr.mxu0 0.0
    %3199 = vmatpush1.msra.mxu0 0.0
    %3200 = vmatprep.subr.mxu0 0.0
    %3201 = vmatpush1.msra.mxu0 0.0
    %3202 = vmatprep.subr.mxu0 0.0
    %3203 = vmatpush1.msra.mxu0 0.0
    %3204 = vmatprep.subr.mxu0 0.0
    %3205 = vmatpush1.msra.mxu0 0.0
    %3206 = vmatprep.subr.mxu0 0.0
    %3207 = vmatpush1.msra.mxu0 0.0
    %3208 = vmatprep.subr.mxu0 0.0
    %3209 = vmatpush1.msra.mxu0 0.0
    %3210 = vmatprep.subr.mxu0 0.0
    %3211 = vmatpush1.msra.mxu0 0.0
    %3212 = vmatprep.subr.mxu0 0.0
    %3213 = vmatpush1.msra.mxu0 0.0
    %3214 = vmatprep.subr.mxu0 0.0
    %3215 = vmatpush1.msra.mxu0 0.0
    %3216 = vmatprep.subr.mxu0 0.0
    %3217 = vmatpush1.msra.mxu0 0.0
    %3218 = vmatprep.subr.mxu0 0.0
    %3219 = vmatpush1.msra.mxu0 0.0
    %3220 = vmatprep.subr.mxu0 0.0
    %3221 = vmatpush1.msra.mxu0 0.0
    %3222 = vmatprep.subr.mxu0 0.0
    %3223 = vmatpush1.msra.mxu0 0.0
    %3224 = vmatprep.subr.mxu0 0.0
    %3225 = vmatpush1.msra.mxu0 0.0
    %3226 = vmatprep.subr.mxu0 0.0
    %3227 = vmatpush1.msra.mxu0 0.0
    %3228 = vmatprep.subr.mxu0 0.0
    %3229 = vmatpush1.msra.mxu0 0.0
    %3230 = vmatprep.subr.mxu0 0.0
    %3231 = vmatpush1.msra.mxu0 0.0
    %3232 = vmatprep.subr.mxu0 0.0
    %3233 = vmatpush1.msra.mxu0 0.0
    %3234 = vmatprep.subr.mxu0 0.0
    %3235 = vmatpush1.msra.mxu0 0.0
    %3236 = vmatprep.subr.mxu0 0.0
    %3237 = vmatpush1.msra.mxu0 0.0
    %3238 = vmatprep.subr.mxu0 0.0
    %3239 = vmatpush1.msra.mxu0 0.0
    %3240 = vmatprep.subr.mxu0 0.0
    %3241 = vmatpush1.msra.mxu0 0.0
    %3242 = vmatprep.subr.mxu0 0.0
    %3243 = vmatpush1.msra.mxu0 0.0
    %3244 = vmatprep.subr.mxu0 0.0
    %3245 = vmatpush1.msra.mxu0 0.0
    %3246 = vmatprep.mubr.f32.mxu0 0.0
    %3247 = vmatmul.mubr.f32.gmra.mrb[0].mxu0 %v3177
    %v3248 = vpop.f32.mrb[0].mxu0
    %v3249 = vadd.f32 0.0, %v3248
    %v3250 = vpop.f32.mrb[0].mxu0
    %3251 = vmatprep.mubr.f32.mxu0 0.0
    %3252 = vmatmul.mubr.f32.gmra.mrb[0].mxu0 %v3180
    %v3253 = vpop.f32.mrb[0].mxu0
    %v3254 = vadd.f32 0.0, %v3253
    %v3255 = vpop.f32.mrb[0].mxu0
    %3256 = vdwg.mxu0
    %v3258 = vsel %vm606, %v2506, 0
    %v3261 = vsel %vm606, %v2579, 0
    %3263 = vmatprep.subr.mxu0 0.0
    %3264 = vmatpush1.msra.mxu0 %v2583
    %3265 = vmatprep.subr.mxu0 0.0
    %3266 = vmatpush1.msra.mxu0 %v2584
    %3267 = vmatprep.subr.mxu0 0.0
    %3268 = vmatpush1.msra.mxu0 0.0
    %3269 = vmatprep.subr.mxu0 0.0
    %3270 = vmatpush1.msra.mxu0 0.0
    %3271 = vmatprep.subr.mxu0 0.0
    %3272 = vmatpush1.msra.mxu0 0.0
    %3273 = vmatprep.subr.mxu0 0.0
    %3274 = vmatpush1.msra.mxu0 0.0
    %3275 = vmatprep.subr.mxu0 0.0
    %3276 = vmatpush1.msra.mxu0 0.0
    %3277 = vmatprep.subr.mxu0 0.0
    %3278 = vmatpush1.msra.mxu0 0.0
    %3279 = vmatprep.subr.mxu0 0.0
    %3280 = vmatpush1.msra.mxu0 0.0
    %3281 = vmatprep.subr.mxu0 0.0
    %3282 = vmatpush1.msra.mxu0 0.0
    %3283 = vmatprep.subr.mxu0 0.0
    %3284 = vmatpush1.msra.mxu0 0.0
    %3285 = vmatprep.subr.mxu0 0.0
    %3286 = vmatpush1.msra.mxu0 0.0
    %3287 = vmatprep.subr.mxu0 0.0
    %3288 = vmatpush1.msra.mxu0 0.0
    %3289 = vmatprep.subr.mxu0 0.0
    %3290 = vmatpush1.msra.mxu0 0.0
    %3291 = vmatprep.subr.mxu0 0.0
    %3292 = vmatpush1.msra.mxu0 0.0
    %3293 = vmatprep.subr.mxu0 0.0
    %3294 = vmatpush1.msra.mxu0 0.0
    %3295 = vmatprep.subr.mxu0 0.0
    %3296 = vmatpush1.msra.mxu0 0.0
    %3297 = vmatprep.subr.mxu0 0.0
    %3298 = vmatpush1.msra.mxu0 0.0
    %3299 = vmatprep.subr.mxu0 0.0
    %3300 = vmatpush1.msra.mxu0 0.0
    %3301 = vmatprep.subr.mxu0 0.0
    %3302 = vmatpush1.msra.mxu0 0.0
    %3303 = vmatprep.subr.mxu0 0.0
    %3304 = vmatpush1.msra.mxu0 0.0
    %3305 = vmatprep.subr.mxu0 0.0
    %3306 = vmatpush1.msra.mxu0 0.0
    %3307 = vmatprep.subr.mxu0 0.0
    %3308 = vmatpush1.msra.mxu0 0.0
    %3309 = vmatprep.subr.mxu0 0.0
    %3310 = vmatpush1.msra.mxu0 0.0
    %3311 = vmatprep.subr.mxu0 0.0
    %3312 = vmatpush1.msra.mxu0 0.0
    %3313 = vmatprep.subr.mxu0 0.0
    %3314 = vmatpush1.msra.mxu0 0.0
    %3315 = vmatprep.subr.mxu0 0.0
    %3316 = vmatpush1.msra.mxu0 0.0
    %3317 = vmatprep.subr.mxu0 0.0
    %3318 = vmatpush1.msra.mxu0 0.0
    %3319 = vmatprep.subr.mxu0 0.0
    %3320 = vmatpush1.msra.mxu0 0.0
    %3321 = vmatprep.subr.mxu0 0.0
    %3322 = vmatpush1.msra.mxu0 0.0
    %3323 = vmatprep.subr.mxu0 0.0
    %3324 = vmatpush1.msra.mxu0 0.0
    %3325 = vmatprep.subr.mxu0 0.0
    %3326 = vmatpush1.msra.mxu0 0.0
    %3327 = vmatprep.mubr.f32.mxu0 0.0
    %3328 = vmatmul.mubr.f32.gmra.mrb[0].mxu0 %v3258
    %v3329 = vpop.f32.mrb[0].mxu0
    %v3330 = vadd.f32 %v3249, %v3329
    %v3331 = vpop.f32.mrb[0].mxu0
    %3332 = vmatprep.mubr.f32.mxu0 0.0
    %3333 = vmatmul.mubr.f32.gmra.mrb[0].mxu0 %v3261
    %v3334 = vpop.f32.mrb[0].mxu0
    %v3335 = vadd.f32 %v3254, %v3334
    %v3336 = vpop.f32.mrb[0].mxu0
    %3337 = vdwg.mxu0
    %s3338 = scalar_lea.vmem %s15, 1
    %v3339 = vld [vmem:[%s3338] sm:$0x1]
    %v3341 = vlaneseq
    %v3342 = vshrl.u32 %v3341, 7
    %v3343 = vsub.s32 0, %v3342
    %v3344 = vrot.slane %v3339, %v3343
    %v3346 = vadd.f32 %v3330, %v3344
    %v3347 = vadd.f32 %v3335, %v3344
    %v3348 = vadd.f32 %v3346, %v1986
    %v3349 = vadd.f32 %v3347, %v1987
    %s3350 = scalar_lea.vmem %s16, 1
    %v3351 = vld [vmem:[%s3350] sm:$0x1]
    %s3352 = scalar_lea.vmem %s17, 1
    %v3353 = vld [vmem:[%s3352] sm:$0x1]
    %v3354 = vsel %vm261, %v3348, 0.0
    %3355 = vadd.xlane.f32.xlu0 %v3354
    %v3356 = vpop.xlane.xlu0 %3355
    %v3357 = vsel %vm261, %v3349, 0.0
    %3358 = vadd.xlane.f32.xlu0 %v3357
    %v3359 = vpop.xlane.xlu0 %3358
    %v3360 = vmul.f32 %v3356, %v268
    %v3361 = vmul.f32 %v3359, %v268
    %v3362 = vsub.f32 %v3348, %v3360
    %v3363 = vsub.f32 %v3349, %v3361
    %v3364 = vmul.f32 %v3362, %v3362
    %v3365 = vmul.f32 %v3363, %v3363
    %v3366 = vsel %vm261, %v3364, 0.0
    %3367 = vadd.xlane.f32.xlu0 %v3366
    %v3368 = vpop.xlane.xlu0 %3367
    %v3369 = vsel %vm261, %v3365, 0.0
    %3370 = vadd.xlane.f32.xlu0 %v3369
    %v3371 = vpop.xlane.xlu0 %3370
    %v3372 = vmul.f32 %v3368, %v268
    %v3373 = vmul.f32 %v3371, %v268
    %v3374 = vadd.f32 %v3372, 1e-12
    %v3375 = vadd.f32 %v3373, 1e-12
    %v3376 = vrsqrt.pop %v3374
    %v3377 = vrsqrt.pop %v3375
    %v3378 = vmul.f32 %v3362, %v3376
    %v3379 = vmul.f32 %v3363, %v3377
    %v3381 = vlaneseq
    %v3382 = vshrl.u32 %v3381, 7
    %v3383 = vsub.s32 0, %v3382
    %v3384 = vrot.slane %v3351, %v3383
    %v3386 = vmul.f32 %v3378, %v3384
    %v3387 = vmul.f32 %v3379, %v3384
    %v3389 = vlaneseq
    %v3390 = vshrl.u32 %v3389, 7
    %v3391 = vsub.s32 0, %v3390
    %v3392 = vrot.slane %v3353, %v3391
    %v3394 = vadd.f32 %v3386, %v3392
    %v3395 = vadd.f32 %v3387, %v3392
    %s3396 = scalar_lea.vmem %s18, 32
    %v3397 = vld [vmem:[%s3396] sm:$0xff]
    %v3398 = vld [vmem:[%s3396 + $0x8] sm:$0xff]
    %v3399 = vld [vmem:[%s3396 + $0x10] sm:$0xff]
    %v3400 = vld [vmem:[%s3396 + $0x18] sm:$0xff]
    %s3401 = scalar_lea.vmem %s19, 1
    %v3402 = vld [vmem:[%s3401] sm:$0x1]
    %v3404 = vlaneseq
    %v3405 = vshrl.u32 %v3404, 7
    %v3406 = vsub.s32 0, %v3405
    %v3407 = vrot.slane %v3402, %v3406
    %v3410 = vsel %vm261, %v3394, 0
    %v3413 = vsel %vm261, %v3395, 0
    %3415 = vmatprep.subr.mxu0 0.0
    %3416 = vmatpush1.msra.mxu0 %v3397
    %3417 = vmatprep.subr.mxu0 0.0
    %3418 = vmatpush1.msra.mxu0 %v3398
    %3419 = vmatprep.subr.mxu0 0.0
    %3420 = vmatpush1.msra.mxu0 %v3399
    %3421 = vmatprep.subr.mxu0 0.0
    %3422 = vmatpush1.msra.mxu0 %v3400
    %3423 = vmatprep.subr.mxu0 0.0
    %3424 = vmatpush1.msra.mxu0 0.0
    %3425 = vmatprep.subr.mxu0 0.0
    %3426 = vmatpush1.msra.mxu0 0.0
    %3427 = vmatprep.subr.mxu0 0.0
    %3428 = vmatpush1.msra.mxu0 0.0
    %3429 = vmatprep.subr.mxu0 0.0
    %3430 = vmatpush1.msra.mxu0 0.0
    %3431 = vmatprep.subr.mxu0 0.0
    %3432 = vmatpush1.msra.mxu0 0.0
    %3433 = vmatprep.subr.mxu0 0.0
    %3434 = vmatpush1.msra.mxu0 0.0
    %3435 = vmatprep.subr.mxu0 0.0
    %3436 = vmatpush1.msra.mxu0 0.0
    %3437 = vmatprep.subr.mxu0 0.0
    %3438 = vmatpush1.msra.mxu0 0.0
    %3439 = vmatprep.subr.mxu0 0.0
    %3440 = vmatpush1.msra.mxu0 0.0
    %3441 = vmatprep.subr.mxu0 0.0
    %3442 = vmatpush1.msra.mxu0 0.0
    %3443 = vmatprep.subr.mxu0 0.0
    %3444 = vmatpush1.msra.mxu0 0.0
    %3445 = vmatprep.subr.mxu0 0.0
    %3446 = vmatpush1.msra.mxu0 0.0
    %3447 = vmatprep.subr.mxu0 0.0
    %3448 = vmatpush1.msra.mxu0 0.0
    %3449 = vmatprep.subr.mxu0 0.0
    %3450 = vmatpush1.msra.mxu0 0.0
    %3451 = vmatprep.subr.mxu0 0.0
    %3452 = vmatpush1.msra.mxu0 0.0
    %3453 = vmatprep.subr.mxu0 0.0
    %3454 = vmatpush1.msra.mxu0 0.0
    %3455 = vmatprep.subr.mxu0 0.0
    %3456 = vmatpush1.msra.mxu0 0.0
    %3457 = vmatprep.subr.mxu0 0.0
    %3458 = vmatpush1.msra.mxu0 0.0
    %3459 = vmatprep.subr.mxu0 0.0
    %3460 = vmatpush1.msra.mxu0 0.0
    %3461 = vmatprep.subr.mxu0 0.0
    %3462 = vmatpush1.msra.mxu0 0.0
    %3463 = vmatprep.subr.mxu0 0.0
    %3464 = vmatpush1.msra.mxu0 0.0
    %3465 = vmatprep.subr.mxu0 0.0
    %3466 = vmatpush1.msra.mxu0 0.0
    %3467 = vmatprep.subr.mxu0 0.0
    %3468 = vmatpush1.msra.mxu0 0.0
    %3469 = vmatprep.subr.mxu0 0.0
    %3470 = vmatpush1.msra.mxu0 0.0
    %3471 = vmatprep.subr.mxu0 0.0
    %3472 = vmatpush1.msra.mxu0 0.0
    %3473 = vmatprep.subr.mxu0 0.0
    %3474 = vmatpush1.msra.mxu0 0.0
    %3475 = vmatprep.subr.mxu0 0.0
    %3476 = vmatpush1.msra.mxu0 0.0
    %3477 = vmatprep.subr.mxu0 0.0
    %3478 = vmatpush1.msra.mxu0 0.0
    %3479 = vmatprep.mubr.f32.mxu0 0.0
    %3480 = vmatmul.mubr.f32.gmra.mrb[0].mxu0 %v3410
    %v3481 = vpop.f32.mrb[0].mxu0
    %v3482 = vadd.f32 %v3407, %v3481
    %v3483 = vpop.f32.mrb[0].mxu0
    %3484 = vmatprep.mubr.f32.mxu0 0.0
    %3485 = vmatmul.mubr.f32.gmra.mrb[0].mxu0 %v3413
    %v3486 = vpop.f32.mrb[0].mxu0
    %v3487 = vadd.f32 %v3407, %v3486
    %v3488 = vpop.f32.mrb[0].mxu0
    %3489 = vdwg.mxu0
    %v3490 = vmul.f32 %v3482, 0.5
    %v3491 = vmul.f32 %v3487, 0.5
    %v3492 = vmul.f32 %v3482, %v1836
    %v3493 = vmul.f32 %v3487, %v1836
    %v3494 = verf.f32.pop %v3492
    %v3495 = verf.f32.pop %v3493
    %v3496 = vadd.f32 %v3494, 1.0
    %v3497 = vadd.f32 %v3495, 1.0
    %v3498 = vmul.f32 %v3490, %v3496
    %v3499 = vmul.f32 %v3491, %v3497
    %s3500 = scalar_lea.vmem %s20, 64
    %v3501 = vld [vmem:[%s3500] sm:$0xff]
    %v3502 = vld [vmem:[%s3500 + $0x8] sm:$0xff]
    %v3503 = vld [vmem:[%s3500 + $0x10] sm:$0xff]
    %v3504 = vld [vmem:[%s3500 + $0x18] sm:$0xff]
    %v3505 = vld [vmem:[%s3500 + $0x20] sm:$0xff]
    %v3506 = vld [vmem:[%s3500 + $0x28] sm:$0xff]
    %v3507 = vld [vmem:[%s3500 + $0x30] sm:$0xff]
    %v3508 = vld [vmem:[%s3500 + $0x38] sm:$0xff]
    %s3509 = scalar_lea.vmem %s21, 1
    %v3510 = vld [vmem:[%s3509] sm:$0x1]
    %v3512 = vlaneseq
    %v3513 = vshrl.u32 %v3512, 7
    %v3514 = vsub.s32 0, %v3513
    %v3515 = vrot.slane %v3510, %v3514
    %v3518 = vsel %vm1860, %v3498, 0
    %v3521 = vsel %vm1860, %v3499, 0
    %3523 = vmatprep.subr.mxu0 0.0
    %3524 = vmatpush1.msra.mxu0 %v3501
    %3525 = vmatprep.subr.mxu0 0.0
    %3526 = vmatpush1.msra.mxu0 %v3502
    %3527 = vmatprep.subr.mxu0 0.0
    %3528 = vmatpush1.msra.mxu0 %v3503
    %3529 = vmatprep.subr.mxu0 0.0
    %3530 = vmatpush1.msra.mxu0 %v3504
    %3531 = vmatprep.subr.mxu0 0.0
    %3532 = vmatpush1.msra.mxu0 %v3505
    %3533 = vmatprep.subr.mxu0 0.0
    %3534 = vmatpush1.msra.mxu0 %v3506
    %3535 = vmatprep.subr.mxu0 0.0
    %3536 = vmatpush1.msra.mxu0 %v3507
    %3537 = vmatprep.subr.mxu0 0.0
    %3538 = vmatpush1.msra.mxu0 %v3508
    %3539 = vmatprep.subr.mxu0 0.0
    %3540 = vmatpush1.msra.mxu0 0.0
    %3541 = vmatprep.subr.mxu0 0.0
    %3542 = vmatpush1.msra.mxu0 0.0
    %3543 = vmatprep.subr.mxu0 0.0
    %3544 = vmatpush1.msra.mxu0 0.0
    %3545 = vmatprep.subr.mxu0 0.0
    %3546 = vmatpush1.msra.mxu0 0.0
    %3547 = vmatprep.subr.mxu0 0.0
    %3548 = vmatpush1.msra.mxu0 0.0
    %3549 = vmatprep.subr.mxu0 0.0
    %3550 = vmatpush1.msra.mxu0 0.0
    %3551 = vmatprep.subr.mxu0 0.0
    %3552 = vmatpush1.msra.mxu0 0.0
    %3553 = vmatprep.subr.mxu0 0.0
    %3554 = vmatpush1.msra.mxu0 0.0
    %3555 = vmatprep.subr.mxu0 0.0
    %3556 = vmatpush1.msra.mxu0 0.0
    %3557 = vmatprep.subr.mxu0 0.0
    %3558 = vmatpush1.msra.mxu0 0.0
    %3559 = vmatprep.subr.mxu0 0.0
    %3560 = vmatpush1.msra.mxu0 0.0
    %3561 = vmatprep.subr.mxu0 0.0
    %3562 = vmatpush1.msra.mxu0 0.0
    %3563 = vmatprep.subr.mxu0 0.0
    %3564 = vmatpush1.msra.mxu0 0.0
    %3565 = vmatprep.subr.mxu0 0.0
    %3566 = vmatpush1.msra.mxu0 0.0
    %3567 = vmatprep.subr.mxu0 0.0
    %3568 = vmatpush1.msra.mxu0 0.0
    %3569 = vmatprep.subr.mxu0 0.0
    %3570 = vmatpush1.msra.mxu0 0.0
    %3571 = vmatprep.subr.mxu0 0.0
    %3572 = vmatpush1.msra.mxu0 0.0
    %3573 = vmatprep.subr.mxu0 0.0
    %3574 = vmatpush1.msra.mxu0 0.0
    %3575 = vmatprep.subr.mxu0 0.0
    %3576 = vmatpush1.msra.mxu0 0.0
    %3577 = vmatprep.subr.mxu0 0.0
    %3578 = vmatpush1.msra.mxu0 0.0
    %3579 = vmatprep.subr.mxu0 0.0
    %3580 = vmatpush1.msra.mxu0 0.0
    %3581 = vmatprep.subr.mxu0 0.0
    %3582 = vmatpush1.msra.mxu0 0.0
    %3583 = vmatprep.subr.mxu0 0.0
    %3584 = vmatpush1.msra.mxu0 0.0
    %3585 = vmatprep.subr.mxu0 0.0
    %3586 = vmatpush1.msra.mxu0 0.0
    %3587 = vmatprep.mubr.f32.mxu0 0.0
    %3588 = vmatmul.mubr.f32.gmra.mrb[0].mxu0 %v3518
    %v3589 = vpop.f32.mrb[0].mxu0
    %v3590 = vadd.f32 %v3515, %v3589
    %v3591 = vpop.f32.mrb[0].mxu0
    %3592 = vmatprep.mubr.f32.mxu0 0.0
    %3593 = vmatmul.mubr.f32.gmra.mrb[0].mxu0 %v3521
    %v3594 = vpop.f32.mrb[0].mxu0
    %v3595 = vadd.f32 %v3515, %v3594
    %v3596 = vpop.f32.mrb[0].mxu0
    %3597 = vdwg.mxu0
    %v3598 = vadd.f32 %v3590, %v3394
    %v3599 = vadd.f32 %v3595, %v3395
    %s3600 = scalar_lea.vmem %s22, 1
    %v3601 = vld [vmem:[%s3600] sm:$0x1]
    %s3602 = scalar_lea.vmem %s23, 1
    %v3603 = vld [vmem:[%s3602] sm:$0x1]
    %v3604 = vsel %vm261, %v3598, 0.0
    %3605 = vadd.xlane.f32.xlu0 %v3604
    %v3606 = vpop.xlane.xlu0 %3605
    %v3607 = vsel %vm261, %v3599, 0.0
    %3608 = vadd.xlane.f32.xlu0 %v3607
    %v3609 = vpop.xlane.xlu0 %3608
    %v3610 = vmul.f32 %v3606, %v268
    %v3611 = vmul.f32 %v3609, %v268
    %v3612 = vsub.f32 %v3598, %v3610
    %v3613 = vsub.f32 %v3599, %v3611
    %v3614 = vmul.f32 %v3612, %v3612
    %v3615 = vmul.f32 %v3613, %v3613
    %v3616 = vsel %vm261, %v3614, 0.0
    %3617 = vadd.xlane.f32.xlu0 %v3616
    %v3618 = vpop.xlane.xlu0 %3617
    %v3619 = vsel %vm261, %v3615, 0.0
    %3620 = vadd.xlane.f32.xlu0 %v3619
    %v3621 = vpop.xlane.xlu0 %3620
    %v3622 = vmul.f32 %v3618, %v268
    %v3623 = vmul.f32 %v3621, %v268
    %v3624 = vadd.f32 %v3622, 1e-12
    %v3625 = vadd.f32 %v3623, 1e-12
    %v3626 = vrsqrt.pop %v3624
    %v3627 = vrsqrt.pop %v3625
    %v3628 = vmul.f32 %v3612, %v3626
    %v3629 = vmul.f32 %v3613, %v3627
    %v3631 = vlaneseq
    %v3632 = vshrl.u32 %v3631, 7
    %v3633 = vsub.s32 0, %v3632
    %v3634 = vrot.slane %v3601, %v3633
    %v3636 = vmul.f32 %v3628, %v3634
    %v3637 = vmul.f32 %v3629, %v3634
    %v3639 = vlaneseq
    %v3640 = vshrl.u32 %v3639, 7
    %v3641 = vsub.s32 0, %v3640
    %v3642 = vrot.slane %v3603, %v3641
    %v3644 = vadd.f32 %v3636, %v3642
    %v3645 = vadd.f32 %v3637, %v3642
    %v3646 = vld [vmem:[%s24] sm:$0xff]
    %v3647 = vld [vmem:[%s24 + $0x8] sm:$0xff]
    %v3648 = vld [vmem:[%s24 + $0x10] sm:$0xff]
    %v3649 = vld [vmem:[%s24 + $0x18] sm:$0xff]
    %v3650 = vld [vmem:[%s25] sm:$0x1]
    %v3652 = vlaneseq
    %v3653 = vshrl.u32 %v3652, 7
    %v3654 = vsub.s32 0, %v3653
    %v3655 = vrot.slane %v3650, %v3654
    %v3659 = vrot.slane %v3645, 7
    %vm3660 = vcmask 1041409
    %v3661 = vsel %vm3660, %v3659, %v3644
    %v3662 = vsel %vm261, %v3661, 0
    %3664 = vmatprep.subr.mxu0 0.0
    %3665 = vmatpush1.msra.mxu0 %v3646
    %3666 = vmatprep.subr.mxu0 0.0
    %3667 = vmatpush1.msra.mxu0 %v3647
    %3668 = vmatprep.subr.mxu0 0.0
    %3669 = vmatpush1.msra.mxu0 %v3648
    %3670 = vmatprep.subr.mxu0 0.0
    %3671 = vmatpush1.msra.mxu0 %v3649
    %3672 = vmatprep.subr.mxu0 0.0
    %3673 = vmatpush1.msra.mxu0 0.0
    %3674 = vmatprep.subr.mxu0 0.0
    %3675 = vmatpush1.msra.mxu0 0.0
    %3676 = vmatprep.subr.mxu0 0.0
    %3677 = vmatpush1.msra.mxu0 0.0
    %3678 = vmatprep.subr.mxu0 0.0
    %3679 = vmatpush1.msra.mxu0 0.0
    %3680 = vmatprep.subr.mxu0 0.0
    %3681 = vmatpush1.msra.mxu0 0.0
    %3682 = vmatprep.subr.mxu0 0.0
    %3683 = vmatpush1.msra.mxu0 0.0
    %3684 = vmatprep.subr.mxu0 0.0
    %3685 = vmatpush1.msra.mxu0 0.0
    %3686 = vmatprep.subr.mxu0 0.0
    %3687 = vmatpush1.msra.mxu0 0.0
    %3688 = vmatprep.subr.mxu0 0.0
    %3689 = vmatpush1.msra.mxu0 0.0
    %3690 = vmatprep.subr.mxu0 0.0
    %3691 = vmatpush1.msra.mxu0 0.0
    %3692 = vmatprep.subr.mxu0 0.0
    %3693 = vmatpush1.msra.mxu0 0.0
    %3694 = vmatprep.subr.mxu0 0.0
    %3695 = vmatpush1.msra.mxu0 0.0
    %3696 = vmatprep.subr.mxu0 0.0
    %3697 = vmatpush1.msra.mxu0 0.0
    %3698 = vmatprep.subr.mxu0 0.0
    %3699 = vmatpush1.msra.mxu0 0.0
    %3700 = vmatprep.subr.mxu0 0.0
    %3701 = vmatpush1.msra.mxu0 0.0
    %3702 = vmatprep.subr.mxu0 0.0
    %3703 = vmatpush1.msra.mxu0 0.0
    %3704 = vmatprep.subr.mxu0 0.0
    %3705 = vmatpush1.msra.mxu0 0.0
    %3706 = vmatprep.subr.mxu0 0.0
    %3707 = vmatpush1.msra.mxu0 0.0
    %3708 = vmatprep.subr.mxu0 0.0
    %3709 = vmatpush1.msra.mxu0 0.0
    %3710 = vmatprep.subr.mxu0 0.0
    %3711 = vmatpush1.msra.mxu0 0.0
    %3712 = vmatprep.subr.mxu0 0.0
    %3713 = vmatpush1.msra.mxu0 0.0
    %3714 = vmatprep.subr.mxu0 0.0
    %3715 = vmatpush1.msra.mxu0 0.0
    %3716 = vmatprep.subr.mxu0 0.0
    %3717 = vmatpush1.msra.mxu0 0.0
    %3718 = vmatprep.subr.mxu0 0.0
    %3719 = vmatpush1.msra.mxu0 0.0
    %3720 = vmatprep.subr.mxu0 0.0
    %3721 = vmatpush1.msra.mxu0 0.0
    %3722 = vmatprep.subr.mxu0 0.0
    %3723 = vmatpush1.msra.mxu0 0.0
    %3724 = vmatprep.subr.mxu0 0.0
    %3725 = vmatpush1.msra.mxu0 0.0
    %3726 = vmatprep.subr.mxu0 0.0
    %3727 = vmatpush1.msra.mxu0 0.0
    %3728 = vmatprep.mubr.f32.mxu0 0.0
    %3729 = vmatmul.mubr.f32.gmra.mrb[0].mxu0 %v3662
    %v3730 = vpop.f32.mrb[0].mxu0
    %v3731 = vadd.f32 %v3655, %v3730
    %v3732 = vpop.f32.mrb[0].mxu0
    %3733 = vdwg.mxu0
    %v3734 = vtanh.pop %v3731
    %v3735 = vld [vmem:[%s26] sm:$0xff]
    %v3736 = vld [vmem:[%s26 + $0x8] sm:$0xff]
    %v3737 = vld [vmem:[%s26 + $0x10] sm:$0xff]
    %v3738 = vld [vmem:[%s26 + $0x18] sm:$0xff]
    %v3739 = vld [vmem:[%s27] sm:$0x1]
    %v3741 = vlaneseq
    %v3742 = vshrl.u32 %v3741, 7
    %v3743 = vsub.s32 0, %v3742
    %v3744 = vrot.slane %v3739, %v3743
    %v3747 = vsel %vm261, %v3734, 0
    %3749 = vmatprep.subr.mxu0 0.0
    %3750 = vmatpush1.msra.mxu0 %v3735
    %3751 = vmatprep.subr.mxu0 0.0
    %3752 = vmatpush1.msra.mxu0 %v3736
    %3753 = vmatprep.subr.mxu0 0.0
    %3754 = vmatpush1.msra.mxu0 %v3737
    %3755 = vmatprep.subr.mxu0 0.0
    %3756 = vmatpush1.msra.mxu0 %v3738
    %3757 = vmatprep.subr.mxu0 0.0
    %3758 = vmatpush1.msra.mxu0 0.0
    %3759 = vmatprep.subr.mxu0 0.0
    %3760 = vmatpush1.msra.mxu0 0.0
    %3761 = vmatprep.subr.mxu0 0.0
    %3762 = vmatpush1.msra.mxu0 0.0
    %3763 = vmatprep.subr.mxu0 0.0
    %3764 = vmatpush1.msra.mxu0 0.0
    %3765 = vmatprep.subr.mxu0 0.0
    %3766 = vmatpush1.msra.mxu0 0.0
    %3767 = vmatprep.subr.mxu0 0.0
    %3768 = vmatpush1.msra.mxu0 0.0
    %3769 = vmatprep.subr.mxu0 0.0
    %3770 = vmatpush1.msra.mxu0 0.0
    %3771 = vmatprep.subr.mxu0 0.0
    %3772 = vmatpush1.msra.mxu0 0.0
    %3773 = vmatprep.subr.mxu0 0.0
    %3774 = vmatpush1.msra.mxu0 0.0
    %3775 = vmatprep.subr.mxu0 0.0
    %3776 = vmatpush1.msra.mxu0 0.0
    %3777 = vmatprep.subr.mxu0 0.0
    %3778 = vmatpush1.msra.mxu0 0.0
    %3779 = vmatprep.subr.mxu0 0.0
    %3780 = vmatpush1.msra.mxu0 0.0
    %3781 = vmatprep.subr.mxu0 0.0
    %3782 = vmatpush1.msra.mxu0 0.0
    %3783 = vmatprep.subr.mxu0 0.0
    %3784 = vmatpush1.msra.mxu0 0.0
    %3785 = vmatprep.subr.mxu0 0.0
    %3786 = vmatpush1.msra.mxu0 0.0
    %3787 = vmatprep.subr.mxu0 0.0
    %3788 = vmatpush1.msra.mxu0 0.0
    %3789 = vmatprep.subr.mxu0 0.0
    %3790 = vmatpush1.msra.mxu0 0.0
    %3791 = vmatprep.subr.mxu0 0.0
    %3792 = vmatpush1.msra.mxu0 0.0
    %3793 = vmatprep.subr.mxu0 0.0
    %3794 = vmatpush1.msra.mxu0 0.0
    %3795 = vmatprep.subr.mxu0 0.0
    %3796 = vmatpush1.msra.mxu0 0.0
    %3797 = vmatprep.subr.mxu0 0.0
    %3798 = vmatpush1.msra.mxu0 0.0
    %3799 = vmatprep.subr.mxu0 0.0
    %3800 = vmatpush1.msra.mxu0 0.0
    %3801 = vmatprep.subr.mxu0 0.0
    %3802 = vmatpush1.msra.mxu0 0.0
    %3803 = vmatprep.subr.mxu0 0.0
    %3804 = vmatpush1.msra.mxu0 0.0
    %3805 = vmatprep.subr.mxu0 0.0
    %3806 = vmatpush1.msra.mxu0 0.0
    %3807 = vmatprep.subr.mxu0 0.0
    %3808 = vmatpush1.msra.mxu0 0.0
    %3809 = vmatprep.subr.mxu0 0.0
    %3810 = vmatpush1.msra.mxu0 0.0
    %3811 = vmatprep.subr.mxu0 0.0
    %3812 = vmatpush1.msra.mxu0 0.0
    %3813 = vmatprep.mubr.f32.mxu0 0.0
    %3814 = vmatmul.mubr.f32.gmra.mrb[0].mxu0 %v3747
    %v3815 = vpop.f32.mrb[0].mxu0
    %v3816 = vadd.f32 %v3744, %v3815
    %v3817 = vpop.f32.mrb[0].mxu0
    %3818 = vdwg.mxu0
    %3819 = vst [vmem:[#allocation6] sm:$0x3] %v3816
    // Predicated region
    $region106: #{bert_net_forward.1} parent=1 // pred_check
      _
    $region107: #{bert_net_forward.1} parent=1 // pred_check_branch
      %3821 = sbr.rel (0) target = $region109
    $region108: #{bert_net_forward.1} parent=1 // pred_region
      %s3823 = ssub.s32 32, 32
      %3824 = vsyncadd [#allocation7], %s3823
      %s3826 = sshll.u32 [#allocation6], 4
      %s3827 = int_to_ptr.vmem [resolvable:$true] %s3826
      %3829 = dma.vmem_to_hbm [thread:$0]  %s3827, 32, %s28, [#allocation7]
    $region109: #{bert_net_forward.1} parent=1 // pred_fallthru
      _
    // Predicated region
    $region110: #{bert_net_forward.1} parent=1 // pred_check
      _
    $region111: #{bert_net_forward.1} parent=1 // pred_check_branch
      %3831 = sbr.rel (0) target = $region113
    $region112: #{bert_net_forward.1} parent=1 // pred_region
      %3832 = dma.done [#allocation7], 32
    $region113: #{bert_net_forward.1} parent=1 // pred_fallthru
      _
    %3833 = vsyncpa [#allocation7], 1

</llo_original>
